<compile_context>
chip_gen: v7x
topology: tpu7x:2x2x1
jax: 0.10.0
libtpu: 0.0.40
codegen_flags: <defaults>
</compile_context>

<pallas_src>
import functools
import math

import jax
import jax.numpy as jnp
from jax.experimental import pallas as pl
from jax.experimental.pallas import tpu as pltpu


# ----------------------------- hyper params ---------------------------------
class HyperParams:
    n_colors = 16     # vocab size
    n_pixels = 8      # sequence length
    n_embd = 32
    n_head = 4
    n_latent = 8      # n_embd // n_head
    n_layers = 2
    batchsize = 2


# ------------------------------ kernel helpers -------------------------------
def _layernorm(x, w, b, eps=1e-5):
    mu = jnp.mean(x, axis=-1, keepdims=True)
    var = jnp.mean((x - mu) ** 2, axis=-1, keepdims=True)
    return (x - mu) * jax.lax.rsqrt(var + eps) * w + b


def _gelu_exact(x):
    return 0.5 * x * (1.0 + jax.lax.erf(x * (1.0 / math.sqrt(2.0))))


# --------------------------- fused GPT forward kernel ------------------------
def gpt_kernel(tok_ref,                                   # (BT, 1) int32
               emb_ref, pos_ref, bias_ref,                # (C,E) (BT,E) (BT,BT)
               ln1w_ref, ln1b_ref, wqkv_ref, bqkv_ref,    # (L,E)(L,E)(L,E,3E)(L,3E)
               ln2w_ref, ln2b_ref, w1_ref, b1_ref,        # (L,E)(L,E)(L,E,4E)(L,4E)
               w2_ref, b2_ref,                            # (L,4E,E)(L,E)
               lnfw_ref, lnfb_ref, wout_ref,              # (1,E)(1,E)(E,C)
               o_ref,                                     # (BT, C)
               *, n_layers, n_head, n_latent, n_embd, n_colors, n_rows):
    E, H, D, C, BT = n_embd, n_head, n_latent, n_colors, n_rows

    # ---- embedding gather as a one-hot MXU matmul + position add ----
    tok = tok_ref[...]                                    # (BT, 1) int32
    vocab_iota = jax.lax.broadcasted_iota(jnp.int32, (BT, C), 1)
    onehot = (tok == vocab_iota).astype(jnp.float32)      # (BT, C)
    x = (jnp.dot(onehot, emb_ref[...], preferred_element_type=jnp.float32)
         + pos_ref[...])                                  # (BT, E) float32

    # batch-block-diagonal causal additive mask (0 / -1e30), shared by heads
    attn_bias = bias_ref[...]                             # (BT, BT)

    def split_heads(m, base):                             # (BT, 3E) -> (H, BT, D)
        return jnp.stack([m[:, base + h * D: base + (h + 1) * D]
                          for h in range(H)], axis=0)

    # ---- decoder stack: static, unrolled layer loop ----
    for l in range(n_layers):
        # attention branch: x + MHSA(LN1(x))
        xn = _layernorm(x, ln1w_ref[pl.ds(l, 1), :], ln1b_ref[pl.ds(l, 1), :])
        qkv = (jnp.dot(xn, wqkv_ref[l], preferred_element_type=jnp.float32)
               + bqkv_ref[pl.ds(l, 1), :])                # (BT, 3E), one matmul
        q = split_heads(qkv, 0)          # 1/sqrt(n_latent) already folded in W_q
        k = split_heads(qkv, E)
        v = split_heads(qkv, 2 * E)
        s = jnp.einsum('hqd,hkd->hqk', q, k,
                       preferred_element_type=jnp.float32)   # (H, BT, BT)
        s = s + attn_bias
        s = s - jnp.max(s, axis=-1, keepdims=True)
        p = jnp.exp(s)
        p = p / jnp.sum(p, axis=-1, keepdims=True)
        z = jnp.einsum('hqk,hkd->hqd', p, v,
                       preferred_element_type=jnp.float32)   # (H, BT, D)
        attn = jnp.concatenate([z[h] for h in range(H)], axis=-1)  # (BT, E)
        x = x + attn

        # MLP branch: x + W2(GELU(W1(LN2(x))))
        xn2 = _layernorm(x, ln2w_ref[pl.ds(l, 1), :], ln2b_ref[pl.ds(l, 1), :])
        h1 = _gelu_exact(jnp.dot(xn2, w1_ref[l],
                                 preferred_element_type=jnp.float32)
                         + b1_ref[pl.ds(l, 1), :])
        x = x + (jnp.dot(h1, w2_ref[l], preferred_element_type=jnp.float32)
                 + b2_ref[pl.ds(l, 1), :])

    # ---- final LayerNorm + output projection (no bias), single store ----
    xn = _layernorm(x, lnfw_ref[...], lnfb_ref[...])
    o_ref[...] = jnp.dot(xn, wout_ref[...],
                         preferred_element_type=jnp.float32).astype(o_ref.dtype)


# ---------------------------------- wrapper -----------------------------------
def _full_spec(shape):
    nd = len(shape)
    # whole array as one resident block; index_map ignores the grid index
    return pl.BlockSpec(shape, lambda *_: (0,) * nd)


def gpt_forward(tokens, params, hp):
    B, T = tokens.shape
    assert (B, T) == (hp.batchsize, hp.n_pixels)
    E, C, L = hp.n_embd, hp.n_colors, hp.n_layers
    BT = B * T
    tok_col = tokens.reshape(BT, 1).astype(jnp.int32)
    pos_bt = jnp.tile(params["pos"], (B, 1))              # (BT, E) layout plumbing

    inputs = [tok_col, params["emb"], pos_bt, params["attn_bias"],
              params["ln1_w"], params["ln1_b"], params["wqkv"], params["bqkv"],
              params["ln2_w"], params["ln2_b"], params["w1"], params["b1"],
              params["w2"], params["b2"],
              params["lnf_w"], params["lnf_b"], params["w_out"]]

    kern = functools.partial(
        gpt_kernel, n_layers=L, n_head=hp.n_head, n_latent=hp.n_latent,
        n_embd=E, n_colors=C, n_rows=BT)

    logits = pl.pallas_call(
        kern,
        out_shape=jax.ShapeDtypeStruct((BT, C), jnp.float32),
        grid_spec=pltpu.PrefetchScalarGridSpec(
            num_scalar_prefetch=0,
            grid=(1,),                           # whole model in one program
            in_specs=[_full_spec(w.shape) for w in inputs],
            out_specs=_full_spec((BT, C)),
        ),
        compiler_params=pltpu.CompilerParams(
            dimension_semantics=("arbitrary",)),
    )(*inputs)

    prediction = logits.reshape(B, T, C)
    return prediction, None


# ------------------------------ parameter init --------------------------------
def init_params(hp, key):
    E, C, T, L = hp.n_embd, hp.n_colors, hp.n_pixels, hp.n_layers
    D = hp.n_latent
    BT = hp.batchsize * T
    keys = iter(jax.random.split(key, 2 + 8 * L))

    def nrm(shape, scale=0.02):
        return (scale * jax.random.normal(next(keys), shape)).astype(jnp.float32)

    attn_scale = float(D) ** (-0.5)
    ln1_w, ln1_b, ln2_w, ln2_b = [], [], [], []
    wqkv, bqkv, w1, b1, w2, b2 = [], [], [], [], [], []
    for _ in range(L):
        wq, wk, wv = nrm((E, E)), nrm((E, E)), nrm((E, E))
        bq, bk, bv = nrm((E,)), nrm((E,)), nrm((E,))
        # fuse Q/K/V projections; fold the 1/sqrt(n_latent) scale into Q
        wqkv.append(jnp.concatenate([wq * attn_scale, wk, wv], axis=1))   # (E, 3E)
        bqkv.append(jnp.concatenate([bq * attn_scale, bk, bv], axis=0))   # (3E,)
        ln1_w.append(jnp.ones((E,), jnp.float32))
        ln1_b.append(jnp.zeros((E,), jnp.float32))
        ln2_w.append(jnp.ones((E,), jnp.float32))
        ln2_b.append(jnp.zeros((E,), jnp.float32))
        w1.append(nrm((E, 4 * E)))
        b1.append(jnp.zeros((4 * E,), jnp.float32))
        w2.append(nrm((4 * E, E)))
        b2.append(jnp.zeros((E,), jnp.float32))

    # causal mask, block-diagonal over the flattened batch, as additive bias
    row = jnp.arange(BT)[:, None]
    col = jnp.arange(BT)[None, :]
    allowed = (row // T == col // T) & (row >= col)
    attn_bias = jnp.where(allowed, 0.0, -1e30).astype(jnp.float32)

    params = {
        "emb": nrm((C, E)),
        "pos": jnp.zeros((T, E), jnp.float32),     # matches torch.zeros init
        "attn_bias": attn_bias,
        "ln1_w": jnp.stack(ln1_w), "ln1_b": jnp.stack(ln1_b),
        "wqkv": jnp.stack(wqkv),   "bqkv": jnp.stack(bqkv),
        "ln2_w": jnp.stack(ln2_w), "ln2_b": jnp.stack(ln2_b),
        "w1": jnp.stack(w1), "b1": jnp.stack(b1),
        "w2": jnp.stack(w2), "b2": jnp.stack(b2),
        "lnf_w": jnp.ones((1, E), jnp.float32),
        "lnf_b": jnp.zeros((1, E), jnp.float32),
        "w_out": nrm((E, C)),
    }
    return params


# ----------------------------------- main --------------------------------------
if __name__ == "__main__":
    hp = HyperParams()
    key = jax.random.PRNGKey(0)
    k_param, k_tok = jax.random.split(key)

    params = init_params(hp, k_param)
    tokens = jax.random.randint(k_tok, (hp.batchsize, hp.n_pixels), 0,
                                hp.n_colors, dtype=jnp.int32)

    fwd = jax.jit(functools.partial(gpt_forward, hp=hp))
    prediction, loss = fwd(tokens, params)
    jax.block_until_ready(prediction)
    assert prediction.shape == (hp.batchsize, hp.n_pixels, hp.n_colors)
    print("KERNEL_OK")
</pallas_src>

<mosaic_0001>
module attributes {stable_mosaic.version = 11 : i64} {
  func.func @gpt_kernel(%arg0: i32, %arg1: memref<16x1xi32, #tpu.memory_space<vmem>>, %arg2: memref<16x32xf32, #tpu.memory_space<vmem>>, %arg3: memref<16x32xf32, #tpu.memory_space<vmem>>, %arg4: memref<16x16xf32, #tpu.memory_space<vmem>>, %arg5: memref<2x32xf32, #tpu.memory_space<vmem>>, %arg6: memref<2x32xf32, #tpu.memory_space<vmem>>, %arg7: memref<2x32x96xf32, #tpu.memory_space<vmem>>, %arg8: memref<2x96xf32, #tpu.memory_space<vmem>>, %arg9: memref<2x32xf32, #tpu.memory_space<vmem>>, %arg10: memref<2x32xf32, #tpu.memory_space<vmem>>, %arg11: memref<2x32x128xf32, #tpu.memory_space<vmem>>, %arg12: memref<2x128xf32, #tpu.memory_space<vmem>>, %arg13: memref<2x128x32xf32, #tpu.memory_space<vmem>>, %arg14: memref<2x32xf32, #tpu.memory_space<vmem>>, %arg15: memref<1x32xf32, #tpu.memory_space<vmem>>, %arg16: memref<1x32xf32, #tpu.memory_space<vmem>>, %arg17: memref<32x16xf32, #tpu.memory_space<vmem>>, %arg18: memref<16x16xf32, #tpu.memory_space<vmem>>) attributes {dimension_semantics = [#tpu.dimension_semantics<arbitrary>], iteration_bounds = array<i64: 1>, scalar_prefetch = 0 : i64, scratch_operands = 0 : i64, tpu.core_type = #tpu.core_type<tc>, window_params = [{pipeline_mode = #tpu.pipeline_mode<synchronous>, transform_indices = @transform_0, window_bounds = array<i64: 16, 1>}, {pipeline_mode = #tpu.pipeline_mode<synchronous>, transform_indices = @transform_1, window_bounds = array<i64: 16, 32>}, {pipeline_mode = #tpu.pipeline_mode<synchronous>, transform_indices = @transform_2, window_bounds = array<i64: 16, 32>}, {pipeline_mode = #tpu.pipeline_mode<synchronous>, transform_indices = @transform_3, window_bounds = array<i64: 16, 16>}, {pipeline_mode = #tpu.pipeline_mode<synchronous>, transform_indices = @transform_4, window_bounds = array<i64: 2, 32>}, {pipeline_mode = #tpu.pipeline_mode<synchronous>, transform_indices = @transform_5, window_bounds = array<i64: 2, 32>}, {pipeline_mode = #tpu.pipeline_mode<synchronous>, transform_indices = @transform_6, window_bounds = array<i64: 2, 32, 96>}, {pipeline_mode = #tpu.pipeline_mode<synchronous>, transform_indices = @transform_7, window_bounds = array<i64: 2, 96>}, {pipeline_mode = #tpu.pipeline_mode<synchronous>, transform_indices = @transform_8, window_bounds = array<i64: 2, 32>}, {pipeline_mode = #tpu.pipeline_mode<synchronous>, transform_indices = @transform_9, window_bounds = array<i64: 2, 32>}, {pipeline_mode = #tpu.pipeline_mode<synchronous>, transform_indices = @transform_10, window_bounds = array<i64: 2, 32, 128>}, {pipeline_mode = #tpu.pipeline_mode<synchronous>, transform_indices = @transform_11, window_bounds = array<i64: 2, 128>}, {pipeline_mode = #tpu.pipeline_mode<synchronous>, transform_indices = @transform_12, window_bounds = array<i64: 2, 128, 32>}, {pipeline_mode = #tpu.pipeline_mode<synchronous>, transform_indices = @transform_13, window_bounds = array<i64: 2, 32>}, {pipeline_mode = #tpu.pipeline_mode<synchronous>, transform_indices = @transform_14, window_bounds = array<i64: 1, 32>}, {pipeline_mode = #tpu.pipeline_mode<synchronous>, transform_indices = @transform_15, window_bounds = array<i64: 1, 32>}, {pipeline_mode = #tpu.pipeline_mode<synchronous>, transform_indices = @transform_16, window_bounds = array<i64: 32, 16>}, {pipeline_mode = #tpu.pipeline_mode<synchronous>, transform_indices = @transform_17, window_bounds = array<i64: 16, 16>}]} {
    %c0 = arith.constant 0 : index
    %c0_0 = arith.constant 0 : index
    %0 = vector.load %arg1[%c0, %c0_0] : memref<16x1xi32, #tpu.memory_space<vmem>>, vector<16x1xi32>
    %1 = tpu.iota {dimensions = array<i32: 1>} : vector<16x16xi32>
    %2 = vector.broadcast %0 : vector<16x1xi32> to vector<16x16xi32>
    %3 = arith.cmpi eq, %2, %1 : vector<16x16xi32>
    %4 = arith.extui %3 : vector<16x16xi1> to vector<16x16xi32>
    %5 = arith.sitofp %4 : vector<16x16xi32> to vector<16x16xf32>
    %c0_1 = arith.constant 0 : index
    %c0_2 = arith.constant 0 : index
    %6 = vector.load %arg2[%c0_1, %c0_2] : memref<16x32xf32, #tpu.memory_space<vmem>>, vector<16x32xf32>
    %cst = arith.constant dense<0.000000e+00> : vector<16x32xf32>
    %7 = tpu.matmul %5, %6, %cst {dimension_numbers = #tpu.dot_dimension_numbers<[1], [0], [0], [1], [0, 0, 1, 1], [], []>} : vector<16x16xf32>, vector<16x32xf32>, vector<16x32xf32> -> vector<16x32xf32>
    %c0_3 = arith.constant 0 : index
    %c0_4 = arith.constant 0 : index
    %8 = vector.load %arg3[%c0_3, %c0_4] : memref<16x32xf32, #tpu.memory_space<vmem>>, vector<16x32xf32>
    %9 = arith.addf %7, %8 : vector<16x32xf32>
    %c0_5 = arith.constant 0 : index
    %c0_6 = arith.constant 0 : index
    %10 = vector.load %arg4[%c0_5, %c0_6] : memref<16x16xf32, #tpu.memory_space<vmem>>, vector<16x16xf32>
    %c0_7 = arith.constant 0 : index
    %c0_8 = arith.constant 0 : index
    %11 = vector.load %arg5[%c0_7, %c0_8] : memref<2x32xf32, #tpu.memory_space<vmem>>, vector<1x32xf32>
    %c0_9 = arith.constant 0 : index
    %c0_10 = arith.constant 0 : index
    %12 = vector.load %arg6[%c0_9, %c0_10] : memref<2x32xf32, #tpu.memory_space<vmem>>, vector<1x32xf32>
    %cst_11 = arith.constant dense<0.000000e+00> : vector<16xf32>
    %13 = vector.multi_reduction <add>, %9, %cst_11 [1] : vector<16x32xf32> to vector<16xf32>
    %14 = vector.shape_cast %13 : vector<16xf32> to vector<16x1xf32>
    %cst_12 = arith.constant 3.200000e+01 : f32
    %15 = vector.broadcast %cst_12 : f32 to vector<16x1xf32>
    %16 = arith.divf %14, %15 : vector<16x1xf32>
    %17 = vector.broadcast %16 : vector<16x1xf32> to vector<16x32xf32>
    %18 = arith.subf %9, %17 : vector<16x32xf32>
    %19 = arith.mulf %18, %18 : vector<16x32xf32>
    %cst_13 = arith.constant dense<0.000000e+00> : vector<16xf32>
    %20 = vector.multi_reduction <add>, %19, %cst_13 [1] : vector<16x32xf32> to vector<16xf32>
    %21 = vector.shape_cast %20 : vector<16xf32> to vector<16x1xf32>
    %cst_14 = arith.constant 3.200000e+01 : f32
    %22 = vector.broadcast %cst_14 : f32 to vector<16x1xf32>
    %23 = arith.divf %21, %22 : vector<16x1xf32>
    %24 = vector.broadcast %16 : vector<16x1xf32> to vector<16x32xf32>
    %25 = arith.subf %9, %24 : vector<16x32xf32>
    %cst_15 = arith.constant 9.99999974E-6 : f32
    %26 = vector.broadcast %cst_15 : f32 to vector<16x1xf32>
    %27 = arith.addf %23, %26 : vector<16x1xf32>
    %28 = math.rsqrt %27 : vector<16x1xf32>
    %29 = vector.broadcast %28 : vector<16x1xf32> to vector<16x32xf32>
    %30 = arith.mulf %25, %29 : vector<16x32xf32>
    %31 = vector.broadcast %11 : vector<1x32xf32> to vector<16x32xf32>
    %32 = arith.mulf %30, %31 : vector<16x32xf32>
    %33 = vector.broadcast %12 : vector<1x32xf32> to vector<16x32xf32>
    %34 = arith.addf %32, %33 : vector<16x32xf32>
    %c0_16 = arith.constant 0 : index
    %c0_17 = arith.constant 0 : index
    %c0_18 = arith.constant 0 : index
    %35 = vector.load %arg7[%c0_16, %c0_17, %c0_18] : memref<2x32x96xf32, #tpu.memory_space<vmem>>, vector<1x32x96xf32>
    %36 = vector.shape_cast %35 : vector<1x32x96xf32> to vector<32x96xf32>
    %cst_19 = arith.constant dense<0.000000e+00> : vector<16x96xf32>
    %37 = tpu.matmul %34, %36, %cst_19 {dimension_numbers = #tpu.dot_dimension_numbers<[1], [0], [0], [1], [0, 0, 1, 1], [], []>} : vector<16x32xf32>, vector<32x96xf32>, vector<16x96xf32> -> vector<16x96xf32>
    %c0_20 = arith.constant 0 : index
    %c0_21 = arith.constant 0 : index
    %38 = vector.load %arg8[%c0_20, %c0_21] : memref<2x96xf32, #tpu.memory_space<vmem>>, vector<1x96xf32>
    %39 = vector.broadcast %38 : vector<1x96xf32> to vector<16x96xf32>
    %40 = arith.addf %37, %39 : vector<16x96xf32>
    %41 = vector.extract_strided_slice %40 {offsets = [0, 0], sizes = [16, 8], strides = [1, 1]} : vector<16x96xf32> to vector<16x8xf32>
    %42 = vector.extract_strided_slice %40 {offsets = [0, 8], sizes = [16, 8], strides = [1, 1]} : vector<16x96xf32> to vector<16x8xf32>
    %43 = vector.extract_strided_slice %40 {offsets = [0, 16], sizes = [16, 8], strides = [1, 1]} : vector<16x96xf32> to vector<16x8xf32>
    %44 = vector.extract_strided_slice %40 {offsets = [0, 24], sizes = [16, 8], strides = [1, 1]} : vector<16x96xf32> to vector<16x8xf32>
    %45 = vector.shape_cast %41 : vector<16x8xf32> to vector<1x16x8xf32>
    %46 = vector.shape_cast %42 : vector<16x8xf32> to vector<1x16x8xf32>
    %47 = vector.shape_cast %43 : vector<16x8xf32> to vector<1x16x8xf32>
    %48 = vector.shape_cast %44 : vector<16x8xf32> to vector<1x16x8xf32>
    %49 = tpu.concatenate %45, %46, %47, %48 in 0 : vector<1x16x8xf32>, vector<1x16x8xf32>, vector<1x16x8xf32>, vector<1x16x8xf32> -> vector<4x16x8xf32>
    %50 = vector.extract_strided_slice %40 {offsets = [0, 32], sizes = [16, 8], strides = [1, 1]} : vector<16x96xf32> to vector<16x8xf32>
    %51 = vector.extract_strided_slice %40 {offsets = [0, 40], sizes = [16, 8], strides = [1, 1]} : vector<16x96xf32> to vector<16x8xf32>
    %52 = vector.extract_strided_slice %40 {offsets = [0, 48], sizes = [16, 8], strides = [1, 1]} : vector<16x96xf32> to vector<16x8xf32>
    %53 = vector.extract_strided_slice %40 {offsets = [0, 56], sizes = [16, 8], strides = [1, 1]} : vector<16x96xf32> to vector<16x8xf32>
    %54 = vector.shape_cast %50 : vector<16x8xf32> to vector<1x16x8xf32>
    %55 = vector.shape_cast %51 : vector<16x8xf32> to vector<1x16x8xf32>
    %56 = vector.shape_cast %52 : vector<16x8xf32> to vector<1x16x8xf32>
    %57 = vector.shape_cast %53 : vector<16x8xf32> to vector<1x16x8xf32>
    %58 = tpu.concatenate %54, %55, %56, %57 in 0 : vector<1x16x8xf32>, vector<1x16x8xf32>, vector<1x16x8xf32>, vector<1x16x8xf32> -> vector<4x16x8xf32>
    %59 = vector.extract_strided_slice %40 {offsets = [0, 64], sizes = [16, 8], strides = [1, 1]} : vector<16x96xf32> to vector<16x8xf32>
    %60 = vector.extract_strided_slice %40 {offsets = [0, 72], sizes = [16, 8], strides = [1, 1]} : vector<16x96xf32> to vector<16x8xf32>
    %61 = vector.extract_strided_slice %40 {offsets = [0, 80], sizes = [16, 8], strides = [1, 1]} : vector<16x96xf32> to vector<16x8xf32>
    %62 = vector.extract_strided_slice %40 {offsets = [0, 88], sizes = [16, 8], strides = [1, 1]} : vector<16x96xf32> to vector<16x8xf32>
    %63 = vector.shape_cast %59 : vector<16x8xf32> to vector<1x16x8xf32>
    %64 = vector.shape_cast %60 : vector<16x8xf32> to vector<1x16x8xf32>
    %65 = vector.shape_cast %61 : vector<16x8xf32> to vector<1x16x8xf32>
    %66 = vector.shape_cast %62 : vector<16x8xf32> to vector<1x16x8xf32>
    %67 = tpu.concatenate %63, %64, %65, %66 in 0 : vector<1x16x8xf32>, vector<1x16x8xf32>, vector<1x16x8xf32>, vector<1x16x8xf32> -> vector<4x16x8xf32>
    "tpu.trace_start"() <{level = 10 : i32, message = "hqd,hkd->hqk"}> : () -> ()
    %cst_22 = arith.constant dense<0.000000e+00> : vector<4x16x16xf32>
    %68 = tpu.matmul %49, %58, %cst_22 {dimension_numbers = #tpu.dot_dimension_numbers<[2], [2], [1], [1], [0, 0, 0, 1, 1, 1], [0], [0]>} : vector<4x16x8xf32>, vector<4x16x8xf32>, vector<4x16x16xf32> -> vector<4x16x16xf32>
    "tpu.trace_stop"() : () -> ()
    %69 = vector.shape_cast %10 : vector<16x16xf32> to vector<1x16x16xf32>
    %70 = vector.broadcast %69 : vector<1x16x16xf32> to vector<4x16x16xf32>
    %71 = arith.addf %68, %70 : vector<4x16x16xf32>
    %cst_23 = arith.constant dense<0xFF800000> : vector<4x16xf32>
    %72 = vector.multi_reduction <maximumf>, %71, %cst_23 [2] : vector<4x16x16xf32> to vector<4x16xf32>
    %73 = vector.shape_cast %72 : vector<4x16xf32> to vector<4x16x1xf32>
    %74 = vector.broadcast %73 : vector<4x16x1xf32> to vector<4x16x16xf32>
    %75 = arith.subf %71, %74 : vector<4x16x16xf32>
    %76 = math.exp %75 : vector<4x16x16xf32>
    %cst_24 = arith.constant dense<0.000000e+00> : vector<4x16xf32>
    %77 = vector.multi_reduction <add>, %76, %cst_24 [2] : vector<4x16x16xf32> to vector<4x16xf32>
    %78 = vector.shape_cast %77 : vector<4x16xf32> to vector<4x16x1xf32>
    %79 = vector.broadcast %78 : vector<4x16x1xf32> to vector<4x16x16xf32>
    %80 = arith.divf %76, %79 : vector<4x16x16xf32>
    "tpu.trace_start"() <{level = 10 : i32, message = "hqk,hkd->hqd"}> : () -> ()
    %cst_25 = arith.constant dense<0.000000e+00> : vector<4x16x8xf32>
    %81 = tpu.matmul %80, %67, %cst_25 {dimension_numbers = #tpu.dot_dimension_numbers<[2], [1], [1], [2], [0, 0, 0, 1, 1, 2], [0], [0]>} : vector<4x16x16xf32>, vector<4x16x8xf32>, vector<4x16x8xf32> -> vector<4x16x8xf32>
    "tpu.trace_stop"() : () -> ()
    %82 = vector.extract_strided_slice %81 {offsets = [0, 0, 0], sizes = [1, 16, 8], strides = [1, 1, 1]} : vector<4x16x8xf32> to vector<1x16x8xf32>
    %83 = vector.shape_cast %82 : vector<1x16x8xf32> to vector<16x8xf32>
    %84 = vector.extract_strided_slice %81 {offsets = [1, 0, 0], sizes = [1, 16, 8], strides = [1, 1, 1]} : vector<4x16x8xf32> to vector<1x16x8xf32>
    %85 = vector.shape_cast %84 : vector<1x16x8xf32> to vector<16x8xf32>
    %86 = vector.extract_strided_slice %81 {offsets = [2, 0, 0], sizes = [1, 16, 8], strides = [1, 1, 1]} : vector<4x16x8xf32> to vector<1x16x8xf32>
    %87 = vector.shape_cast %86 : vector<1x16x8xf32> to vector<16x8xf32>
    %88 = vector.extract_strided_slice %81 {offsets = [3, 0, 0], sizes = [1, 16, 8], strides = [1, 1, 1]} : vector<4x16x8xf32> to vector<1x16x8xf32>
    %89 = vector.shape_cast %88 : vector<1x16x8xf32> to vector<16x8xf32>
    %90 = tpu.concatenate %83, %85, %87, %89 in 1 : vector<16x8xf32>, vector<16x8xf32>, vector<16x8xf32>, vector<16x8xf32> -> vector<16x32xf32>
    %91 = arith.addf %9, %90 : vector<16x32xf32>
    %c0_26 = arith.constant 0 : index
    %c0_27 = arith.constant 0 : index
    %92 = vector.load %arg9[%c0_26, %c0_27] : memref<2x32xf32, #tpu.memory_space<vmem>>, vector<1x32xf32>
    %c0_28 = arith.constant 0 : index
    %c0_29 = arith.constant 0 : index
    %93 = vector.load %arg10[%c0_28, %c0_29] : memref<2x32xf32, #tpu.memory_space<vmem>>, vector<1x32xf32>
    %cst_30 = arith.constant dense<0.000000e+00> : vector<16xf32>
    %94 = vector.multi_reduction <add>, %91, %cst_30 [1] : vector<16x32xf32> to vector<16xf32>
    %95 = vector.shape_cast %94 : vector<16xf32> to vector<16x1xf32>
    %cst_31 = arith.constant 3.200000e+01 : f32
    %96 = vector.broadcast %cst_31 : f32 to vector<16x1xf32>
    %97 = arith.divf %95, %96 : vector<16x1xf32>
    %98 = vector.broadcast %97 : vector<16x1xf32> to vector<16x32xf32>
    %99 = arith.subf %91, %98 : vector<16x32xf32>
    %100 = arith.mulf %99, %99 : vector<16x32xf32>
    %cst_32 = arith.constant dense<0.000000e+00> : vector<16xf32>
    %101 = vector.multi_reduction <add>, %100, %cst_32 [1] : vector<16x32xf32> to vector<16xf32>
    %102 = vector.shape_cast %101 : vector<16xf32> to vector<16x1xf32>
    %cst_33 = arith.constant 3.200000e+01 : f32
    %103 = vector.broadcast %cst_33 : f32 to vector<16x1xf32>
    %104 = arith.divf %102, %103 : vector<16x1xf32>
    %105 = vector.broadcast %97 : vector<16x1xf32> to vector<16x32xf32>
    %106 = arith.subf %91, %105 : vector<16x32xf32>
    %cst_34 = arith.constant 9.99999974E-6 : f32
    %107 = vector.broadcast %cst_34 : f32 to vector<16x1xf32>
    %108 = arith.addf %104, %107 : vector<16x1xf32>
    %109 = math.rsqrt %108 : vector<16x1xf32>
    %110 = vector.broadcast %109 : vector<16x1xf32> to vector<16x32xf32>
    %111 = arith.mulf %106, %110 : vector<16x32xf32>
    %112 = vector.broadcast %92 : vector<1x32xf32> to vector<16x32xf32>
    %113 = arith.mulf %111, %112 : vector<16x32xf32>
    %114 = vector.broadcast %93 : vector<1x32xf32> to vector<16x32xf32>
    %115 = arith.addf %113, %114 : vector<16x32xf32>
    %c0_35 = arith.constant 0 : index
    %c0_36 = arith.constant 0 : index
    %c0_37 = arith.constant 0 : index
    %116 = vector.load %arg11[%c0_35, %c0_36, %c0_37] : memref<2x32x128xf32, #tpu.memory_space<vmem>>, vector<1x32x128xf32>
    %117 = vector.shape_cast %116 : vector<1x32x128xf32> to vector<32x128xf32>
    %cst_38 = arith.constant dense<0.000000e+00> : vector<16x128xf32>
    %118 = tpu.matmul %115, %117, %cst_38 {dimension_numbers = #tpu.dot_dimension_numbers<[1], [0], [0], [1], [0, 0, 1, 1], [], []>} : vector<16x32xf32>, vector<32x128xf32>, vector<16x128xf32> -> vector<16x128xf32>
    %c0_39 = arith.constant 0 : index
    %c0_40 = arith.constant 0 : index
    %119 = vector.load %arg12[%c0_39, %c0_40] : memref<2x128xf32, #tpu.memory_space<vmem>>, vector<1x128xf32>
    %120 = vector.broadcast %119 : vector<1x128xf32> to vector<16x128xf32>
    %121 = arith.addf %118, %120 : vector<16x128xf32>
    %cst_41 = arith.constant 5.000000e-01 : f32
    %122 = vector.broadcast %cst_41 : f32 to vector<16x128xf32>
    %123 = arith.mulf %122, %121 : vector<16x128xf32>
    %cst_42 = arith.constant 0.707106769 : f32
    %124 = vector.broadcast %cst_42 : f32 to vector<16x128xf32>
    %125 = arith.mulf %121, %124 : vector<16x128xf32>
    %126 = math.erf %125 : vector<16x128xf32>
    %cst_43 = arith.constant 1.000000e+00 : f32
    %127 = vector.broadcast %cst_43 : f32 to vector<16x128xf32>
    %128 = arith.addf %127, %126 : vector<16x128xf32>
    %129 = arith.mulf %123, %128 : vector<16x128xf32>
    %c0_44 = arith.constant 0 : index
    %c0_45 = arith.constant 0 : index
    %c0_46 = arith.constant 0 : index
    %130 = vector.load %arg13[%c0_44, %c0_45, %c0_46] : memref<2x128x32xf32, #tpu.memory_space<vmem>>, vector<1x128x32xf32>
    %131 = vector.shape_cast %130 : vector<1x128x32xf32> to vector<128x32xf32>
    %cst_47 = arith.constant dense<0.000000e+00> : vector<16x32xf32>
    %132 = tpu.matmul %129, %131, %cst_47 {dimension_numbers = #tpu.dot_dimension_numbers<[1], [0], [0], [1], [0, 0, 1, 1], [], []>} : vector<16x128xf32>, vector<128x32xf32>, vector<16x32xf32> -> vector<16x32xf32>
    %c0_48 = arith.constant 0 : index
    %c0_49 = arith.constant 0 : index
    %133 = vector.load %arg14[%c0_48, %c0_49] : memref<2x32xf32, #tpu.memory_space<vmem>>, vector<1x32xf32>
    %134 = vector.broadcast %133 : vector<1x32xf32> to vector<16x32xf32>
    %135 = arith.addf %132, %134 : vector<16x32xf32>
    %136 = arith.addf %91, %135 : vector<16x32xf32>
    %c1 = arith.constant 1 : index
    %c0_50 = arith.constant 0 : index
    %137 = vector.load %arg5[%c1, %c0_50] : memref<2x32xf32, #tpu.memory_space<vmem>>, vector<1x32xf32>
    %c1_51 = arith.constant 1 : index
    %c0_52 = arith.constant 0 : index
    %138 = vector.load %arg6[%c1_51, %c0_52] : memref<2x32xf32, #tpu.memory_space<vmem>>, vector<1x32xf32>
    %cst_53 = arith.constant dense<0.000000e+00> : vector<16xf32>
    %139 = vector.multi_reduction <add>, %136, %cst_53 [1] : vector<16x32xf32> to vector<16xf32>
    %140 = vector.shape_cast %139 : vector<16xf32> to vector<16x1xf32>
    %cst_54 = arith.constant 3.200000e+01 : f32
    %141 = vector.broadcast %cst_54 : f32 to vector<16x1xf32>
    %142 = arith.divf %140, %141 : vector<16x1xf32>
    %143 = vector.broadcast %142 : vector<16x1xf32> to vector<16x32xf32>
    %144 = arith.subf %136, %143 : vector<16x32xf32>
    %145 = arith.mulf %144, %144 : vector<16x32xf32>
    %cst_55 = arith.constant dense<0.000000e+00> : vector<16xf32>
    %146 = vector.multi_reduction <add>, %145, %cst_55 [1] : vector<16x32xf32> to vector<16xf32>
    %147 = vector.shape_cast %146 : vector<16xf32> to vector<16x1xf32>
    %cst_56 = arith.constant 3.200000e+01 : f32
    %148 = vector.broadcast %cst_56 : f32 to vector<16x1xf32>
    %149 = arith.divf %147, %148 : vector<16x1xf32>
    %150 = vector.broadcast %142 : vector<16x1xf32> to vector<16x32xf32>
    %151 = arith.subf %136, %150 : vector<16x32xf32>
    %cst_57 = arith.constant 9.99999974E-6 : f32
    %152 = vector.broadcast %cst_57 : f32 to vector<16x1xf32>
    %153 = arith.addf %149, %152 : vector<16x1xf32>
    %154 = math.rsqrt %153 : vector<16x1xf32>
    %155 = vector.broadcast %154 : vector<16x1xf32> to vector<16x32xf32>
    %156 = arith.mulf %151, %155 : vector<16x32xf32>
    %157 = vector.broadcast %137 : vector<1x32xf32> to vector<16x32xf32>
    %158 = arith.mulf %156, %157 : vector<16x32xf32>
    %159 = vector.broadcast %138 : vector<1x32xf32> to vector<16x32xf32>
    %160 = arith.addf %158, %159 : vector<16x32xf32>
    %c1_58 = arith.constant 1 : index
    %c0_59 = arith.constant 0 : index
    %c0_60 = arith.constant 0 : index
    %161 = vector.load %arg7[%c1_58, %c0_59, %c0_60] : memref<2x32x96xf32, #tpu.memory_space<vmem>>, vector<1x32x96xf32>
    %162 = vector.shape_cast %161 : vector<1x32x96xf32> to vector<32x96xf32>
    %cst_61 = arith.constant dense<0.000000e+00> : vector<16x96xf32>
    %163 = tpu.matmul %160, %162, %cst_61 {dimension_numbers = #tpu.dot_dimension_numbers<[1], [0], [0], [1], [0, 0, 1, 1], [], []>} : vector<16x32xf32>, vector<32x96xf32>, vector<16x96xf32> -> vector<16x96xf32>
    %c1_62 = arith.constant 1 : index
    %c0_63 = arith.constant 0 : index
    %164 = vector.load %arg8[%c1_62, %c0_63] : memref<2x96xf32, #tpu.memory_space<vmem>>, vector<1x96xf32>
    %165 = vector.broadcast %164 : vector<1x96xf32> to vector<16x96xf32>
    %166 = arith.addf %163, %165 : vector<16x96xf32>
    %167 = vector.extract_strided_slice %166 {offsets = [0, 0], sizes = [16, 8], strides = [1, 1]} : vector<16x96xf32> to vector<16x8xf32>
    %168 = vector.extract_strided_slice %166 {offsets = [0, 8], sizes = [16, 8], strides = [1, 1]} : vector<16x96xf32> to vector<16x8xf32>
    %169 = vector.extract_strided_slice %166 {offsets = [0, 16], sizes = [16, 8], strides = [1, 1]} : vector<16x96xf32> to vector<16x8xf32>
    %170 = vector.extract_strided_slice %166 {offsets = [0, 24], sizes = [16, 8], strides = [1, 1]} : vector<16x96xf32> to vector<16x8xf32>
    %171 = vector.shape_cast %167 : vector<16x8xf32> to vector<1x16x8xf32>
    %172 = vector.shape_cast %168 : vector<16x8xf32> to vector<1x16x8xf32>
    %173 = vector.shape_cast %169 : vector<16x8xf32> to vector<1x16x8xf32>
    %174 = vector.shape_cast %170 : vector<16x8xf32> to vector<1x16x8xf32>
    %175 = tpu.concatenate %171, %172, %173, %174 in 0 : vector<1x16x8xf32>, vector<1x16x8xf32>, vector<1x16x8xf32>, vector<1x16x8xf32> -> vector<4x16x8xf32>
    %176 = vector.extract_strided_slice %166 {offsets = [0, 32], sizes = [16, 8], strides = [1, 1]} : vector<16x96xf32> to vector<16x8xf32>
    %177 = vector.extract_strided_slice %166 {offsets = [0, 40], sizes = [16, 8], strides = [1, 1]} : vector<16x96xf32> to vector<16x8xf32>
    %178 = vector.extract_strided_slice %166 {offsets = [0, 48], sizes = [16, 8], strides = [1, 1]} : vector<16x96xf32> to vector<16x8xf32>
    %179 = vector.extract_strided_slice %166 {offsets = [0, 56], sizes = [16, 8], strides = [1, 1]} : vector<16x96xf32> to vector<16x8xf32>
    %180 = vector.shape_cast %176 : vector<16x8xf32> to vector<1x16x8xf32>
    %181 = vector.shape_cast %177 : vector<16x8xf32> to vector<1x16x8xf32>
    %182 = vector.shape_cast %178 : vector<16x8xf32> to vector<1x16x8xf32>
    %183 = vector.shape_cast %179 : vector<16x8xf32> to vector<1x16x8xf32>
    %184 = tpu.concatenate %180, %181, %182, %183 in 0 : vector<1x16x8xf32>, vector<1x16x8xf32>, vector<1x16x8xf32>, vector<1x16x8xf32> -> vector<4x16x8xf32>
    %185 = vector.extract_strided_slice %166 {offsets = [0, 64], sizes = [16, 8], strides = [1, 1]} : vector<16x96xf32> to vector<16x8xf32>
    %186 = vector.extract_strided_slice %166 {offsets = [0, 72], sizes = [16, 8], strides = [1, 1]} : vector<16x96xf32> to vector<16x8xf32>
    %187 = vector.extract_strided_slice %166 {offsets = [0, 80], sizes = [16, 8], strides = [1, 1]} : vector<16x96xf32> to vector<16x8xf32>
    %188 = vector.extract_strided_slice %166 {offsets = [0, 88], sizes = [16, 8], strides = [1, 1]} : vector<16x96xf32> to vector<16x8xf32>
    %189 = vector.shape_cast %185 : vector<16x8xf32> to vector<1x16x8xf32>
    %190 = vector.shape_cast %186 : vector<16x8xf32> to vector<1x16x8xf32>
    %191 = vector.shape_cast %187 : vector<16x8xf32> to vector<1x16x8xf32>
    %192 = vector.shape_cast %188 : vector<16x8xf32> to vector<1x16x8xf32>
    %193 = tpu.concatenate %189, %190, %191, %192 in 0 : vector<1x16x8xf32>, vector<1x16x8xf32>, vector<1x16x8xf32>, vector<1x16x8xf32> -> vector<4x16x8xf32>
    "tpu.trace_start"() <{level = 10 : i32, message = "hqd,hkd->hqk"}> : () -> ()
    %cst_64 = arith.constant dense<0.000000e+00> : vector<4x16x16xf32>
    %194 = tpu.matmul %175, %184, %cst_64 {dimension_numbers = #tpu.dot_dimension_numbers<[2], [2], [1], [1], [0, 0, 0, 1, 1, 1], [0], [0]>} : vector<4x16x8xf32>, vector<4x16x8xf32>, vector<4x16x16xf32> -> vector<4x16x16xf32>
    "tpu.trace_stop"() : () -> ()
    %195 = vector.shape_cast %10 : vector<16x16xf32> to vector<1x16x16xf32>
    %196 = vector.broadcast %195 : vector<1x16x16xf32> to vector<4x16x16xf32>
    %197 = arith.addf %194, %196 : vector<4x16x16xf32>
    %cst_65 = arith.constant dense<0xFF800000> : vector<4x16xf32>
    %198 = vector.multi_reduction <maximumf>, %197, %cst_65 [2] : vector<4x16x16xf32> to vector<4x16xf32>
    %199 = vector.shape_cast %198 : vector<4x16xf32> to vector<4x16x1xf32>
    %200 = vector.broadcast %199 : vector<4x16x1xf32> to vector<4x16x16xf32>
    %201 = arith.subf %197, %200 : vector<4x16x16xf32>
    %202 = math.exp %201 : vector<4x16x16xf32>
    %cst_66 = arith.constant dense<0.000000e+00> : vector<4x16xf32>
    %203 = vector.multi_reduction <add>, %202, %cst_66 [2] : vector<4x16x16xf32> to vector<4x16xf32>
    %204 = vector.shape_cast %203 : vector<4x16xf32> to vector<4x16x1xf32>
    %205 = vector.broadcast %204 : vector<4x16x1xf32> to vector<4x16x16xf32>
    %206 = arith.divf %202, %205 : vector<4x16x16xf32>
    "tpu.trace_start"() <{level = 10 : i32, message = "hqk,hkd->hqd"}> : () -> ()
    %cst_67 = arith.constant dense<0.000000e+00> : vector<4x16x8xf32>
    %207 = tpu.matmul %206, %193, %cst_67 {dimension_numbers = #tpu.dot_dimension_numbers<[2], [1], [1], [2], [0, 0, 0, 1, 1, 2], [0], [0]>} : vector<4x16x16xf32>, vector<4x16x8xf32>, vector<4x16x8xf32> -> vector<4x16x8xf32>
    "tpu.trace_stop"() : () -> ()
    %208 = vector.extract_strided_slice %207 {offsets = [0, 0, 0], sizes = [1, 16, 8], strides = [1, 1, 1]} : vector<4x16x8xf32> to vector<1x16x8xf32>
    %209 = vector.shape_cast %208 : vector<1x16x8xf32> to vector<16x8xf32>
    %210 = vector.extract_strided_slice %207 {offsets = [1, 0, 0], sizes = [1, 16, 8], strides = [1, 1, 1]} : vector<4x16x8xf32> to vector<1x16x8xf32>
    %211 = vector.shape_cast %210 : vector<1x16x8xf32> to vector<16x8xf32>
    %212 = vector.extract_strided_slice %207 {offsets = [2, 0, 0], sizes = [1, 16, 8], strides = [1, 1, 1]} : vector<4x16x8xf32> to vector<1x16x8xf32>
    %213 = vector.shape_cast %212 : vector<1x16x8xf32> to vector<16x8xf32>
    %214 = vector.extract_strided_slice %207 {offsets = [3, 0, 0], sizes = [1, 16, 8], strides = [1, 1, 1]} : vector<4x16x8xf32> to vector<1x16x8xf32>
    %215 = vector.shape_cast %214 : vector<1x16x8xf32> to vector<16x8xf32>
    %216 = tpu.concatenate %209, %211, %213, %215 in 1 : vector<16x8xf32>, vector<16x8xf32>, vector<16x8xf32>, vector<16x8xf32> -> vector<16x32xf32>
    %217 = arith.addf %136, %216 : vector<16x32xf32>
    %c1_68 = arith.constant 1 : index
    %c0_69 = arith.constant 0 : index
    %218 = vector.load %arg9[%c1_68, %c0_69] : memref<2x32xf32, #tpu.memory_space<vmem>>, vector<1x32xf32>
    %c1_70 = arith.constant 1 : index
    %c0_71 = arith.constant 0 : index
    %219 = vector.load %arg10[%c1_70, %c0_71] : memref<2x32xf32, #tpu.memory_space<vmem>>, vector<1x32xf32>
    %cst_72 = arith.constant dense<0.000000e+00> : vector<16xf32>
    %220 = vector.multi_reduction <add>, %217, %cst_72 [1] : vector<16x32xf32> to vector<16xf32>
    %221 = vector.shape_cast %220 : vector<16xf32> to vector<16x1xf32>
    %cst_73 = arith.constant 3.200000e+01 : f32
    %222 = vector.broadcast %cst_73 : f32 to vector<16x1xf32>
    %223 = arith.divf %221, %222 : vector<16x1xf32>
    %224 = vector.broadcast %223 : vector<16x1xf32> to vector<16x32xf32>
    %225 = arith.subf %217, %224 : vector<16x32xf32>
    %226 = arith.mulf %225, %225 : vector<16x32xf32>
    %cst_74 = arith.constant dense<0.000000e+00> : vector<16xf32>
    %227 = vector.multi_reduction <add>, %226, %cst_74 [1] : vector<16x32xf32> to vector<16xf32>
    %228 = vector.shape_cast %227 : vector<16xf32> to vector<16x1xf32>
    %cst_75 = arith.constant 3.200000e+01 : f32
    %229 = vector.broadcast %cst_75 : f32 to vector<16x1xf32>
    %230 = arith.divf %228, %229 : vector<16x1xf32>
    %231 = vector.broadcast %223 : vector<16x1xf32> to vector<16x32xf32>
    %232 = arith.subf %217, %231 : vector<16x32xf32>
    %cst_76 = arith.constant 9.99999974E-6 : f32
    %233 = vector.broadcast %cst_76 : f32 to vector<16x1xf32>
    %234 = arith.addf %230, %233 : vector<16x1xf32>
    %235 = math.rsqrt %234 : vector<16x1xf32>
    %236 = vector.broadcast %235 : vector<16x1xf32> to vector<16x32xf32>
    %237 = arith.mulf %232, %236 : vector<16x32xf32>
    %238 = vector.broadcast %218 : vector<1x32xf32> to vector<16x32xf32>
    %239 = arith.mulf %237, %238 : vector<16x32xf32>
    %240 = vector.broadcast %219 : vector<1x32xf32> to vector<16x32xf32>
    %241 = arith.addf %239, %240 : vector<16x32xf32>
    %c1_77 = arith.constant 1 : index
    %c0_78 = arith.constant 0 : index
    %c0_79 = arith.constant 0 : index
    %242 = vector.load %arg11[%c1_77, %c0_78, %c0_79] : memref<2x32x128xf32, #tpu.memory_space<vmem>>, vector<1x32x128xf32>
    %243 = vector.shape_cast %242 : vector<1x32x128xf32> to vector<32x128xf32>
    %cst_80 = arith.constant dense<0.000000e+00> : vector<16x128xf32>
    %244 = tpu.matmul %241, %243, %cst_80 {dimension_numbers = #tpu.dot_dimension_numbers<[1], [0], [0], [1], [0, 0, 1, 1], [], []>} : vector<16x32xf32>, vector<32x128xf32>, vector<16x128xf32> -> vector<16x128xf32>
    %c1_81 = arith.constant 1 : index
    %c0_82 = arith.constant 0 : index
    %245 = vector.load %arg12[%c1_81, %c0_82] : memref<2x128xf32, #tpu.memory_space<vmem>>, vector<1x128xf32>
    %246 = vector.broadcast %245 : vector<1x128xf32> to vector<16x128xf32>
    %247 = arith.addf %244, %246 : vector<16x128xf32>
    %cst_83 = arith.constant 5.000000e-01 : f32
    %248 = vector.broadcast %cst_83 : f32 to vector<16x128xf32>
    %249 = arith.mulf %248, %247 : vector<16x128xf32>
    %cst_84 = arith.constant 0.707106769 : f32
    %250 = vector.broadcast %cst_84 : f32 to vector<16x128xf32>
    %251 = arith.mulf %247, %250 : vector<16x128xf32>
    %252 = math.erf %251 : vector<16x128xf32>
    %cst_85 = arith.constant 1.000000e+00 : f32
    %253 = vector.broadcast %cst_85 : f32 to vector<16x128xf32>
    %254 = arith.addf %253, %252 : vector<16x128xf32>
    %255 = arith.mulf %249, %254 : vector<16x128xf32>
    %c1_86 = arith.constant 1 : index
    %c0_87 = arith.constant 0 : index
    %c0_88 = arith.constant 0 : index
    %256 = vector.load %arg13[%c1_86, %c0_87, %c0_88] : memref<2x128x32xf32, #tpu.memory_space<vmem>>, vector<1x128x32xf32>
    %257 = vector.shape_cast %256 : vector<1x128x32xf32> to vector<128x32xf32>
    %cst_89 = arith.constant dense<0.000000e+00> : vector<16x32xf32>
    %258 = tpu.matmul %255, %257, %cst_89 {dimension_numbers = #tpu.dot_dimension_numbers<[1], [0], [0], [1], [0, 0, 1, 1], [], []>} : vector<16x128xf32>, vector<128x32xf32>, vector<16x32xf32> -> vector<16x32xf32>
    %c1_90 = arith.constant 1 : index
    %c0_91 = arith.constant 0 : index
    %259 = vector.load %arg14[%c1_90, %c0_91] : memref<2x32xf32, #tpu.memory_space<vmem>>, vector<1x32xf32>
    %260 = vector.broadcast %259 : vector<1x32xf32> to vector<16x32xf32>
    %261 = arith.addf %258, %260 : vector<16x32xf32>
    %262 = arith.addf %217, %261 : vector<16x32xf32>
    %c0_92 = arith.constant 0 : index
    %c0_93 = arith.constant 0 : index
    %263 = vector.load %arg15[%c0_92, %c0_93] : memref<1x32xf32, #tpu.memory_space<vmem>>, vector<1x32xf32>
    %c0_94 = arith.constant 0 : index
    %c0_95 = arith.constant 0 : index
    %264 = vector.load %arg16[%c0_94, %c0_95] : memref<1x32xf32, #tpu.memory_space<vmem>>, vector<1x32xf32>
    %cst_96 = arith.constant dense<0.000000e+00> : vector<16xf32>
    %265 = vector.multi_reduction <add>, %262, %cst_96 [1] : vector<16x32xf32> to vector<16xf32>
    %266 = vector.shape_cast %265 : vector<16xf32> to vector<16x1xf32>
    %cst_97 = arith.constant 3.200000e+01 : f32
    %267 = vector.broadcast %cst_97 : f32 to vector<16x1xf32>
    %268 = arith.divf %266, %267 : vector<16x1xf32>
    %269 = vector.broadcast %268 : vector<16x1xf32> to vector<16x32xf32>
    %270 = arith.subf %262, %269 : vector<16x32xf32>
    %271 = arith.mulf %270, %270 : vector<16x32xf32>
    %cst_98 = arith.constant dense<0.000000e+00> : vector<16xf32>
    %272 = vector.multi_reduction <add>, %271, %cst_98 [1] : vector<16x32xf32> to vector<16xf32>
    %273 = vector.shape_cast %272 : vector<16xf32> to vector<16x1xf32>
    %cst_99 = arith.constant 3.200000e+01 : f32
    %274 = vector.broadcast %cst_99 : f32 to vector<16x1xf32>
    %275 = arith.divf %273, %274 : vector<16x1xf32>
    %276 = vector.broadcast %268 : vector<16x1xf32> to vector<16x32xf32>
    %277 = arith.subf %262, %276 : vector<16x32xf32>
    %cst_100 = arith.constant 9.99999974E-6 : f32
    %278 = vector.broadcast %cst_100 : f32 to vector<16x1xf32>
    %279 = arith.addf %275, %278 : vector<16x1xf32>
    %280 = math.rsqrt %279 : vector<16x1xf32>
    %281 = vector.broadcast %280 : vector<16x1xf32> to vector<16x32xf32>
    %282 = arith.mulf %277, %281 : vector<16x32xf32>
    %283 = vector.broadcast %263 : vector<1x32xf32> to vector<16x32xf32>
    %284 = arith.mulf %282, %283 : vector<16x32xf32>
    %285 = vector.broadcast %264 : vector<1x32xf32> to vector<16x32xf32>
    %286 = arith.addf %284, %285 : vector<16x32xf32>
    %c0_101 = arith.constant 0 : index
    %c0_102 = arith.constant 0 : index
    %287 = vector.load %arg17[%c0_101, %c0_102] : memref<32x16xf32, #tpu.memory_space<vmem>>, vector<32x16xf32>
    %cst_103 = arith.constant dense<0.000000e+00> : vector<16x16xf32>
    %288 = tpu.matmul %286, %287, %cst_103 {dimension_numbers = #tpu.dot_dimension_numbers<[1], [0], [0], [1], [0, 0, 1, 1], [], []>} : vector<16x32xf32>, vector<32x16xf32>, vector<16x16xf32> -> vector<16x16xf32>
    %c0_104 = arith.constant 0 : index
    %c0_105 = arith.constant 0 : index
    %289 = vector.load %arg18[%c0_104, %c0_105] : memref<16x16xf32, #tpu.memory_space<vmem>>, vector<16x16xf32>
    tpu.vector_store %arg18[%c0_104, %c0_105], %288 {strides = array<i32>} : memref<16x16xf32, #tpu.memory_space<vmem>>, vector<16x16xf32>,
    return
  }
  func.func @transform_0(%arg0: i32) -> (i32, i32) {
    %c0_i32 = arith.constant 0 : i32
    %c0_i32_0 = arith.constant 0 : i32
    %c0_i32_1 = arith.constant 0 : i32
    return %c0_i32, %c0_i32_0 : i32, i32
  }
  func.func @transform_1(%arg0: i32) -> (i32, i32) {
    %c0_i32 = arith.constant 0 : i32
    %c0_i32_0 = arith.constant 0 : i32
    %c0_i32_1 = arith.constant 0 : i32
    return %c0_i32, %c0_i32_0 : i32, i32
  }
  func.func @transform_2(%arg0: i32) -> (i32, i32) {
    %c0_i32 = arith.constant 0 : i32
    %c0_i32_0 = arith.constant 0 : i32
    %c0_i32_1 = arith.constant 0 : i32
    return %c0_i32, %c0_i32_0 : i32, i32
  }
  func.func @transform_3(%arg0: i32) -> (i32, i32) {
    %c0_i32 = arith.constant 0 : i32
    %c0_i32_0 = arith.constant 0 : i32
    %c0_i32_1 = arith.constant 0 : i32
    return %c0_i32, %c0_i32_0 : i32, i32
  }
  func.func @transform_4(%arg0: i32) -> (i32, i32) {
    %c0_i32 = arith.constant 0 : i32
    %c0_i32_0 = arith.constant 0 : i32
    %c0_i32_1 = arith.constant 0 : i32
    return %c0_i32, %c0_i32_0 : i32, i32
  }
  func.func @transform_5(%arg0: i32) -> (i32, i32) {
    %c0_i32 = arith.constant 0 : i32
    %c0_i32_0 = arith.constant 0 : i32
    %c0_i32_1 = arith.constant 0 : i32
    return %c0_i32, %c0_i32_0 : i32, i32
  }
  func.func @transform_6(%arg0: i32) -> (i32, i32, i32) {
    %c0_i32 = arith.constant 0 : i32
    %c0_i32_0 = arith.constant 0 : i32
    %c0_i32_1 = arith.constant 0 : i32
    %c0_i32_2 = arith.constant 0 : i32
    return %c0_i32, %c0_i32_0, %c0_i32_1 : i32, i32, i32
  }
  func.func @transform_7(%arg0: i32) -> (i32, i32) {
    %c0_i32 = arith.constant 0 : i32
    %c0_i32_0 = arith.constant 0 : i32
    %c0_i32_1 = arith.constant 0 : i32
    return %c0_i32, %c0_i32_0 : i32, i32
  }
  func.func @transform_8(%arg0: i32) -> (i32, i32) {
    %c0_i32 = arith.constant 0 : i32
    %c0_i32_0 = arith.constant 0 : i32
    %c0_i32_1 = arith.constant 0 : i32
    return %c0_i32, %c0_i32_0 : i32, i32
  }
  func.func @transform_9(%arg0: i32) -> (i32, i32) {
    %c0_i32 = arith.constant 0 : i32
    %c0_i32_0 = arith.constant 0 : i32
    %c0_i32_1 = arith.constant 0 : i32
    return %c0_i32, %c0_i32_0 : i32, i32
  }
  func.func @transform_10(%arg0: i32) -> (i32, i32, i32) {
    %c0_i32 = arith.constant 0 : i32
    %c0_i32_0 = arith.constant 0 : i32
    %c0_i32_1 = arith.constant 0 : i32
    %c0_i32_2 = arith.constant 0 : i32
    return %c0_i32, %c0_i32_0, %c0_i32_1 : i32, i32, i32
  }
  func.func @transform_11(%arg0: i32) -> (i32, i32) {
    %c0_i32 = arith.constant 0 : i32
    %c0_i32_0 = arith.constant 0 : i32
    %c0_i32_1 = arith.constant 0 : i32
    return %c0_i32, %c0_i32_0 : i32, i32
  }
  func.func @transform_12(%arg0: i32) -> (i32, i32, i32) {
    %c0_i32 = arith.constant 0 : i32
    %c0_i32_0 = arith.constant 0 : i32
    %c0_i32_1 = arith.constant 0 : i32
    %c0_i32_2 = arith.constant 0 : i32
    return %c0_i32, %c0_i32_0, %c0_i32_1 : i32, i32, i32
  }
  func.func @transform_13(%arg0: i32) -> (i32, i32) {
    %c0_i32 = arith.constant 0 : i32
    %c0_i32_0 = arith.constant 0 : i32
    %c0_i32_1 = arith.constant 0 : i32
    return %c0_i32, %c0_i32_0 : i32, i32
  }
  func.func @transform_14(%arg0: i32) -> (i32, i32) {
    %c0_i32 = arith.constant 0 : i32
    %c0_i32_0 = arith.constant 0 : i32
    %c0_i32_1 = arith.constant 0 : i32
    return %c0_i32, %c0_i32_0 : i32, i32
  }
  func.func @transform_15(%arg0: i32) -> (i32, i32) {
    %c0_i32 = arith.constant 0 : i32
    %c0_i32_0 = arith.constant 0 : i32
    %c0_i32_1 = arith.constant 0 : i32
    return %c0_i32, %c0_i32_0 : i32, i32
  }
  func.func @transform_16(%arg0: i32) -> (i32, i32) {
    %c0_i32 = arith.constant 0 : i32
    %c0_i32_0 = arith.constant 0 : i32
    %c0_i32_1 = arith.constant 0 : i32
    return %c0_i32, %c0_i32_0 : i32, i32
  }
  func.func @transform_17(%arg0: i32) -> (i32, i32) {
    %c0_i32 = arith.constant 0 : i32
    %c0_i32_0 = arith.constant 0 : i32
    %c0_i32_1 = arith.constant 0 : i32
    return %c0_i32, %c0_i32_0 : i32, i32
  }
}

</mosaic_0001>

<llo_original>
// kernel: gpt_forward.1
$region0: #{gpt_forward.1}
  #allocation0 [shape = 'u32[]', space=smem, size = 0x4, offset = 0x4, fixed_abs, tag = 'smem constant byte address 0x4 - core index']
  #allocation1 [shape = 'u32[144,128]{1,0:T(1,128)}', space=vmem, size = 0x12000, scoped, tag = 'internal scratch']
  %s0 = inlined_call_operand.vmem [shape: s32[16,1], index: 0, kind: input, shape index: {}]
  %s1 = inlined_call_operand.vmem [shape: f32[16,32], index: 1, kind: input, shape index: {}]
  %s2 = inlined_call_operand.vmem [shape: f32[16,32], index: 2, kind: input, shape index: {}]
  %s3 = inlined_call_operand.vmem [shape: f32[16,16], index: 3, kind: input, shape index: {}]
  %s4 = inlined_call_operand.vmem [shape: f32[2,32], index: 4, kind: input, shape index: {}]
  %s5 = inlined_call_operand.vmem [shape: f32[2,32], index: 5, kind: input, shape index: {}]
  %s6 = inlined_call_operand.vmem [shape: f32[2,32,96], index: 6, kind: input, shape index: {}]
  %s7 = inlined_call_operand.vmem [shape: f32[2,96], index: 7, kind: input, shape index: {}]
  %s8 = inlined_call_operand.vmem [shape: f32[2,32], index: 8, kind: input, shape index: {}]
  %s9 = inlined_call_operand.vmem [shape: f32[2,32], index: 9, kind: input, shape index: {}]
  %s10 = inlined_call_operand.vmem [shape: f32[2,32,128], index: 10, kind: input, shape index: {}]
  %s11 = inlined_call_operand.vmem [shape: f32[2,128], index: 11, kind: input, shape index: {}]
  %s12 = inlined_call_operand.vmem [shape: f32[2,128,32], index: 12, kind: input, shape index: {}]
  %s13 = inlined_call_operand.vmem [shape: f32[2,32], index: 13, kind: input, shape index: {}]
  %s14 = inlined_call_operand.vmem [shape: f32[1,32], index: 14, kind: input, shape index: {}]
  %s15 = inlined_call_operand.vmem [shape: f32[1,32], index: 15, kind: input, shape index: {}]
  %s16 = inlined_call_operand.vmem [shape: f32[32,16], index: 16, kind: input, shape index: {}]
  %s17 = inlined_call_operand.hbm [shape: f32[16,16], index: 17, kind: output, shape index: {}]
  %s18 = sld [smem:[#allocation0]]
  $region78: #{gpt_forward.1} parent=0
    _
  %s20 = ssub.s32 1, %s18
  %s21 = scalar_select 0, %s20, %s18
  $region1: #{gpt_forward.1} parent=0
    #allocation2 [shape = 'u8[8192]{0}', space=vmem, size = 0x2000, scoped, tag = 'output window, operand 0, single buffered']
    #allocation3 [shape = 's32[1]{0}', space=sflag, size = 0x4, scoped, tag = 'scoped memory for gpt_forward.1']
    %22 = vsyncpa [#allocation3], 0
    // Predicated region
    $region2: #{gpt_forward.1} parent=1 // pred_check
      _
    $region3: #{gpt_forward.1} parent=1 // pred_check_branch
      %24 = sbr.rel (0) target = $region5
    $region4: #{gpt_forward.1} parent=1 // pred_region
      _
    $region5: #{gpt_forward.1} parent=1 // pred_fallthru
      _
    // Predicated region
    $region6: #{gpt_forward.1} parent=1 // pred_check
      _
    $region7: #{gpt_forward.1} parent=1 // pred_check_branch
      %26 = sbr.rel (0) target = $region9
    $region8: #{gpt_forward.1} parent=1 // pred_region
      _
    $region9: #{gpt_forward.1} parent=1 // pred_fallthru
      _
    // Predicated region
    $region10: #{gpt_forward.1} parent=1 // pred_check
      _
    $region11: #{gpt_forward.1} parent=1 // pred_check_branch
      %28 = sbr.rel (0) target = $region13
    $region12: #{gpt_forward.1} parent=1 // pred_region
      _
    $region13: #{gpt_forward.1} parent=1 // pred_fallthru
      _
    // Predicated region
    $region14: #{gpt_forward.1} parent=1 // pred_check
      _
    $region15: #{gpt_forward.1} parent=1 // pred_check_branch
      %30 = sbr.rel (0) target = $region17
    $region16: #{gpt_forward.1} parent=1 // pred_region
      _
    $region17: #{gpt_forward.1} parent=1 // pred_fallthru
      _
    // Predicated region
    $region18: #{gpt_forward.1} parent=1 // pred_check
      _
    $region19: #{gpt_forward.1} parent=1 // pred_check_branch
      %32 = sbr.rel (0) target = $region21
    $region20: #{gpt_forward.1} parent=1 // pred_region
      _
    $region21: #{gpt_forward.1} parent=1 // pred_fallthru
      _
    // Predicated region
    $region22: #{gpt_forward.1} parent=1 // pred_check
      _
    $region23: #{gpt_forward.1} parent=1 // pred_check_branch
      %34 = sbr.rel (0) target = $region25
    $region24: #{gpt_forward.1} parent=1 // pred_region
      _
    $region25: #{gpt_forward.1} parent=1 // pred_fallthru
      _
    // Predicated region
    $region26: #{gpt_forward.1} parent=1 // pred_check
      _
    $region27: #{gpt_forward.1} parent=1 // pred_check_branch
      %36 = sbr.rel (0) target = $region29
    $region28: #{gpt_forward.1} parent=1 // pred_region
      _
    $region29: #{gpt_forward.1} parent=1 // pred_fallthru
      _
    // Predicated region
    $region30: #{gpt_forward.1} parent=1 // pred_check
      _
    $region31: #{gpt_forward.1} parent=1 // pred_check_branch
      %38 = sbr.rel (0) target = $region33
    $region32: #{gpt_forward.1} parent=1 // pred_region
      _
    $region33: #{gpt_forward.1} parent=1 // pred_fallthru
      _
    // Predicated region
    $region34: #{gpt_forward.1} parent=1 // pred_check
      _
    $region35: #{gpt_forward.1} parent=1 // pred_check_branch
      %40 = sbr.rel (0) target = $region37
    $region36: #{gpt_forward.1} parent=1 // pred_region
      _
    $region37: #{gpt_forward.1} parent=1 // pred_fallthru
      _
    // Predicated region
    $region38: #{gpt_forward.1} parent=1 // pred_check
      _
    $region39: #{gpt_forward.1} parent=1 // pred_check_branch
      %42 = sbr.rel (0) target = $region41
    $region40: #{gpt_forward.1} parent=1 // pred_region
      _
    $region41: #{gpt_forward.1} parent=1 // pred_fallthru
      _
    // Predicated region
    $region42: #{gpt_forward.1} parent=1 // pred_check
      _
    $region43: #{gpt_forward.1} parent=1 // pred_check_branch
      %44 = sbr.rel (0) target = $region45
    $region44: #{gpt_forward.1} parent=1 // pred_region
      _
    $region45: #{gpt_forward.1} parent=1 // pred_fallthru
      _
    // Predicated region
    $region46: #{gpt_forward.1} parent=1 // pred_check
      _
    $region47: #{gpt_forward.1} parent=1 // pred_check_branch
      %46 = sbr.rel (0) target = $region49
    $region48: #{gpt_forward.1} parent=1 // pred_region
      _
    $region49: #{gpt_forward.1} parent=1 // pred_fallthru
      _
    // Predicated region
    $region50: #{gpt_forward.1} parent=1 // pred_check
      _
    $region51: #{gpt_forward.1} parent=1 // pred_check_branch
      %48 = sbr.rel (0) target = $region53
    $region52: #{gpt_forward.1} parent=1 // pred_region
      _
    $region53: #{gpt_forward.1} parent=1 // pred_fallthru
      _
    // Predicated region
    $region54: #{gpt_forward.1} parent=1 // pred_check
      _
    $region55: #{gpt_forward.1} parent=1 // pred_check_branch
      %50 = sbr.rel (0) target = $region57
    $region56: #{gpt_forward.1} parent=1 // pred_region
      _
    $region57: #{gpt_forward.1} parent=1 // pred_fallthru
      _
    // Predicated region
    $region58: #{gpt_forward.1} parent=1 // pred_check
      _
    $region59: #{gpt_forward.1} parent=1 // pred_check_branch
      %52 = sbr.rel (0) target = $region61
    $region60: #{gpt_forward.1} parent=1 // pred_region
      _
    $region61: #{gpt_forward.1} parent=1 // pred_fallthru
      _
    // Predicated region
    $region62: #{gpt_forward.1} parent=1 // pred_check
      _
    $region63: #{gpt_forward.1} parent=1 // pred_check_branch
      %54 = sbr.rel (0) target = $region65
    $region64: #{gpt_forward.1} parent=1 // pred_region
      _
    $region65: #{gpt_forward.1} parent=1 // pred_fallthru
      _
    // Predicated region
    $region66: #{gpt_forward.1} parent=1 // pred_check
      _
    $region67: #{gpt_forward.1} parent=1 // pred_check_branch
      %56 = sbr.rel (0) target = $region69
    $region68: #{gpt_forward.1} parent=1 // pred_region
      _
    $region69: #{gpt_forward.1} parent=1 // pred_fallthru
      _
    %v57 = vld [vmem:[%s0] sm:$0xff]
    %v58 = vld [vmem:[%s0 + $0x8] sm:$0xff]
    %v59 = vlaneseq
    %v60 = vand.u32 %v59, 127
    %61 = vset.pattern.permute.xlu0 0
    %62 = vperm.xlu0 %61, %v57
    %v63 = vpop.permute.xlu0 %62
    %64 = vset.pattern.permute.xlu0 0
    %65 = vperm.xlu0 %64, %v58
    %v66 = vpop.permute.xlu0 %65
    %vm67 = vcmp.eq.s32.totalorder %v63, %v60
    %vm68 = vcmp.eq.s32.totalorder %v66, %v60
    %v69 = vsel %vm67, 1, 0
    %v70 = vsel %vm68, 1, 0
    %v71 = vcvt.s32.f32 %v69
    %v72 = vcvt.s32.f32 %v70
    %v73 = vld [vmem:[%s1] sm:$0xff]
    %v74 = vld [vmem:[%s1 + $0x8] sm:$0xff]
    %v75 = vld [vmem:[%s2] sm:$0xff]
    %v76 = vld [vmem:[%s2 + $0x8] sm:$0xff]
    %vm77 = vcmask 130048
    %v79 = vsel %vm77, %v71, 0
    %v82 = vsel %vm77, %v72, 0
    %84 = vmatprep.subr.mxu0 0.0
    %85 = vmatpush1.msra.mxu0 %v73
    %86 = vmatprep.subr.mxu0 0.0
    %87 = vmatpush1.msra.mxu0 %v74
    %88 = vmatprep.subr.mxu0 0.0
    %89 = vmatpush1.msra.mxu0 0.0
    %90 = vmatprep.subr.mxu0 0.0
    %91 = vmatpush1.msra.mxu0 0.0
    %92 = vmatprep.subr.mxu0 0.0
    %93 = vmatpush1.msra.mxu0 0.0
    %94 = vmatprep.subr.mxu0 0.0
    %95 = vmatpush1.msra.mxu0 0.0
    %96 = vmatprep.subr.mxu0 0.0
    %97 = vmatpush1.msra.mxu0 0.0
    %98 = vmatprep.subr.mxu0 0.0
    %99 = vmatpush1.msra.mxu0 0.0
    %100 = vmatprep.subr.mxu0 0.0
    %101 = vmatpush1.msra.mxu0 0.0
    %102 = vmatprep.subr.mxu0 0.0
    %103 = vmatpush1.msra.mxu0 0.0
    %104 = vmatprep.subr.mxu0 0.0
    %105 = vmatpush1.msra.mxu0 0.0
    %106 = vmatprep.subr.mxu0 0.0
    %107 = vmatpush1.msra.mxu0 0.0
    %108 = vmatprep.subr.mxu0 0.0
    %109 = vmatpush1.msra.mxu0 0.0
    %110 = vmatprep.subr.mxu0 0.0
    %111 = vmatpush1.msra.mxu0 0.0
    %112 = vmatprep.subr.mxu0 0.0
    %113 = vmatpush1.msra.mxu0 0.0
    %114 = vmatprep.subr.mxu0 0.0
    %115 = vmatpush1.msra.mxu0 0.0
    %116 = vmatprep.subr.mxu0 0.0
    %117 = vmatpush1.msra.mxu0 0.0
    %118 = vmatprep.subr.mxu0 0.0
    %119 = vmatpush1.msra.mxu0 0.0
    %120 = vmatprep.subr.mxu0 0.0
    %121 = vmatpush1.msra.mxu0 0.0
    %122 = vmatprep.subr.mxu0 0.0
    %123 = vmatpush1.msra.mxu0 0.0
    %124 = vmatprep.subr.mxu0 0.0
    %125 = vmatpush1.msra.mxu0 0.0
    %126 = vmatprep.subr.mxu0 0.0
    %127 = vmatpush1.msra.mxu0 0.0
    %128 = vmatprep.subr.mxu0 0.0
    %129 = vmatpush1.msra.mxu0 0.0
    %130 = vmatprep.subr.mxu0 0.0
    %131 = vmatpush1.msra.mxu0 0.0
    %132 = vmatprep.subr.mxu0 0.0
    %133 = vmatpush1.msra.mxu0 0.0
    %134 = vmatprep.subr.mxu0 0.0
    %135 = vmatpush1.msra.mxu0 0.0
    %136 = vmatprep.subr.mxu0 0.0
    %137 = vmatpush1.msra.mxu0 0.0
    %138 = vmatprep.subr.mxu0 0.0
    %139 = vmatpush1.msra.mxu0 0.0
    %140 = vmatprep.subr.mxu0 0.0
    %141 = vmatpush1.msra.mxu0 0.0
    %142 = vmatprep.subr.mxu0 0.0
    %143 = vmatpush1.msra.mxu0 0.0
    %144 = vmatprep.subr.mxu0 0.0
    %145 = vmatpush1.msra.mxu0 0.0
    %146 = vmatprep.subr.mxu0 0.0
    %147 = vmatpush1.msra.mxu0 0.0
    %148 = vmatprep.mubr.f32.mxu0 0.0
    %149 = vmatmul.mubr.f32.gmra.mrb[0].mxu0 %v79
    %v150 = vpop.f32.mrb[0].mxu0
    %v151 = vadd.f32 %v75, %v150
    %v152 = vpop.f32.mrb[0].mxu0
    %153 = vmatprep.mubr.f32.mxu0 0.0
    %154 = vmatmul.mubr.f32.gmra.mrb[0].mxu0 %v82
    %v155 = vpop.f32.mrb[0].mxu0
    %v156 = vadd.f32 %v76, %v155
    %v157 = vpop.f32.mrb[0].mxu0
    %158 = vdwg.mxu0
    %v159 = vld [vmem:[%s3] sm:$0xff]
    %v160 = vld [vmem:[%s3 + $0x8] sm:$0xff]
    %v161 = vld [vmem:[%s4] sm:$0x1]
    %v162 = vld [vmem:[%s5] sm:$0x1]
    %vm163 = vcmask 261120
    %v164 = vsel %vm163, %v151, 0.0
    %165 = vadd.xlane.f32.xlu0 %v164
    %v166 = vpop.xlane.xlu0 %165
    %v167 = vsel %vm163, %v156, 0.0
    %168 = vadd.xlane.f32.xlu0 %v167
    %v169 = vpop.xlane.xlu0 %168
    %v170 = vrcp.pop 32.0
    %v171 = vmul.f32 %v166, %v170
    %v172 = vmul.f32 %v169, %v170
    %v173 = vsub.f32 %v151, %v171
    %v174 = vsub.f32 %v156, %v172
    %v175 = vmul.f32 %v173, %v173
    %v176 = vmul.f32 %v174, %v174
    %v177 = vsel %vm163, %v175, 0.0
    %178 = vadd.xlane.f32.xlu0 %v177
    %v179 = vpop.xlane.xlu0 %178
    %v180 = vsel %vm163, %v176, 0.0
    %181 = vadd.xlane.f32.xlu0 %v180
    %v182 = vpop.xlane.xlu0 %181
    %v183 = vmul.f32 %v179, %v170
    %v184 = vmul.f32 %v182, %v170
    %v185 = vadd.f32 %v183, 1e-05
    %v186 = vadd.f32 %v184, 1e-05
    %v187 = vrsqrt.pop %v185
    %v188 = vrsqrt.pop %v186
    %v189 = vmul.f32 %v173, %v187
    %v190 = vmul.f32 %v174, %v188
    %v191 = vlaneseq
    %v192 = vshrl.u32 %v191, 7
    %v193 = vsub.s32 0, %v192
    %v194 = vrot.slane %v161, %v193
    %v195 = vmul.f32 %v189, %v194
    %v196 = vmul.f32 %v190, %v194
    %v197 = vlaneseq
    %v198 = vshrl.u32 %v197, 7
    %v199 = vsub.s32 0, %v198
    %v200 = vrot.slane %v162, %v199
    %v201 = vadd.f32 %v195, %v200
    %v202 = vadd.f32 %v196, %v200
    %v203 = vld [vmem:[%s6] sm:$0xff]
    %v204 = vld [vmem:[%s6 + $0x8] sm:$0xff]
    %v205 = vld [vmem:[%s6 + $0x10] sm:$0xff]
    %v206 = vld [vmem:[%s6 + $0x18] sm:$0xff]
    %v207 = vld [vmem:[%s7] sm:$0x1]
    %v208 = vlaneseq
    %v209 = vshrl.u32 %v208, 7
    %v210 = vsub.s32 0, %v209
    %v211 = vrot.slane %v207, %v210
    %v213 = vsel %vm163, %v201, 0
    %v216 = vsel %vm163, %v202, 0
    %218 = vmatprep.subr.mxu0 0.0
    %219 = vmatpush1.msra.mxu0 %v203
    %220 = vmatprep.subr.mxu0 0.0
    %221 = vmatpush1.msra.mxu0 %v204
    %222 = vmatprep.subr.mxu0 0.0
    %223 = vmatpush1.msra.mxu0 %v205
    %224 = vmatprep.subr.mxu0 0.0
    %225 = vmatpush1.msra.mxu0 %v206
    %226 = vmatprep.subr.mxu0 0.0
    %227 = vmatpush1.msra.mxu0 0.0
    %228 = vmatprep.subr.mxu0 0.0
    %229 = vmatpush1.msra.mxu0 0.0
    %230 = vmatprep.subr.mxu0 0.0
    %231 = vmatpush1.msra.mxu0 0.0
    %232 = vmatprep.subr.mxu0 0.0
    %233 = vmatpush1.msra.mxu0 0.0
    %234 = vmatprep.subr.mxu0 0.0
    %235 = vmatpush1.msra.mxu0 0.0
    %236 = vmatprep.subr.mxu0 0.0
    %237 = vmatpush1.msra.mxu0 0.0
    %238 = vmatprep.subr.mxu0 0.0
    %239 = vmatpush1.msra.mxu0 0.0
    %240 = vmatprep.subr.mxu0 0.0
    %241 = vmatpush1.msra.mxu0 0.0
    %242 = vmatprep.subr.mxu0 0.0
    %243 = vmatpush1.msra.mxu0 0.0
    %244 = vmatprep.subr.mxu0 0.0
    %245 = vmatpush1.msra.mxu0 0.0
    %246 = vmatprep.subr.mxu0 0.0
    %247 = vmatpush1.msra.mxu0 0.0
    %248 = vmatprep.subr.mxu0 0.0
    %249 = vmatpush1.msra.mxu0 0.0
    %250 = vmatprep.subr.mxu0 0.0
    %251 = vmatpush1.msra.mxu0 0.0
    %252 = vmatprep.subr.mxu0 0.0
    %253 = vmatpush1.msra.mxu0 0.0
    %254 = vmatprep.subr.mxu0 0.0
    %255 = vmatpush1.msra.mxu0 0.0
    %256 = vmatprep.subr.mxu0 0.0
    %257 = vmatpush1.msra.mxu0 0.0
    %258 = vmatprep.subr.mxu0 0.0
    %259 = vmatpush1.msra.mxu0 0.0
    %260 = vmatprep.subr.mxu0 0.0
    %261 = vmatpush1.msra.mxu0 0.0
    %262 = vmatprep.subr.mxu0 0.0
    %263 = vmatpush1.msra.mxu0 0.0
    %264 = vmatprep.subr.mxu0 0.0
    %265 = vmatpush1.msra.mxu0 0.0
    %266 = vmatprep.subr.mxu0 0.0
    %267 = vmatpush1.msra.mxu0 0.0
    %268 = vmatprep.subr.mxu0 0.0
    %269 = vmatpush1.msra.mxu0 0.0
    %270 = vmatprep.subr.mxu0 0.0
    %271 = vmatpush1.msra.mxu0 0.0
    %272 = vmatprep.subr.mxu0 0.0
    %273 = vmatpush1.msra.mxu0 0.0
    %274 = vmatprep.subr.mxu0 0.0
    %275 = vmatpush1.msra.mxu0 0.0
    %276 = vmatprep.subr.mxu0 0.0
    %277 = vmatpush1.msra.mxu0 0.0
    %278 = vmatprep.subr.mxu0 0.0
    %279 = vmatpush1.msra.mxu0 0.0
    %280 = vmatprep.subr.mxu0 0.0
    %281 = vmatpush1.msra.mxu0 0.0
    %282 = vmatprep.mubr.f32.mxu0 0.0
    %283 = vmatmul.mubr.f32.gmra.mrb[0].mxu0 %v213
    %v284 = vpop.f32.mrb[0].mxu0
    %v285 = vadd.f32 %v211, %v284
    %v286 = vpop.f32.mrb[0].mxu0
    %287 = vmatprep.mubr.f32.mxu0 0.0
    %288 = vmatmul.mubr.f32.gmra.mrb[0].mxu0 %v216
    %v289 = vpop.f32.mrb[0].mxu0
    %v290 = vadd.f32 %v211, %v289
    %v291 = vpop.f32.mrb[0].mxu0
    %292 = vdwg.mxu0
    %295 = vrot.lane.b32.xlu0 %v285, 120
    %v296 = vpop.permute.xlu0 %295
    %297 = vrot.lane.b32.xlu0 %v290, 120
    %v298 = vpop.permute.xlu0 %297
    %299 = vrot.lane.b32.xlu0 %v285, 112
    %v300 = vpop.permute.xlu0 %299
    %301 = vrot.lane.b32.xlu0 %v290, 112
    %v302 = vpop.permute.xlu0 %301
    %303 = vrot.lane.b32.xlu0 %v285, 104
    %v304 = vpop.permute.xlu0 %303
    %305 = vrot.lane.b32.xlu0 %v290, 104
    %v306 = vpop.permute.xlu0 %305
    %307 = vrot.lane.b32.xlu0 %v285, 96
    %v308 = vpop.permute.xlu0 %307
    %309 = vrot.lane.b32.xlu0 %v290, 96
    %v310 = vpop.permute.xlu0 %309
    %vm311 = vcmask 64512
    %v312 = vsel %vm311, %v285, 0
    %v314 = vsel %vm311, %v290, 0
    %v316 = vsel %vm311, %v308, 0
    %v318 = vsel %vm311, %v310, 0
    %320 = vmatprep.subr.mxu0 0.0
    %321 = vmatpush1.xpose.msra.mxu0 %v316
    %322 = vmatprep.subr.mxu0 0.0
    %323 = vmatpush1.xpose.msra.mxu0 %v318
    %324 = vmatprep.subr.mxu0 0.0
    %325 = vmatpush1.xpose.msra.mxu0 0.0
    %326 = vmatprep.subr.mxu0 0.0
    %327 = vmatpush1.xpose.msra.mxu0 0.0
    %328 = vmatprep.subr.mxu0 0.0
    %329 = vmatpush1.xpose.msra.mxu0 0.0
    %330 = vmatprep.subr.mxu0 0.0
    %331 = vmatpush1.xpose.msra.mxu0 0.0
    %332 = vmatprep.subr.mxu0 0.0
    %333 = vmatpush1.xpose.msra.mxu0 0.0
    %334 = vmatprep.subr.mxu0 0.0
    %335 = vmatpush1.xpose.msra.mxu0 0.0
    %336 = vmatprep.subr.mxu0 0.0
    %337 = vmatpush1.xpose.msra.mxu0 0.0
    %338 = vmatprep.subr.mxu0 0.0
    %339 = vmatpush1.xpose.msra.mxu0 0.0
    %340 = vmatprep.subr.mxu0 0.0
    %341 = vmatpush1.xpose.msra.mxu0 0.0
    %342 = vmatprep.subr.mxu0 0.0
    %343 = vmatpush1.xpose.msra.mxu0 0.0
    %344 = vmatprep.subr.mxu0 0.0
    %345 = vmatpush1.xpose.msra.mxu0 0.0
    %346 = vmatprep.subr.mxu0 0.0
    %347 = vmatpush1.xpose.msra.mxu0 0.0
    %348 = vmatprep.subr.mxu0 0.0
    %349 = vmatpush1.xpose.msra.mxu0 0.0
    %350 = vmatprep.subr.mxu0 0.0
    %351 = vmatpush1.xpose.msra.mxu0 0.0
    %352 = vmatprep.subr.mxu0 0.0
    %353 = vmatpush1.xpose.msra.mxu0 0.0
    %354 = vmatprep.subr.mxu0 0.0
    %355 = vmatpush1.xpose.msra.mxu0 0.0
    %356 = vmatprep.subr.mxu0 0.0
    %357 = vmatpush1.xpose.msra.mxu0 0.0
    %358 = vmatprep.subr.mxu0 0.0
    %359 = vmatpush1.xpose.msra.mxu0 0.0
    %360 = vmatprep.subr.mxu0 0.0
    %361 = vmatpush1.xpose.msra.mxu0 0.0
    %362 = vmatprep.subr.mxu0 0.0
    %363 = vmatpush1.xpose.msra.mxu0 0.0
    %364 = vmatprep.subr.mxu0 0.0
    %365 = vmatpush1.xpose.msra.mxu0 0.0
    %366 = vmatprep.subr.mxu0 0.0
    %367 = vmatpush1.xpose.msra.mxu0 0.0
    %368 = vmatprep.subr.mxu0 0.0
    %369 = vmatpush1.xpose.msra.mxu0 0.0
    %370 = vmatprep.subr.mxu0 0.0
    %371 = vmatpush1.xpose.msra.mxu0 0.0
    %372 = vmatprep.subr.mxu0 0.0
    %373 = vmatpush1.xpose.msra.mxu0 0.0
    %374 = vmatprep.subr.mxu0 0.0
    %375 = vmatpush1.xpose.msra.mxu0 0.0
    %376 = vmatprep.subr.mxu0 0.0
    %377 = vmatpush1.xpose.msra.mxu0 0.0
    %378 = vmatprep.subr.mxu0 0.0
    %379 = vmatpush1.xpose.msra.mxu0 0.0
    %380 = vmatprep.subr.mxu0 0.0
    %381 = vmatpush1.xpose.msra.mxu0 0.0
    %382 = vmatprep.subr.mxu0 0.0
    %383 = vmatpush1.xpose.msra.mxu0 0.0
    %384 = vmatprep.mubr.f32.mxu0 0.0
    %385 = vmatmul.mubr.f32.gmra.mrb[0].mxu0 %v312
    %v386 = vpop.f32.mrb[0].mxu0
    %v387 = vadd.f32 %v159, %v386
    %v388 = vpop.f32.mrb[0].mxu0
    %389 = vmatprep.mubr.f32.mxu0 0.0
    %390 = vmatmul.mubr.f32.gmra.mrb[0].mxu0 %v314
    %v391 = vpop.f32.mrb[0].mxu0
    %v392 = vadd.f32 %v160, %v391
    %v393 = vpop.f32.mrb[0].mxu0
    %394 = vdwg.mxu0
    %395 = vrot.lane.b32.xlu0 %v296, 96
    %v396 = vpop.permute.xlu0 %395
    %397 = vrot.lane.b32.xlu0 %v298, 96
    %v398 = vpop.permute.xlu0 %397
    %v399 = vsel %vm311, %v296, 0
    %v401 = vsel %vm311, %v298, 0
    %v403 = vsel %vm311, %v396, 0
    %v405 = vsel %vm311, %v398, 0
    %407 = vmatprep.subr.mxu0 0.0
    %408 = vmatpush1.xpose.msra.mxu0 %v403
    %409 = vmatprep.subr.mxu0 0.0
    %410 = vmatpush1.xpose.msra.mxu0 %v405
    %411 = vmatprep.subr.mxu0 0.0
    %412 = vmatpush1.xpose.msra.mxu0 0.0
    %413 = vmatprep.subr.mxu0 0.0
    %414 = vmatpush1.xpose.msra.mxu0 0.0
    %415 = vmatprep.subr.mxu0 0.0
    %416 = vmatpush1.xpose.msra.mxu0 0.0
    %417 = vmatprep.subr.mxu0 0.0
    %418 = vmatpush1.xpose.msra.mxu0 0.0
    %419 = vmatprep.subr.mxu0 0.0
    %420 = vmatpush1.xpose.msra.mxu0 0.0
    %421 = vmatprep.subr.mxu0 0.0
    %422 = vmatpush1.xpose.msra.mxu0 0.0
    %423 = vmatprep.subr.mxu0 0.0
    %424 = vmatpush1.xpose.msra.mxu0 0.0
    %425 = vmatprep.subr.mxu0 0.0
    %426 = vmatpush1.xpose.msra.mxu0 0.0
    %427 = vmatprep.subr.mxu0 0.0
    %428 = vmatpush1.xpose.msra.mxu0 0.0
    %429 = vmatprep.subr.mxu0 0.0
    %430 = vmatpush1.xpose.msra.mxu0 0.0
    %431 = vmatprep.subr.mxu0 0.0
    %432 = vmatpush1.xpose.msra.mxu0 0.0
    %433 = vmatprep.subr.mxu0 0.0
    %434 = vmatpush1.xpose.msra.mxu0 0.0
    %435 = vmatprep.subr.mxu0 0.0
    %436 = vmatpush1.xpose.msra.mxu0 0.0
    %437 = vmatprep.subr.mxu0 0.0
    %438 = vmatpush1.xpose.msra.mxu0 0.0
    %439 = vmatprep.subr.mxu0 0.0
    %440 = vmatpush1.xpose.msra.mxu0 0.0
    %441 = vmatprep.subr.mxu0 0.0
    %442 = vmatpush1.xpose.msra.mxu0 0.0
    %443 = vmatprep.subr.mxu0 0.0
    %444 = vmatpush1.xpose.msra.mxu0 0.0
    %445 = vmatprep.subr.mxu0 0.0
    %446 = vmatpush1.xpose.msra.mxu0 0.0
    %447 = vmatprep.subr.mxu0 0.0
    %448 = vmatpush1.xpose.msra.mxu0 0.0
    %449 = vmatprep.subr.mxu0 0.0
    %450 = vmatpush1.xpose.msra.mxu0 0.0
    %451 = vmatprep.subr.mxu0 0.0
    %452 = vmatpush1.xpose.msra.mxu0 0.0
    %453 = vmatprep.subr.mxu0 0.0
    %454 = vmatpush1.xpose.msra.mxu0 0.0
    %455 = vmatprep.subr.mxu0 0.0
    %456 = vmatpush1.xpose.msra.mxu0 0.0
    %457 = vmatprep.subr.mxu0 0.0
    %458 = vmatpush1.xpose.msra.mxu0 0.0
    %459 = vmatprep.subr.mxu0 0.0
    %460 = vmatpush1.xpose.msra.mxu0 0.0
    %461 = vmatprep.subr.mxu0 0.0
    %462 = vmatpush1.xpose.msra.mxu0 0.0
    %463 = vmatprep.subr.mxu0 0.0
    %464 = vmatpush1.xpose.msra.mxu0 0.0
    %465 = vmatprep.subr.mxu0 0.0
    %466 = vmatpush1.xpose.msra.mxu0 0.0
    %467 = vmatprep.subr.mxu0 0.0
    %468 = vmatpush1.xpose.msra.mxu0 0.0
    %469 = vmatprep.subr.mxu0 0.0
    %470 = vmatpush1.xpose.msra.mxu0 0.0
    %471 = vmatprep.mubr.f32.mxu0 0.0
    %472 = vmatmul.mubr.f32.gmra.mrb[0].mxu0 %v399
    %v473 = vpop.f32.mrb[0].mxu0
    %v474 = vadd.f32 %v159, %v473
    %v475 = vpop.f32.mrb[0].mxu0
    %476 = vmatprep.mubr.f32.mxu0 0.0
    %477 = vmatmul.mubr.f32.gmra.mrb[0].mxu0 %v401
    %v478 = vpop.f32.mrb[0].mxu0
    %v479 = vadd.f32 %v160, %v478
    %v480 = vpop.f32.mrb[0].mxu0
    %481 = vdwg.mxu0
    %482 = vrot.lane.b32.xlu0 %v300, 96
    %v483 = vpop.permute.xlu0 %482
    %484 = vrot.lane.b32.xlu0 %v302, 96
    %v485 = vpop.permute.xlu0 %484
    %v486 = vsel %vm311, %v300, 0
    %v488 = vsel %vm311, %v302, 0
    %v490 = vsel %vm311, %v483, 0
    %v492 = vsel %vm311, %v485, 0
    %494 = vmatprep.subr.mxu0 0.0
    %495 = vmatpush1.xpose.msra.mxu0 %v490
    %496 = vmatprep.subr.mxu0 0.0
    %497 = vmatpush1.xpose.msra.mxu0 %v492
    %498 = vmatprep.subr.mxu0 0.0
    %499 = vmatpush1.xpose.msra.mxu0 0.0
    %500 = vmatprep.subr.mxu0 0.0
    %501 = vmatpush1.xpose.msra.mxu0 0.0
    %502 = vmatprep.subr.mxu0 0.0
    %503 = vmatpush1.xpose.msra.mxu0 0.0
    %504 = vmatprep.subr.mxu0 0.0
    %505 = vmatpush1.xpose.msra.mxu0 0.0
    %506 = vmatprep.subr.mxu0 0.0
    %507 = vmatpush1.xpose.msra.mxu0 0.0
    %508 = vmatprep.subr.mxu0 0.0
    %509 = vmatpush1.xpose.msra.mxu0 0.0
    %510 = vmatprep.subr.mxu0 0.0
    %511 = vmatpush1.xpose.msra.mxu0 0.0
    %512 = vmatprep.subr.mxu0 0.0
    %513 = vmatpush1.xpose.msra.mxu0 0.0
    %514 = vmatprep.subr.mxu0 0.0
    %515 = vmatpush1.xpose.msra.mxu0 0.0
    %516 = vmatprep.subr.mxu0 0.0
    %517 = vmatpush1.xpose.msra.mxu0 0.0
    %518 = vmatprep.subr.mxu0 0.0
    %519 = vmatpush1.xpose.msra.mxu0 0.0
    %520 = vmatprep.subr.mxu0 0.0
    %521 = vmatpush1.xpose.msra.mxu0 0.0
    %522 = vmatprep.subr.mxu0 0.0
    %523 = vmatpush1.xpose.msra.mxu0 0.0
    %524 = vmatprep.subr.mxu0 0.0
    %525 = vmatpush1.xpose.msra.mxu0 0.0
    %526 = vmatprep.subr.mxu0 0.0
    %527 = vmatpush1.xpose.msra.mxu0 0.0
    %528 = vmatprep.subr.mxu0 0.0
    %529 = vmatpush1.xpose.msra.mxu0 0.0
    %530 = vmatprep.subr.mxu0 0.0
    %531 = vmatpush1.xpose.msra.mxu0 0.0
    %532 = vmatprep.subr.mxu0 0.0
    %533 = vmatpush1.xpose.msra.mxu0 0.0
    %534 = vmatprep.subr.mxu0 0.0
    %535 = vmatpush1.xpose.msra.mxu0 0.0
    %536 = vmatprep.subr.mxu0 0.0
    %537 = vmatpush1.xpose.msra.mxu0 0.0
    %538 = vmatprep.subr.mxu0 0.0
    %539 = vmatpush1.xpose.msra.mxu0 0.0
    %540 = vmatprep.subr.mxu0 0.0
    %541 = vmatpush1.xpose.msra.mxu0 0.0
    %542 = vmatprep.subr.mxu0 0.0
    %543 = vmatpush1.xpose.msra.mxu0 0.0
    %544 = vmatprep.subr.mxu0 0.0
    %545 = vmatpush1.xpose.msra.mxu0 0.0
    %546 = vmatprep.subr.mxu0 0.0
    %547 = vmatpush1.xpose.msra.mxu0 0.0
    %548 = vmatprep.subr.mxu0 0.0
    %549 = vmatpush1.xpose.msra.mxu0 0.0
    %550 = vmatprep.subr.mxu0 0.0
    %551 = vmatpush1.xpose.msra.mxu0 0.0
    %552 = vmatprep.subr.mxu0 0.0
    %553 = vmatpush1.xpose.msra.mxu0 0.0
    %554 = vmatprep.subr.mxu0 0.0
    %555 = vmatpush1.xpose.msra.mxu0 0.0
    %556 = vmatprep.subr.mxu0 0.0
    %557 = vmatpush1.xpose.msra.mxu0 0.0
    %558 = vmatprep.mubr.f32.mxu0 0.0
    %559 = vmatmul.mubr.f32.gmra.mrb[0].mxu0 %v486
    %v560 = vpop.f32.mrb[0].mxu0
    %v561 = vadd.f32 %v159, %v560
    %v562 = vpop.f32.mrb[0].mxu0
    %563 = vmatprep.mubr.f32.mxu0 0.0
    %564 = vmatmul.mubr.f32.gmra.mrb[0].mxu0 %v488
    %v565 = vpop.f32.mrb[0].mxu0
    %v566 = vadd.f32 %v160, %v565
    %v567 = vpop.f32.mrb[0].mxu0
    %568 = vdwg.mxu0
    %569 = vrot.lane.b32.xlu0 %v304, 96
    %v570 = vpop.permute.xlu0 %569
    %571 = vrot.lane.b32.xlu0 %v306, 96
    %v572 = vpop.permute.xlu0 %571
    %v573 = vsel %vm311, %v304, 0
    %v575 = vsel %vm311, %v306, 0
    %v577 = vsel %vm311, %v570, 0
    %v579 = vsel %vm311, %v572, 0
    %581 = vmatprep.subr.mxu0 0.0
    %582 = vmatpush1.xpose.msra.mxu0 %v577
    %583 = vmatprep.subr.mxu0 0.0
    %584 = vmatpush1.xpose.msra.mxu0 %v579
    %585 = vmatprep.subr.mxu0 0.0
    %586 = vmatpush1.xpose.msra.mxu0 0.0
    %587 = vmatprep.subr.mxu0 0.0
    %588 = vmatpush1.xpose.msra.mxu0 0.0
    %589 = vmatprep.subr.mxu0 0.0
    %590 = vmatpush1.xpose.msra.mxu0 0.0
    %591 = vmatprep.subr.mxu0 0.0
    %592 = vmatpush1.xpose.msra.mxu0 0.0
    %593 = vmatprep.subr.mxu0 0.0
    %594 = vmatpush1.xpose.msra.mxu0 0.0
    %595 = vmatprep.subr.mxu0 0.0
    %596 = vmatpush1.xpose.msra.mxu0 0.0
    %597 = vmatprep.subr.mxu0 0.0
    %598 = vmatpush1.xpose.msra.mxu0 0.0
    %599 = vmatprep.subr.mxu0 0.0
    %600 = vmatpush1.xpose.msra.mxu0 0.0
    %601 = vmatprep.subr.mxu0 0.0
    %602 = vmatpush1.xpose.msra.mxu0 0.0
    %603 = vmatprep.subr.mxu0 0.0
    %604 = vmatpush1.xpose.msra.mxu0 0.0
    %605 = vmatprep.subr.mxu0 0.0
    %606 = vmatpush1.xpose.msra.mxu0 0.0
    %607 = vmatprep.subr.mxu0 0.0
    %608 = vmatpush1.xpose.msra.mxu0 0.0
    %609 = vmatprep.subr.mxu0 0.0
    %610 = vmatpush1.xpose.msra.mxu0 0.0
    %611 = vmatprep.subr.mxu0 0.0
    %612 = vmatpush1.xpose.msra.mxu0 0.0
    %613 = vmatprep.subr.mxu0 0.0
    %614 = vmatpush1.xpose.msra.mxu0 0.0
    %615 = vmatprep.subr.mxu0 0.0
    %616 = vmatpush1.xpose.msra.mxu0 0.0
    %617 = vmatprep.subr.mxu0 0.0
    %618 = vmatpush1.xpose.msra.mxu0 0.0
    %619 = vmatprep.subr.mxu0 0.0
    %620 = vmatpush1.xpose.msra.mxu0 0.0
    %621 = vmatprep.subr.mxu0 0.0
    %622 = vmatpush1.xpose.msra.mxu0 0.0
    %623 = vmatprep.subr.mxu0 0.0
    %624 = vmatpush1.xpose.msra.mxu0 0.0
    %625 = vmatprep.subr.mxu0 0.0
    %626 = vmatpush1.xpose.msra.mxu0 0.0
    %627 = vmatprep.subr.mxu0 0.0
    %628 = vmatpush1.xpose.msra.mxu0 0.0
    %629 = vmatprep.subr.mxu0 0.0
    %630 = vmatpush1.xpose.msra.mxu0 0.0
    %631 = vmatprep.subr.mxu0 0.0
    %632 = vmatpush1.xpose.msra.mxu0 0.0
    %633 = vmatprep.subr.mxu0 0.0
    %634 = vmatpush1.xpose.msra.mxu0 0.0
    %635 = vmatprep.subr.mxu0 0.0
    %636 = vmatpush1.xpose.msra.mxu0 0.0
    %637 = vmatprep.subr.mxu0 0.0
    %638 = vmatpush1.xpose.msra.mxu0 0.0
    %639 = vmatprep.subr.mxu0 0.0
    %640 = vmatpush1.xpose.msra.mxu0 0.0
    %641 = vmatprep.subr.mxu0 0.0
    %642 = vmatpush1.xpose.msra.mxu0 0.0
    %643 = vmatprep.subr.mxu0 0.0
    %644 = vmatpush1.xpose.msra.mxu0 0.0
    %645 = vmatprep.mubr.f32.mxu0 0.0
    %646 = vmatmul.mubr.f32.gmra.mrb[0].mxu0 %v573
    %v647 = vpop.f32.mrb[0].mxu0
    %v648 = vadd.f32 %v159, %v647
    %v649 = vpop.f32.mrb[0].mxu0
    %650 = vmatprep.mubr.f32.mxu0 0.0
    %651 = vmatmul.mubr.f32.gmra.mrb[0].mxu0 %v575
    %v652 = vpop.f32.mrb[0].mxu0
    %v653 = vadd.f32 %v160, %v652
    %v654 = vpop.f32.mrb[0].mxu0
    %655 = vdwg.mxu0
    %v656 = vsel %vm77, %v387, -inf
    %657 = vmax.xlane.f32.xlu0 %v656
    %v658 = vpop.xlane.xlu0 %657
    %v659 = vsel %vm77, %v392, -inf
    %660 = vmax.xlane.f32.xlu0 %v659
    %v661 = vpop.xlane.xlu0 %660
    %v662 = vsel %vm77, %v474, -inf
    %663 = vmax.xlane.f32.xlu0 %v662
    %v664 = vpop.xlane.xlu0 %663
    %v665 = vsel %vm77, %v479, -inf
    %666 = vmax.xlane.f32.xlu0 %v665
    %v667 = vpop.xlane.xlu0 %666
    %v668 = vsel %vm77, %v561, -inf
    %669 = vmax.xlane.f32.xlu0 %v668
    %v670 = vpop.xlane.xlu0 %669
    %v671 = vsel %vm77, %v566, -inf
    %672 = vmax.xlane.f32.xlu0 %v671
    %v673 = vpop.xlane.xlu0 %672
    %v674 = vsel %vm77, %v648, -inf
    %675 = vmax.xlane.f32.xlu0 %v674
    %v676 = vpop.xlane.xlu0 %675
    %v677 = vsel %vm77, %v653, -inf
    %678 = vmax.xlane.f32.xlu0 %v677
    %v679 = vpop.xlane.xlu0 %678
    %v680 = vsub.f32 %v387, %v658
    %v681 = vsub.f32 %v392, %v661
    %v682 = vsub.f32 %v474, %v664
    %v683 = vsub.f32 %v479, %v667
    %v684 = vsub.f32 %v561, %v670
    %v685 = vsub.f32 %v566, %v673
    %v686 = vsub.f32 %v648, %v676
    %v687 = vsub.f32 %v653, %v679
    %v688 = vmul.f32 %v680, 1.442695
    %v689 = vpow.pop %v688
    %v690 = vmul.f32 %v681, 1.442695
    %v691 = vpow.pop %v690
    %v692 = vmul.f32 %v682, 1.442695
    %v693 = vpow.pop %v692
    %v694 = vmul.f32 %v683, 1.442695
    %v695 = vpow.pop %v694
    %v696 = vmul.f32 %v684, 1.442695
    %v697 = vpow.pop %v696
    %v698 = vmul.f32 %v685, 1.442695
    %v699 = vpow.pop %v698
    %v700 = vmul.f32 %v686, 1.442695
    %v701 = vpow.pop %v700
    %v702 = vmul.f32 %v687, 1.442695
    %v703 = vpow.pop %v702
    %v704 = vsel %vm77, %v689, 0.0
    %705 = vadd.xlane.f32.xlu0 %v704
    %v706 = vpop.xlane.xlu0 %705
    %v707 = vsel %vm77, %v691, 0.0
    %708 = vadd.xlane.f32.xlu0 %v707
    %v709 = vpop.xlane.xlu0 %708
    %v710 = vsel %vm77, %v693, 0.0
    %711 = vadd.xlane.f32.xlu0 %v710
    %v712 = vpop.xlane.xlu0 %711
    %v713 = vsel %vm77, %v695, 0.0
    %714 = vadd.xlane.f32.xlu0 %v713
    %v715 = vpop.xlane.xlu0 %714
    %v716 = vsel %vm77, %v697, 0.0
    %717 = vadd.xlane.f32.xlu0 %v716
    %v718 = vpop.xlane.xlu0 %717
    %v719 = vsel %vm77, %v699, 0.0
    %720 = vadd.xlane.f32.xlu0 %v719
    %v721 = vpop.xlane.xlu0 %720
    %v722 = vsel %vm77, %v701, 0.0
    %723 = vadd.xlane.f32.xlu0 %v722
    %v724 = vpop.xlane.xlu0 %723
    %v725 = vsel %vm77, %v703, 0.0
    %726 = vadd.xlane.f32.xlu0 %v725
    %v727 = vpop.xlane.xlu0 %726
    %v728 = vrcp.pop %v706
    %v729 = vmul.f32 %v689, %v728
    %v730 = vrcp.pop %v709
    %v731 = vmul.f32 %v691, %v730
    %v732 = vrcp.pop %v712
    %v733 = vmul.f32 %v693, %v732
    %v734 = vrcp.pop %v715
    %v735 = vmul.f32 %v695, %v734
    %v736 = vrcp.pop %v718
    %v737 = vmul.f32 %v697, %v736
    %v738 = vrcp.pop %v721
    %v739 = vmul.f32 %v699, %v738
    %v740 = vrcp.pop %v724
    %v741 = vmul.f32 %v701, %v740
    %v742 = vrcp.pop %v727
    %v743 = vmul.f32 %v703, %v742
    %744 = vrot.lane.b32.xlu0 %v285, 64
    %v745 = vpop.permute.xlu0 %744
    %746 = vrot.lane.b32.xlu0 %v290, 64
    %v747 = vpop.permute.xlu0 %746
    %v751 = vsel %vm77, %v729, 0
    %v754 = vsel %vm77, %v731, 0
    %756 = vmatprep.subr.mxu0 0.0
    %757 = vmatpush1.msra.mxu0 %v745
    %758 = vmatprep.subr.mxu0 0.0
    %759 = vmatpush1.msra.mxu0 %v747
    %760 = vmatprep.subr.mxu0 0.0
    %761 = vmatpush1.msra.mxu0 0.0
    %762 = vmatprep.subr.mxu0 0.0
    %763 = vmatpush1.msra.mxu0 0.0
    %764 = vmatprep.subr.mxu0 0.0
    %765 = vmatpush1.msra.mxu0 0.0
    %766 = vmatprep.subr.mxu0 0.0
    %767 = vmatpush1.msra.mxu0 0.0
    %768 = vmatprep.subr.mxu0 0.0
    %769 = vmatpush1.msra.mxu0 0.0
    %770 = vmatprep.subr.mxu0 0.0
    %771 = vmatpush1.msra.mxu0 0.0
    %772 = vmatprep.subr.mxu0 0.0
    %773 = vmatpush1.msra.mxu0 0.0
    %774 = vmatprep.subr.mxu0 0.0
    %775 = vmatpush1.msra.mxu0 0.0
    %776 = vmatprep.subr.mxu0 0.0
    %777 = vmatpush1.msra.mxu0 0.0
    %778 = vmatprep.subr.mxu0 0.0
    %779 = vmatpush1.msra.mxu0 0.0
    %780 = vmatprep.subr.mxu0 0.0
    %781 = vmatpush1.msra.mxu0 0.0
    %782 = vmatprep.subr.mxu0 0.0
    %783 = vmatpush1.msra.mxu0 0.0
    %784 = vmatprep.subr.mxu0 0.0
    %785 = vmatpush1.msra.mxu0 0.0
    %786 = vmatprep.subr.mxu0 0.0
    %787 = vmatpush1.msra.mxu0 0.0
    %788 = vmatprep.subr.mxu0 0.0
    %789 = vmatpush1.msra.mxu0 0.0
    %790 = vmatprep.subr.mxu0 0.0
    %791 = vmatpush1.msra.mxu0 0.0
    %792 = vmatprep.subr.mxu0 0.0
    %793 = vmatpush1.msra.mxu0 0.0
    %794 = vmatprep.subr.mxu0 0.0
    %795 = vmatpush1.msra.mxu0 0.0
    %796 = vmatprep.subr.mxu0 0.0
    %797 = vmatpush1.msra.mxu0 0.0
    %798 = vmatprep.subr.mxu0 0.0
    %799 = vmatpush1.msra.mxu0 0.0
    %800 = vmatprep.subr.mxu0 0.0
    %801 = vmatpush1.msra.mxu0 0.0
    %802 = vmatprep.subr.mxu0 0.0
    %803 = vmatpush1.msra.mxu0 0.0
    %804 = vmatprep.subr.mxu0 0.0
    %805 = vmatpush1.msra.mxu0 0.0
    %806 = vmatprep.subr.mxu0 0.0
    %807 = vmatpush1.msra.mxu0 0.0
    %808 = vmatprep.subr.mxu0 0.0
    %809 = vmatpush1.msra.mxu0 0.0
    %810 = vmatprep.subr.mxu0 0.0
    %811 = vmatpush1.msra.mxu0 0.0
    %812 = vmatprep.subr.mxu0 0.0
    %813 = vmatpush1.msra.mxu0 0.0
    %814 = vmatprep.subr.mxu0 0.0
    %815 = vmatpush1.msra.mxu0 0.0
    %816 = vmatprep.subr.mxu0 0.0
    %817 = vmatpush1.msra.mxu0 0.0
    %818 = vmatprep.subr.mxu0 0.0
    %819 = vmatpush1.msra.mxu0 0.0
    %820 = vmatprep.mubr.f32.mxu0 0.0
    %821 = vmatmul.mubr.f32.gmra.mrb[0].mxu0 %v751
    %v822 = vpop.f32.mrb[0].mxu0
    %v823 = vadd.f32 0.0, %v822
    %v824 = vpop.f32.mrb[0].mxu0
    %825 = vmatprep.mubr.f32.mxu0 0.0
    %826 = vmatmul.mubr.f32.gmra.mrb[0].mxu0 %v754
    %v827 = vpop.f32.mrb[0].mxu0
    %v828 = vadd.f32 0.0, %v827
    %v829 = vpop.f32.mrb[0].mxu0
    %830 = vdwg.mxu0
    %831 = vrot.lane.b32.xlu0 %v296, 64
    %v832 = vpop.permute.xlu0 %831
    %833 = vrot.lane.b32.xlu0 %v298, 64
    %v834 = vpop.permute.xlu0 %833
    %v838 = vsel %vm77, %v733, 0
    %v841 = vsel %vm77, %v735, 0
    %843 = vmatprep.subr.mxu0 0.0
    %844 = vmatpush1.msra.mxu0 %v832
    %845 = vmatprep.subr.mxu0 0.0
    %846 = vmatpush1.msra.mxu0 %v834
    %847 = vmatprep.subr.mxu0 0.0
    %848 = vmatpush1.msra.mxu0 0.0
    %849 = vmatprep.subr.mxu0 0.0
    %850 = vmatpush1.msra.mxu0 0.0
    %851 = vmatprep.subr.mxu0 0.0
    %852 = vmatpush1.msra.mxu0 0.0
    %853 = vmatprep.subr.mxu0 0.0
    %854 = vmatpush1.msra.mxu0 0.0
    %855 = vmatprep.subr.mxu0 0.0
    %856 = vmatpush1.msra.mxu0 0.0
    %857 = vmatprep.subr.mxu0 0.0
    %858 = vmatpush1.msra.mxu0 0.0
    %859 = vmatprep.subr.mxu0 0.0
    %860 = vmatpush1.msra.mxu0 0.0
    %861 = vmatprep.subr.mxu0 0.0
    %862 = vmatpush1.msra.mxu0 0.0
    %863 = vmatprep.subr.mxu0 0.0
    %864 = vmatpush1.msra.mxu0 0.0
    %865 = vmatprep.subr.mxu0 0.0
    %866 = vmatpush1.msra.mxu0 0.0
    %867 = vmatprep.subr.mxu0 0.0
    %868 = vmatpush1.msra.mxu0 0.0
    %869 = vmatprep.subr.mxu0 0.0
    %870 = vmatpush1.msra.mxu0 0.0
    %871 = vmatprep.subr.mxu0 0.0
    %872 = vmatpush1.msra.mxu0 0.0
    %873 = vmatprep.subr.mxu0 0.0
    %874 = vmatpush1.msra.mxu0 0.0
    %875 = vmatprep.subr.mxu0 0.0
    %876 = vmatpush1.msra.mxu0 0.0
    %877 = vmatprep.subr.mxu0 0.0
    %878 = vmatpush1.msra.mxu0 0.0
    %879 = vmatprep.subr.mxu0 0.0
    %880 = vmatpush1.msra.mxu0 0.0
    %881 = vmatprep.subr.mxu0 0.0
    %882 = vmatpush1.msra.mxu0 0.0
    %883 = vmatprep.subr.mxu0 0.0
    %884 = vmatpush1.msra.mxu0 0.0
    %885 = vmatprep.subr.mxu0 0.0
    %886 = vmatpush1.msra.mxu0 0.0
    %887 = vmatprep.subr.mxu0 0.0
    %888 = vmatpush1.msra.mxu0 0.0
    %889 = vmatprep.subr.mxu0 0.0
    %890 = vmatpush1.msra.mxu0 0.0
    %891 = vmatprep.subr.mxu0 0.0
    %892 = vmatpush1.msra.mxu0 0.0
    %893 = vmatprep.subr.mxu0 0.0
    %894 = vmatpush1.msra.mxu0 0.0
    %895 = vmatprep.subr.mxu0 0.0
    %896 = vmatpush1.msra.mxu0 0.0
    %897 = vmatprep.subr.mxu0 0.0
    %898 = vmatpush1.msra.mxu0 0.0
    %899 = vmatprep.subr.mxu0 0.0
    %900 = vmatpush1.msra.mxu0 0.0
    %901 = vmatprep.subr.mxu0 0.0
    %902 = vmatpush1.msra.mxu0 0.0
    %903 = vmatprep.subr.mxu0 0.0
    %904 = vmatpush1.msra.mxu0 0.0
    %905 = vmatprep.subr.mxu0 0.0
    %906 = vmatpush1.msra.mxu0 0.0
    %907 = vmatprep.mubr.f32.mxu0 0.0
    %908 = vmatmul.mubr.f32.gmra.mrb[0].mxu0 %v838
    %v909 = vpop.f32.mrb[0].mxu0
    %v910 = vadd.f32 0.0, %v909
    %v911 = vpop.f32.mrb[0].mxu0
    %912 = vmatprep.mubr.f32.mxu0 0.0
    %913 = vmatmul.mubr.f32.gmra.mrb[0].mxu0 %v841
    %v914 = vpop.f32.mrb[0].mxu0
    %v915 = vadd.f32 0.0, %v914
    %v916 = vpop.f32.mrb[0].mxu0
    %917 = vdwg.mxu0
    %918 = vrot.lane.b32.xlu0 %v300, 64
    %v919 = vpop.permute.xlu0 %918
    %920 = vrot.lane.b32.xlu0 %v302, 64
    %v921 = vpop.permute.xlu0 %920
    %v925 = vsel %vm77, %v737, 0
    %v928 = vsel %vm77, %v739, 0
    %930 = vmatprep.subr.mxu0 0.0
    %931 = vmatpush1.msra.mxu0 %v919
    %932 = vmatprep.subr.mxu0 0.0
    %933 = vmatpush1.msra.mxu0 %v921
    %934 = vmatprep.subr.mxu0 0.0
    %935 = vmatpush1.msra.mxu0 0.0
    %936 = vmatprep.subr.mxu0 0.0
    %937 = vmatpush1.msra.mxu0 0.0
    %938 = vmatprep.subr.mxu0 0.0
    %939 = vmatpush1.msra.mxu0 0.0
    %940 = vmatprep.subr.mxu0 0.0
    %941 = vmatpush1.msra.mxu0 0.0
    %942 = vmatprep.subr.mxu0 0.0
    %943 = vmatpush1.msra.mxu0 0.0
    %944 = vmatprep.subr.mxu0 0.0
    %945 = vmatpush1.msra.mxu0 0.0
    %946 = vmatprep.subr.mxu0 0.0
    %947 = vmatpush1.msra.mxu0 0.0
    %948 = vmatprep.subr.mxu0 0.0
    %949 = vmatpush1.msra.mxu0 0.0
    %950 = vmatprep.subr.mxu0 0.0
    %951 = vmatpush1.msra.mxu0 0.0
    %952 = vmatprep.subr.mxu0 0.0
    %953 = vmatpush1.msra.mxu0 0.0
    %954 = vmatprep.subr.mxu0 0.0
    %955 = vmatpush1.msra.mxu0 0.0
    %956 = vmatprep.subr.mxu0 0.0
    %957 = vmatpush1.msra.mxu0 0.0
    %958 = vmatprep.subr.mxu0 0.0
    %959 = vmatpush1.msra.mxu0 0.0
    %960 = vmatprep.subr.mxu0 0.0
    %961 = vmatpush1.msra.mxu0 0.0
    %962 = vmatprep.subr.mxu0 0.0
    %963 = vmatpush1.msra.mxu0 0.0
    %964 = vmatprep.subr.mxu0 0.0
    %965 = vmatpush1.msra.mxu0 0.0
    %966 = vmatprep.subr.mxu0 0.0
    %967 = vmatpush1.msra.mxu0 0.0
    %968 = vmatprep.subr.mxu0 0.0
    %969 = vmatpush1.msra.mxu0 0.0
    %970 = vmatprep.subr.mxu0 0.0
    %971 = vmatpush1.msra.mxu0 0.0
    %972 = vmatprep.subr.mxu0 0.0
    %973 = vmatpush1.msra.mxu0 0.0
    %974 = vmatprep.subr.mxu0 0.0
    %975 = vmatpush1.msra.mxu0 0.0
    %976 = vmatprep.subr.mxu0 0.0
    %977 = vmatpush1.msra.mxu0 0.0
    %978 = vmatprep.subr.mxu0 0.0
    %979 = vmatpush1.msra.mxu0 0.0
    %980 = vmatprep.subr.mxu0 0.0
    %981 = vmatpush1.msra.mxu0 0.0
    %982 = vmatprep.subr.mxu0 0.0
    %983 = vmatpush1.msra.mxu0 0.0
    %984 = vmatprep.subr.mxu0 0.0
    %985 = vmatpush1.msra.mxu0 0.0
    %986 = vmatprep.subr.mxu0 0.0
    %987 = vmatpush1.msra.mxu0 0.0
    %988 = vmatprep.subr.mxu0 0.0
    %989 = vmatpush1.msra.mxu0 0.0
    %990 = vmatprep.subr.mxu0 0.0
    %991 = vmatpush1.msra.mxu0 0.0
    %992 = vmatprep.subr.mxu0 0.0
    %993 = vmatpush1.msra.mxu0 0.0
    %994 = vmatprep.mubr.f32.mxu0 0.0
    %995 = vmatmul.mubr.f32.gmra.mrb[0].mxu0 %v925
    %v996 = vpop.f32.mrb[0].mxu0
    %v997 = vadd.f32 0.0, %v996
    %v998 = vpop.f32.mrb[0].mxu0
    %999 = vmatprep.mubr.f32.mxu0 0.0
    %1000 = vmatmul.mubr.f32.gmra.mrb[0].mxu0 %v928
    %v1001 = vpop.f32.mrb[0].mxu0
    %v1002 = vadd.f32 0.0, %v1001
    %v1003 = vpop.f32.mrb[0].mxu0
    %1004 = vdwg.mxu0
    %1005 = vrot.lane.b32.xlu0 %v304, 64
    %v1006 = vpop.permute.xlu0 %1005
    %1007 = vrot.lane.b32.xlu0 %v306, 64
    %v1008 = vpop.permute.xlu0 %1007
    %v1012 = vsel %vm77, %v741, 0
    %v1015 = vsel %vm77, %v743, 0
    %1017 = vmatprep.subr.mxu0 0.0
    %1018 = vmatpush1.msra.mxu0 %v1006
    %1019 = vmatprep.subr.mxu0 0.0
    %1020 = vmatpush1.msra.mxu0 %v1008
    %1021 = vmatprep.subr.mxu0 0.0
    %1022 = vmatpush1.msra.mxu0 0.0
    %1023 = vmatprep.subr.mxu0 0.0
    %1024 = vmatpush1.msra.mxu0 0.0
    %1025 = vmatprep.subr.mxu0 0.0
    %1026 = vmatpush1.msra.mxu0 0.0
    %1027 = vmatprep.subr.mxu0 0.0
    %1028 = vmatpush1.msra.mxu0 0.0
    %1029 = vmatprep.subr.mxu0 0.0
    %1030 = vmatpush1.msra.mxu0 0.0
    %1031 = vmatprep.subr.mxu0 0.0
    %1032 = vmatpush1.msra.mxu0 0.0
    %1033 = vmatprep.subr.mxu0 0.0
    %1034 = vmatpush1.msra.mxu0 0.0
    %1035 = vmatprep.subr.mxu0 0.0
    %1036 = vmatpush1.msra.mxu0 0.0
    %1037 = vmatprep.subr.mxu0 0.0
    %1038 = vmatpush1.msra.mxu0 0.0
    %1039 = vmatprep.subr.mxu0 0.0
    %1040 = vmatpush1.msra.mxu0 0.0
    %1041 = vmatprep.subr.mxu0 0.0
    %1042 = vmatpush1.msra.mxu0 0.0
    %1043 = vmatprep.subr.mxu0 0.0
    %1044 = vmatpush1.msra.mxu0 0.0
    %1045 = vmatprep.subr.mxu0 0.0
    %1046 = vmatpush1.msra.mxu0 0.0
    %1047 = vmatprep.subr.mxu0 0.0
    %1048 = vmatpush1.msra.mxu0 0.0
    %1049 = vmatprep.subr.mxu0 0.0
    %1050 = vmatpush1.msra.mxu0 0.0
    %1051 = vmatprep.subr.mxu0 0.0
    %1052 = vmatpush1.msra.mxu0 0.0
    %1053 = vmatprep.subr.mxu0 0.0
    %1054 = vmatpush1.msra.mxu0 0.0
    %1055 = vmatprep.subr.mxu0 0.0
    %1056 = vmatpush1.msra.mxu0 0.0
    %1057 = vmatprep.subr.mxu0 0.0
    %1058 = vmatpush1.msra.mxu0 0.0
    %1059 = vmatprep.subr.mxu0 0.0
    %1060 = vmatpush1.msra.mxu0 0.0
    %1061 = vmatprep.subr.mxu0 0.0
    %1062 = vmatpush1.msra.mxu0 0.0
    %1063 = vmatprep.subr.mxu0 0.0
    %1064 = vmatpush1.msra.mxu0 0.0
    %1065 = vmatprep.subr.mxu0 0.0
    %1066 = vmatpush1.msra.mxu0 0.0
    %1067 = vmatprep.subr.mxu0 0.0
    %1068 = vmatpush1.msra.mxu0 0.0
    %1069 = vmatprep.subr.mxu0 0.0
    %1070 = vmatpush1.msra.mxu0 0.0
    %1071 = vmatprep.subr.mxu0 0.0
    %1072 = vmatpush1.msra.mxu0 0.0
    %1073 = vmatprep.subr.mxu0 0.0
    %1074 = vmatpush1.msra.mxu0 0.0
    %1075 = vmatprep.subr.mxu0 0.0
    %1076 = vmatpush1.msra.mxu0 0.0
    %1077 = vmatprep.subr.mxu0 0.0
    %1078 = vmatpush1.msra.mxu0 0.0
    %1079 = vmatprep.subr.mxu0 0.0
    %1080 = vmatpush1.msra.mxu0 0.0
    %1081 = vmatprep.mubr.f32.mxu0 0.0
    %1082 = vmatmul.mubr.f32.gmra.mrb[0].mxu0 %v1012
    %v1083 = vpop.f32.mrb[0].mxu0
    %v1084 = vadd.f32 0.0, %v1083
    %v1085 = vpop.f32.mrb[0].mxu0
    %1086 = vmatprep.mubr.f32.mxu0 0.0
    %1087 = vmatmul.mubr.f32.gmra.mrb[0].mxu0 %v1015
    %v1088 = vpop.f32.mrb[0].mxu0
    %v1089 = vadd.f32 0.0, %v1088
    %v1090 = vpop.f32.mrb[0].mxu0
    %1091 = vdwg.mxu0
    %1094 = vrot.lane.b32.xlu0 %v910, 8
    %v1095 = vpop.permute.xlu0 %1094
    %1096 = vrot.lane.b32.xlu0 %v915, 8
    %v1097 = vpop.permute.xlu0 %1096
    %1102 = vrot.lane.b32.xlu0 %v997, 16
    %v1103 = vpop.permute.xlu0 %1102
    %1104 = vrot.lane.b32.xlu0 %v1002, 16
    %v1105 = vpop.permute.xlu0 %1104
    %1110 = vrot.lane.b32.xlu0 %v1084, 24
    %v1111 = vpop.permute.xlu0 %1110
    %1112 = vrot.lane.b32.xlu0 %v1089, 24
    %v1113 = vpop.permute.xlu0 %1112
    %v1116 = vsel %vm311, %v823, %v1095
    %v1117 = vsel %vm311, %v828, %v1097
    %v1118 = vsel %vm77, %v1116, %v1103
    %v1119 = vsel %vm77, %v1117, %v1105
    %vm1120 = vcmask 195584
    %v1121 = vsel %vm1120, %v1118, %v1111
    %v1122 = vsel %vm1120, %v1119, %v1113
    %v1123 = vadd.f32 %v151, %v1121
    %v1124 = vadd.f32 %v156, %v1122
    %v1125 = vld [vmem:[%s8] sm:$0x1]
    %v1126 = vld [vmem:[%s9] sm:$0x1]
    %v1127 = vsel %vm163, %v1123, 0.0
    %1128 = vadd.xlane.f32.xlu0 %v1127
    %v1129 = vpop.xlane.xlu0 %1128
    %v1130 = vsel %vm163, %v1124, 0.0
    %1131 = vadd.xlane.f32.xlu0 %v1130
    %v1132 = vpop.xlane.xlu0 %1131
    %v1133 = vmul.f32 %v1129, %v170
    %v1134 = vmul.f32 %v1132, %v170
    %v1135 = vsub.f32 %v1123, %v1133
    %v1136 = vsub.f32 %v1124, %v1134
    %v1137 = vmul.f32 %v1135, %v1135
    %v1138 = vmul.f32 %v1136, %v1136
    %v1139 = vsel %vm163, %v1137, 0.0
    %1140 = vadd.xlane.f32.xlu0 %v1139
    %v1141 = vpop.xlane.xlu0 %1140
    %v1142 = vsel %vm163, %v1138, 0.0
    %1143 = vadd.xlane.f32.xlu0 %v1142
    %v1144 = vpop.xlane.xlu0 %1143
    %v1145 = vmul.f32 %v1141, %v170
    %v1146 = vmul.f32 %v1144, %v170
    %v1147 = vadd.f32 %v1145, 1e-05
    %v1148 = vadd.f32 %v1146, 1e-05
    %v1149 = vrsqrt.pop %v1147
    %v1150 = vrsqrt.pop %v1148
    %v1151 = vmul.f32 %v1135, %v1149
    %v1152 = vmul.f32 %v1136, %v1150
    %v1153 = vlaneseq
    %v1154 = vshrl.u32 %v1153, 7
    %v1155 = vsub.s32 0, %v1154
    %v1156 = vrot.slane %v1125, %v1155
    %v1157 = vmul.f32 %v1151, %v1156
    %v1158 = vmul.f32 %v1152, %v1156
    %v1159 = vlaneseq
    %v1160 = vshrl.u32 %v1159, 7
    %v1161 = vsub.s32 0, %v1160
    %v1162 = vrot.slane %v1126, %v1161
    %v1163 = vadd.f32 %v1157, %v1162
    %v1164 = vadd.f32 %v1158, %v1162
    %v1165 = vld [vmem:[%s10] sm:$0xff]
    %v1166 = vld [vmem:[%s10 + $0x8] sm:$0xff]
    %v1167 = vld [vmem:[%s10 + $0x10] sm:$0xff]
    %v1168 = vld [vmem:[%s10 + $0x18] sm:$0xff]
    %v1169 = vld [vmem:[%s11] sm:$0x1]
    %v1170 = vlaneseq
    %v1171 = vshrl.u32 %v1170, 7
    %v1172 = vsub.s32 0, %v1171
    %v1173 = vrot.slane %v1169, %v1172
    %v1175 = vsel %vm163, %v1163, 0
    %v1178 = vsel %vm163, %v1164, 0
    %1180 = vmatprep.subr.mxu0 0.0
    %1181 = vmatpush1.msra.mxu0 %v1165
    %1182 = vmatprep.subr.mxu0 0.0
    %1183 = vmatpush1.msra.mxu0 %v1166
    %1184 = vmatprep.subr.mxu0 0.0
    %1185 = vmatpush1.msra.mxu0 %v1167
    %1186 = vmatprep.subr.mxu0 0.0
    %1187 = vmatpush1.msra.mxu0 %v1168
    %1188 = vmatprep.subr.mxu0 0.0
    %1189 = vmatpush1.msra.mxu0 0.0
    %1190 = vmatprep.subr.mxu0 0.0
    %1191 = vmatpush1.msra.mxu0 0.0
    %1192 = vmatprep.subr.mxu0 0.0
    %1193 = vmatpush1.msra.mxu0 0.0
    %1194 = vmatprep.subr.mxu0 0.0
    %1195 = vmatpush1.msra.mxu0 0.0
    %1196 = vmatprep.subr.mxu0 0.0
    %1197 = vmatpush1.msra.mxu0 0.0
    %1198 = vmatprep.subr.mxu0 0.0
    %1199 = vmatpush1.msra.mxu0 0.0
    %1200 = vmatprep.subr.mxu0 0.0
    %1201 = vmatpush1.msra.mxu0 0.0
    %1202 = vmatprep.subr.mxu0 0.0
    %1203 = vmatpush1.msra.mxu0 0.0
    %1204 = vmatprep.subr.mxu0 0.0
    %1205 = vmatpush1.msra.mxu0 0.0
    %1206 = vmatprep.subr.mxu0 0.0
    %1207 = vmatpush1.msra.mxu0 0.0
    %1208 = vmatprep.subr.mxu0 0.0
    %1209 = vmatpush1.msra.mxu0 0.0
    %1210 = vmatprep.subr.mxu0 0.0
    %1211 = vmatpush1.msra.mxu0 0.0
    %1212 = vmatprep.subr.mxu0 0.0
    %1213 = vmatpush1.msra.mxu0 0.0
    %1214 = vmatprep.subr.mxu0 0.0
    %1215 = vmatpush1.msra.mxu0 0.0
    %1216 = vmatprep.subr.mxu0 0.0
    %1217 = vmatpush1.msra.mxu0 0.0
    %1218 = vmatprep.subr.mxu0 0.0
    %1219 = vmatpush1.msra.mxu0 0.0
    %1220 = vmatprep.subr.mxu0 0.0
    %1221 = vmatpush1.msra.mxu0 0.0
    %1222 = vmatprep.subr.mxu0 0.0
    %1223 = vmatpush1.msra.mxu0 0.0
    %1224 = vmatprep.subr.mxu0 0.0
    %1225 = vmatpush1.msra.mxu0 0.0
    %1226 = vmatprep.subr.mxu0 0.0
    %1227 = vmatpush1.msra.mxu0 0.0
    %1228 = vmatprep.subr.mxu0 0.0
    %1229 = vmatpush1.msra.mxu0 0.0
    %1230 = vmatprep.subr.mxu0 0.0
    %1231 = vmatpush1.msra.mxu0 0.0
    %1232 = vmatprep.subr.mxu0 0.0
    %1233 = vmatpush1.msra.mxu0 0.0
    %1234 = vmatprep.subr.mxu0 0.0
    %1235 = vmatpush1.msra.mxu0 0.0
    %1236 = vmatprep.subr.mxu0 0.0
    %1237 = vmatpush1.msra.mxu0 0.0
    %1238 = vmatprep.subr.mxu0 0.0
    %1239 = vmatpush1.msra.mxu0 0.0
    %1240 = vmatprep.subr.mxu0 0.0
    %1241 = vmatpush1.msra.mxu0 0.0
    %1242 = vmatprep.subr.mxu0 0.0
    %1243 = vmatpush1.msra.mxu0 0.0
    %1244 = vmatprep.mubr.f32.mxu0 0.0
    %1245 = vmatmul.mubr.f32.gmra.mrb[0].mxu0 %v1175
    %v1246 = vpop.f32.mrb[0].mxu0
    %v1247 = vadd.f32 %v1173, %v1246
    %v1248 = vpop.f32.mrb[0].mxu0
    %1249 = vmatprep.mubr.f32.mxu0 0.0
    %1250 = vmatmul.mubr.f32.gmra.mrb[0].mxu0 %v1178
    %v1251 = vpop.f32.mrb[0].mxu0
    %v1252 = vadd.f32 %v1173, %v1251
    %v1253 = vpop.f32.mrb[0].mxu0
    %1254 = vdwg.mxu0
    %v1255 = vmul.f32 %v1247, 0.5
    %v1256 = vmul.f32 %v1252, 0.5
    %v1257 = vmul.f32 %v1247, 0.70710677
    %v1258 = vmul.f32 %v1252, 0.70710677
    %v1259 = verf.f32.pop %v1257
    %v1260 = verf.f32.pop %v1258
    %v1261 = vadd.f32 %v1259, 1.0
    %v1262 = vadd.f32 %v1260, 1.0
    %v1263 = vmul.f32 %v1255, %v1261
    %v1264 = vmul.f32 %v1256, %v1262
    %v1265 = vld [vmem:[%s12] sm:$0xff]
    %v1266 = vld [vmem:[%s12 + $0x8] sm:$0xff]
    %v1267 = vld [vmem:[%s12 + $0x10] sm:$0xff]
    %v1268 = vld [vmem:[%s12 + $0x18] sm:$0xff]
    %v1269 = vld [vmem:[%s12 + $0x20] sm:$0xff]
    %v1270 = vld [vmem:[%s12 + $0x28] sm:$0xff]
    %v1271 = vld [vmem:[%s12 + $0x30] sm:$0xff]
    %v1272 = vld [vmem:[%s12 + $0x38] sm:$0xff]
    %v1273 = vld [vmem:[%s12 + $0x40] sm:$0xff]
    %v1274 = vld [vmem:[%s12 + $0x48] sm:$0xff]
    %v1275 = vld [vmem:[%s12 + $0x50] sm:$0xff]
    %v1276 = vld [vmem:[%s12 + $0x58] sm:$0xff]
    %v1277 = vld [vmem:[%s12 + $0x60] sm:$0xff]
    %v1278 = vld [vmem:[%s12 + $0x68] sm:$0xff]
    %v1279 = vld [vmem:[%s12 + $0x70] sm:$0xff]
    %v1280 = vld [vmem:[%s12 + $0x78] sm:$0xff]
    %v1281 = vld [vmem:[%s13] sm:$0x1]
    %v1282 = vlaneseq
    %v1283 = vshrl.u32 %v1282, 7
    %v1284 = vsub.s32 0, %v1283
    %v1285 = vrot.slane %v1281, %v1284
    %1286 = vmatprep.subr.mxu0 0.0
    %1287 = vmatpush1.msra.mxu0 %v1265
    %1288 = vmatprep.subr.mxu0 0.0
    %1289 = vmatpush1.msra.mxu0 %v1266
    %1290 = vmatprep.subr.mxu0 0.0
    %1291 = vmatpush1.msra.mxu0 %v1267
    %1292 = vmatprep.subr.mxu0 0.0
    %1293 = vmatpush1.msra.mxu0 %v1268
    %1294 = vmatprep.subr.mxu0 0.0
    %1295 = vmatpush1.msra.mxu0 %v1269
    %1296 = vmatprep.subr.mxu0 0.0
    %1297 = vmatpush1.msra.mxu0 %v1270
    %1298 = vmatprep.subr.mxu0 0.0
    %1299 = vmatpush1.msra.mxu0 %v1271
    %1300 = vmatprep.subr.mxu0 0.0
    %1301 = vmatpush1.msra.mxu0 %v1272
    %1302 = vmatprep.subr.mxu0 0.0
    %1303 = vmatpush1.msra.mxu0 %v1273
    %1304 = vmatprep.subr.mxu0 0.0
    %1305 = vmatpush1.msra.mxu0 %v1274
    %1306 = vmatprep.subr.mxu0 0.0
    %1307 = vmatpush1.msra.mxu0 %v1275
    %1308 = vmatprep.subr.mxu0 0.0
    %1309 = vmatpush1.msra.mxu0 %v1276
    %1310 = vmatprep.subr.mxu0 0.0
    %1311 = vmatpush1.msra.mxu0 %v1277
    %1312 = vmatprep.subr.mxu0 0.0
    %1313 = vmatpush1.msra.mxu0 %v1278
    %1314 = vmatprep.subr.mxu0 0.0
    %1315 = vmatpush1.msra.mxu0 %v1279
    %1316 = vmatprep.subr.mxu0 0.0
    %1317 = vmatpush1.msra.mxu0 %v1280
    %1318 = vmatprep.subr.mxu0 0.0
    %1319 = vmatpush1.msra.mxu0 0.0
    %1320 = vmatprep.subr.mxu0 0.0
    %1321 = vmatpush1.msra.mxu0 0.0
    %1322 = vmatprep.subr.mxu0 0.0
    %1323 = vmatpush1.msra.mxu0 0.0
    %1324 = vmatprep.subr.mxu0 0.0
    %1325 = vmatpush1.msra.mxu0 0.0
    %1326 = vmatprep.subr.mxu0 0.0
    %1327 = vmatpush1.msra.mxu0 0.0
    %1328 = vmatprep.subr.mxu0 0.0
    %1329 = vmatpush1.msra.mxu0 0.0
    %1330 = vmatprep.subr.mxu0 0.0
    %1331 = vmatpush1.msra.mxu0 0.0
    %1332 = vmatprep.subr.mxu0 0.0
    %1333 = vmatpush1.msra.mxu0 0.0
    %1334 = vmatprep.subr.mxu0 0.0
    %1335 = vmatpush1.msra.mxu0 0.0
    %1336 = vmatprep.subr.mxu0 0.0
    %1337 = vmatpush1.msra.mxu0 0.0
    %1338 = vmatprep.subr.mxu0 0.0
    %1339 = vmatpush1.msra.mxu0 0.0
    %1340 = vmatprep.subr.mxu0 0.0
    %1341 = vmatpush1.msra.mxu0 0.0
    %1342 = vmatprep.subr.mxu0 0.0
    %1343 = vmatpush1.msra.mxu0 0.0
    %1344 = vmatprep.subr.mxu0 0.0
    %1345 = vmatpush1.msra.mxu0 0.0
    %1346 = vmatprep.subr.mxu0 0.0
    %1347 = vmatpush1.msra.mxu0 0.0
    %1348 = vmatprep.subr.mxu0 0.0
    %1349 = vmatpush1.msra.mxu0 0.0
    %1350 = vmatprep.mubr.f32.mxu0 0.0
    %1351 = vmatmul.mubr.f32.gmra.mrb[0].mxu0 %v1263
    %v1352 = vpop.f32.mrb[0].mxu0
    %v1353 = vadd.f32 %v1285, %v1352
    %v1354 = vpop.f32.mrb[0].mxu0
    %1355 = vmatprep.mubr.f32.mxu0 0.0
    %1356 = vmatmul.mubr.f32.gmra.mrb[0].mxu0 %v1264
    %v1357 = vpop.f32.mrb[0].mxu0
    %v1358 = vadd.f32 %v1285, %v1357
    %v1359 = vpop.f32.mrb[0].mxu0
    %1360 = vdwg.mxu0
    %v1361 = vadd.f32 %v1123, %v1353
    %v1362 = vadd.f32 %v1124, %v1358
    %v1363 = vld [vmem:[%s4 + $0x1] sm:$0x1]
    %v1364 = vld [vmem:[%s5 + $0x1] sm:$0x1]
    %v1365 = vsel %vm163, %v1361, 0.0
    %1366 = vadd.xlane.f32.xlu0 %v1365
    %v1367 = vpop.xlane.xlu0 %1366
    %v1368 = vsel %vm163, %v1362, 0.0
    %1369 = vadd.xlane.f32.xlu0 %v1368
    %v1370 = vpop.xlane.xlu0 %1369
    %v1371 = vmul.f32 %v1367, %v170
    %v1372 = vmul.f32 %v1370, %v170
    %v1373 = vsub.f32 %v1361, %v1371
    %v1374 = vsub.f32 %v1362, %v1372
    %v1375 = vmul.f32 %v1373, %v1373
    %v1376 = vmul.f32 %v1374, %v1374
    %v1377 = vsel %vm163, %v1375, 0.0
    %1378 = vadd.xlane.f32.xlu0 %v1377
    %v1379 = vpop.xlane.xlu0 %1378
    %v1380 = vsel %vm163, %v1376, 0.0
    %1381 = vadd.xlane.f32.xlu0 %v1380
    %v1382 = vpop.xlane.xlu0 %1381
    %v1383 = vmul.f32 %v1379, %v170
    %v1384 = vmul.f32 %v1382, %v170
    %v1385 = vadd.f32 %v1383, 1e-05
    %v1386 = vadd.f32 %v1384, 1e-05
    %v1387 = vrsqrt.pop %v1385
    %v1388 = vrsqrt.pop %v1386
    %v1389 = vmul.f32 %v1373, %v1387
    %v1390 = vmul.f32 %v1374, %v1388
    %v1391 = vlaneseq
    %v1392 = vshrl.u32 %v1391, 7
    %v1393 = vsub.s32 0, %v1392
    %v1394 = vrot.slane %v1363, %v1393
    %v1395 = vmul.f32 %v1389, %v1394
    %v1396 = vmul.f32 %v1390, %v1394
    %v1397 = vlaneseq
    %v1398 = vshrl.u32 %v1397, 7
    %v1399 = vsub.s32 0, %v1398
    %v1400 = vrot.slane %v1364, %v1399
    %v1401 = vadd.f32 %v1395, %v1400
    %v1402 = vadd.f32 %v1396, %v1400
    %s1403 = scalar_lea.vmem %s6, 32
    %v1404 = vld [vmem:[%s1403] sm:$0xff]
    %v1405 = vld [vmem:[%s1403 + $0x8] sm:$0xff]
    %v1406 = vld [vmem:[%s1403 + $0x10] sm:$0xff]
    %v1407 = vld [vmem:[%s1403 + $0x18] sm:$0xff]
    %v1408 = vld [vmem:[%s7 + $0x1] sm:$0x1]
    %v1409 = vlaneseq
    %v1410 = vshrl.u32 %v1409, 7
    %v1411 = vsub.s32 0, %v1410
    %v1412 = vrot.slane %v1408, %v1411
    %v1414 = vsel %vm163, %v1401, 0
    %v1417 = vsel %vm163, %v1402, 0
    %1419 = vmatprep.subr.mxu0 0.0
    %1420 = vmatpush1.msra.mxu0 %v1404
    %1421 = vmatprep.subr.mxu0 0.0
    %1422 = vmatpush1.msra.mxu0 %v1405
    %1423 = vmatprep.subr.mxu0 0.0
    %1424 = vmatpush1.msra.mxu0 %v1406
    %1425 = vmatprep.subr.mxu0 0.0
    %1426 = vmatpush1.msra.mxu0 %v1407
    %1427 = vmatprep.subr.mxu0 0.0
    %1428 = vmatpush1.msra.mxu0 0.0
    %1429 = vmatprep.subr.mxu0 0.0
    %1430 = vmatpush1.msra.mxu0 0.0
    %1431 = vmatprep.subr.mxu0 0.0
    %1432 = vmatpush1.msra.mxu0 0.0
    %1433 = vmatprep.subr.mxu0 0.0
    %1434 = vmatpush1.msra.mxu0 0.0
    %1435 = vmatprep.subr.mxu0 0.0
    %1436 = vmatpush1.msra.mxu0 0.0
    %1437 = vmatprep.subr.mxu0 0.0
    %1438 = vmatpush1.msra.mxu0 0.0
    %1439 = vmatprep.subr.mxu0 0.0
    %1440 = vmatpush1.msra.mxu0 0.0
    %1441 = vmatprep.subr.mxu0 0.0
    %1442 = vmatpush1.msra.mxu0 0.0
    %1443 = vmatprep.subr.mxu0 0.0
    %1444 = vmatpush1.msra.mxu0 0.0
    %1445 = vmatprep.subr.mxu0 0.0
    %1446 = vmatpush1.msra.mxu0 0.0
    %1447 = vmatprep.subr.mxu0 0.0
    %1448 = vmatpush1.msra.mxu0 0.0
    %1449 = vmatprep.subr.mxu0 0.0
    %1450 = vmatpush1.msra.mxu0 0.0
    %1451 = vmatprep.subr.mxu0 0.0
    %1452 = vmatpush1.msra.mxu0 0.0
    %1453 = vmatprep.subr.mxu0 0.0
    %1454 = vmatpush1.msra.mxu0 0.0
    %1455 = vmatprep.subr.mxu0 0.0
    %1456 = vmatpush1.msra.mxu0 0.0
    %1457 = vmatprep.subr.mxu0 0.0
    %1458 = vmatpush1.msra.mxu0 0.0
    %1459 = vmatprep.subr.mxu0 0.0
    %1460 = vmatpush1.msra.mxu0 0.0
    %1461 = vmatprep.subr.mxu0 0.0
    %1462 = vmatpush1.msra.mxu0 0.0
    %1463 = vmatprep.subr.mxu0 0.0
    %1464 = vmatpush1.msra.mxu0 0.0
    %1465 = vmatprep.subr.mxu0 0.0
    %1466 = vmatpush1.msra.mxu0 0.0
    %1467 = vmatprep.subr.mxu0 0.0
    %1468 = vmatpush1.msra.mxu0 0.0
    %1469 = vmatprep.subr.mxu0 0.0
    %1470 = vmatpush1.msra.mxu0 0.0
    %1471 = vmatprep.subr.mxu0 0.0
    %1472 = vmatpush1.msra.mxu0 0.0
    %1473 = vmatprep.subr.mxu0 0.0
    %1474 = vmatpush1.msra.mxu0 0.0
    %1475 = vmatprep.subr.mxu0 0.0
    %1476 = vmatpush1.msra.mxu0 0.0
    %1477 = vmatprep.subr.mxu0 0.0
    %1478 = vmatpush1.msra.mxu0 0.0
    %1479 = vmatprep.subr.mxu0 0.0
    %1480 = vmatpush1.msra.mxu0 0.0
    %1481 = vmatprep.subr.mxu0 0.0
    %1482 = vmatpush1.msra.mxu0 0.0
    %1483 = vmatprep.mubr.f32.mxu0 0.0
    %1484 = vmatmul.mubr.f32.gmra.mrb[0].mxu0 %v1414
    %v1485 = vpop.f32.mrb[0].mxu0
    %v1486 = vadd.f32 %v1412, %v1485
    %v1487 = vpop.f32.mrb[0].mxu0
    %1488 = vmatprep.mubr.f32.mxu0 0.0
    %1489 = vmatmul.mubr.f32.gmra.mrb[0].mxu0 %v1417
    %v1490 = vpop.f32.mrb[0].mxu0
    %v1491 = vadd.f32 %v1412, %v1490
    %v1492 = vpop.f32.mrb[0].mxu0
    %1493 = vdwg.mxu0
    %1496 = vrot.lane.b32.xlu0 %v1486, 120
    %v1497 = vpop.permute.xlu0 %1496
    %1498 = vrot.lane.b32.xlu0 %v1491, 120
    %v1499 = vpop.permute.xlu0 %1498
    %1500 = vrot.lane.b32.xlu0 %v1486, 112
    %v1501 = vpop.permute.xlu0 %1500
    %1502 = vrot.lane.b32.xlu0 %v1491, 112
    %v1503 = vpop.permute.xlu0 %1502
    %1504 = vrot.lane.b32.xlu0 %v1486, 104
    %v1505 = vpop.permute.xlu0 %1504
    %1506 = vrot.lane.b32.xlu0 %v1491, 104
    %v1507 = vpop.permute.xlu0 %1506
    %1508 = vrot.lane.b32.xlu0 %v1486, 96
    %v1509 = vpop.permute.xlu0 %1508
    %1510 = vrot.lane.b32.xlu0 %v1491, 96
    %v1511 = vpop.permute.xlu0 %1510
    %v1512 = vsel %vm311, %v1486, 0
    %v1514 = vsel %vm311, %v1491, 0
    %v1516 = vsel %vm311, %v1509, 0
    %v1518 = vsel %vm311, %v1511, 0
    %1520 = vmatprep.subr.mxu0 0.0
    %1521 = vmatpush1.xpose.msra.mxu0 %v1516
    %1522 = vmatprep.subr.mxu0 0.0
    %1523 = vmatpush1.xpose.msra.mxu0 %v1518
    %1524 = vmatprep.subr.mxu0 0.0
    %1525 = vmatpush1.xpose.msra.mxu0 0.0
    %1526 = vmatprep.subr.mxu0 0.0
    %1527 = vmatpush1.xpose.msra.mxu0 0.0
    %1528 = vmatprep.subr.mxu0 0.0
    %1529 = vmatpush1.xpose.msra.mxu0 0.0
    %1530 = vmatprep.subr.mxu0 0.0
    %1531 = vmatpush1.xpose.msra.mxu0 0.0
    %1532 = vmatprep.subr.mxu0 0.0
    %1533 = vmatpush1.xpose.msra.mxu0 0.0
    %1534 = vmatprep.subr.mxu0 0.0
    %1535 = vmatpush1.xpose.msra.mxu0 0.0
    %1536 = vmatprep.subr.mxu0 0.0
    %1537 = vmatpush1.xpose.msra.mxu0 0.0
    %1538 = vmatprep.subr.mxu0 0.0
    %1539 = vmatpush1.xpose.msra.mxu0 0.0
    %1540 = vmatprep.subr.mxu0 0.0
    %1541 = vmatpush1.xpose.msra.mxu0 0.0
    %1542 = vmatprep.subr.mxu0 0.0
    %1543 = vmatpush1.xpose.msra.mxu0 0.0
    %1544 = vmatprep.subr.mxu0 0.0
    %1545 = vmatpush1.xpose.msra.mxu0 0.0
    %1546 = vmatprep.subr.mxu0 0.0
    %1547 = vmatpush1.xpose.msra.mxu0 0.0
    %1548 = vmatprep.subr.mxu0 0.0
    %1549 = vmatpush1.xpose.msra.mxu0 0.0
    %1550 = vmatprep.subr.mxu0 0.0
    %1551 = vmatpush1.xpose.msra.mxu0 0.0
    %1552 = vmatprep.subr.mxu0 0.0
    %1553 = vmatpush1.xpose.msra.mxu0 0.0
    %1554 = vmatprep.subr.mxu0 0.0
    %1555 = vmatpush1.xpose.msra.mxu0 0.0
    %1556 = vmatprep.subr.mxu0 0.0
    %1557 = vmatpush1.xpose.msra.mxu0 0.0
    %1558 = vmatprep.subr.mxu0 0.0
    %1559 = vmatpush1.xpose.msra.mxu0 0.0
    %1560 = vmatprep.subr.mxu0 0.0
    %1561 = vmatpush1.xpose.msra.mxu0 0.0
    %1562 = vmatprep.subr.mxu0 0.0
    %1563 = vmatpush1.xpose.msra.mxu0 0.0
    %1564 = vmatprep.subr.mxu0 0.0
    %1565 = vmatpush1.xpose.msra.mxu0 0.0
    %1566 = vmatprep.subr.mxu0 0.0
    %1567 = vmatpush1.xpose.msra.mxu0 0.0
    %1568 = vmatprep.subr.mxu0 0.0
    %1569 = vmatpush1.xpose.msra.mxu0 0.0
    %1570 = vmatprep.subr.mxu0 0.0
    %1571 = vmatpush1.xpose.msra.mxu0 0.0
    %1572 = vmatprep.subr.mxu0 0.0
    %1573 = vmatpush1.xpose.msra.mxu0 0.0
    %1574 = vmatprep.subr.mxu0 0.0
    %1575 = vmatpush1.xpose.msra.mxu0 0.0
    %1576 = vmatprep.subr.mxu0 0.0
    %1577 = vmatpush1.xpose.msra.mxu0 0.0
    %1578 = vmatprep.subr.mxu0 0.0
    %1579 = vmatpush1.xpose.msra.mxu0 0.0
    %1580 = vmatprep.subr.mxu0 0.0
    %1581 = vmatpush1.xpose.msra.mxu0 0.0
    %1582 = vmatprep.subr.mxu0 0.0
    %1583 = vmatpush1.xpose.msra.mxu0 0.0
    %1584 = vmatprep.mubr.f32.mxu0 0.0
    %1585 = vmatmul.mubr.f32.gmra.mrb[0].mxu0 %v1512
    %v1586 = vpop.f32.mrb[0].mxu0
    %v1587 = vadd.f32 %v159, %v1586
    %v1588 = vpop.f32.mrb[0].mxu0
    %1589 = vmatprep.mubr.f32.mxu0 0.0
    %1590 = vmatmul.mubr.f32.gmra.mrb[0].mxu0 %v1514
    %v1591 = vpop.f32.mrb[0].mxu0
    %v1592 = vadd.f32 %v160, %v1591
    %v1593 = vpop.f32.mrb[0].mxu0
    %1594 = vdwg.mxu0
    %1595 = vrot.lane.b32.xlu0 %v1497, 96
    %v1596 = vpop.permute.xlu0 %1595
    %1597 = vrot.lane.b32.xlu0 %v1499, 96
    %v1598 = vpop.permute.xlu0 %1597
    %v1599 = vsel %vm311, %v1497, 0
    %v1601 = vsel %vm311, %v1499, 0
    %v1603 = vsel %vm311, %v1596, 0
    %v1605 = vsel %vm311, %v1598, 0
    %1607 = vmatprep.subr.mxu0 0.0
    %1608 = vmatpush1.xpose.msra.mxu0 %v1603
    %1609 = vmatprep.subr.mxu0 0.0
    %1610 = vmatpush1.xpose.msra.mxu0 %v1605
    %1611 = vmatprep.subr.mxu0 0.0
    %1612 = vmatpush1.xpose.msra.mxu0 0.0
    %1613 = vmatprep.subr.mxu0 0.0
    %1614 = vmatpush1.xpose.msra.mxu0 0.0
    %1615 = vmatprep.subr.mxu0 0.0
    %1616 = vmatpush1.xpose.msra.mxu0 0.0
    %1617 = vmatprep.subr.mxu0 0.0
    %1618 = vmatpush1.xpose.msra.mxu0 0.0
    %1619 = vmatprep.subr.mxu0 0.0
    %1620 = vmatpush1.xpose.msra.mxu0 0.0
    %1621 = vmatprep.subr.mxu0 0.0
    %1622 = vmatpush1.xpose.msra.mxu0 0.0
    %1623 = vmatprep.subr.mxu0 0.0
    %1624 = vmatpush1.xpose.msra.mxu0 0.0
    %1625 = vmatprep.subr.mxu0 0.0
    %1626 = vmatpush1.xpose.msra.mxu0 0.0
    %1627 = vmatprep.subr.mxu0 0.0
    %1628 = vmatpush1.xpose.msra.mxu0 0.0
    %1629 = vmatprep.subr.mxu0 0.0
    %1630 = vmatpush1.xpose.msra.mxu0 0.0
    %1631 = vmatprep.subr.mxu0 0.0
    %1632 = vmatpush1.xpose.msra.mxu0 0.0
    %1633 = vmatprep.subr.mxu0 0.0
    %1634 = vmatpush1.xpose.msra.mxu0 0.0
    %1635 = vmatprep.subr.mxu0 0.0
    %1636 = vmatpush1.xpose.msra.mxu0 0.0
    %1637 = vmatprep.subr.mxu0 0.0
    %1638 = vmatpush1.xpose.msra.mxu0 0.0
    %1639 = vmatprep.subr.mxu0 0.0
    %1640 = vmatpush1.xpose.msra.mxu0 0.0
    %1641 = vmatprep.subr.mxu0 0.0
    %1642 = vmatpush1.xpose.msra.mxu0 0.0
    %1643 = vmatprep.subr.mxu0 0.0
    %1644 = vmatpush1.xpose.msra.mxu0 0.0
    %1645 = vmatprep.subr.mxu0 0.0
    %1646 = vmatpush1.xpose.msra.mxu0 0.0
    %1647 = vmatprep.subr.mxu0 0.0
    %1648 = vmatpush1.xpose.msra.mxu0 0.0
    %1649 = vmatprep.subr.mxu0 0.0
    %1650 = vmatpush1.xpose.msra.mxu0 0.0
    %1651 = vmatprep.subr.mxu0 0.0
    %1652 = vmatpush1.xpose.msra.mxu0 0.0
    %1653 = vmatprep.subr.mxu0 0.0
    %1654 = vmatpush1.xpose.msra.mxu0 0.0
    %1655 = vmatprep.subr.mxu0 0.0
    %1656 = vmatpush1.xpose.msra.mxu0 0.0
    %1657 = vmatprep.subr.mxu0 0.0
    %1658 = vmatpush1.xpose.msra.mxu0 0.0
    %1659 = vmatprep.subr.mxu0 0.0
    %1660 = vmatpush1.xpose.msra.mxu0 0.0
    %1661 = vmatprep.subr.mxu0 0.0
    %1662 = vmatpush1.xpose.msra.mxu0 0.0
    %1663 = vmatprep.subr.mxu0 0.0
    %1664 = vmatpush1.xpose.msra.mxu0 0.0
    %1665 = vmatprep.subr.mxu0 0.0
    %1666 = vmatpush1.xpose.msra.mxu0 0.0
    %1667 = vmatprep.subr.mxu0 0.0
    %1668 = vmatpush1.xpose.msra.mxu0 0.0
    %1669 = vmatprep.subr.mxu0 0.0
    %1670 = vmatpush1.xpose.msra.mxu0 0.0
    %1671 = vmatprep.mubr.f32.mxu0 0.0
    %1672 = vmatmul.mubr.f32.gmra.mrb[0].mxu0 %v1599
    %v1673 = vpop.f32.mrb[0].mxu0
    %v1674 = vadd.f32 %v159, %v1673
    %v1675 = vpop.f32.mrb[0].mxu0
    %1676 = vmatprep.mubr.f32.mxu0 0.0
    %1677 = vmatmul.mubr.f32.gmra.mrb[0].mxu0 %v1601
    %v1678 = vpop.f32.mrb[0].mxu0
    %v1679 = vadd.f32 %v160, %v1678
    %v1680 = vpop.f32.mrb[0].mxu0
    %1681 = vdwg.mxu0
    %1682 = vrot.lane.b32.xlu0 %v1501, 96
    %v1683 = vpop.permute.xlu0 %1682
    %1684 = vrot.lane.b32.xlu0 %v1503, 96
    %v1685 = vpop.permute.xlu0 %1684
    %v1686 = vsel %vm311, %v1501, 0
    %v1688 = vsel %vm311, %v1503, 0
    %v1690 = vsel %vm311, %v1683, 0
    %v1692 = vsel %vm311, %v1685, 0
    %1694 = vmatprep.subr.mxu0 0.0
    %1695 = vmatpush1.xpose.msra.mxu0 %v1690
    %1696 = vmatprep.subr.mxu0 0.0
    %1697 = vmatpush1.xpose.msra.mxu0 %v1692
    %1698 = vmatprep.subr.mxu0 0.0
    %1699 = vmatpush1.xpose.msra.mxu0 0.0
    %1700 = vmatprep.subr.mxu0 0.0
    %1701 = vmatpush1.xpose.msra.mxu0 0.0
    %1702 = vmatprep.subr.mxu0 0.0
    %1703 = vmatpush1.xpose.msra.mxu0 0.0
    %1704 = vmatprep.subr.mxu0 0.0
    %1705 = vmatpush1.xpose.msra.mxu0 0.0
    %1706 = vmatprep.subr.mxu0 0.0
    %1707 = vmatpush1.xpose.msra.mxu0 0.0
    %1708 = vmatprep.subr.mxu0 0.0
    %1709 = vmatpush1.xpose.msra.mxu0 0.0
    %1710 = vmatprep.subr.mxu0 0.0
    %1711 = vmatpush1.xpose.msra.mxu0 0.0
    %1712 = vmatprep.subr.mxu0 0.0
    %1713 = vmatpush1.xpose.msra.mxu0 0.0
    %1714 = vmatprep.subr.mxu0 0.0
    %1715 = vmatpush1.xpose.msra.mxu0 0.0
    %1716 = vmatprep.subr.mxu0 0.0
    %1717 = vmatpush1.xpose.msra.mxu0 0.0
    %1718 = vmatprep.subr.mxu0 0.0
    %1719 = vmatpush1.xpose.msra.mxu0 0.0
    %1720 = vmatprep.subr.mxu0 0.0
    %1721 = vmatpush1.xpose.msra.mxu0 0.0
    %1722 = vmatprep.subr.mxu0 0.0
    %1723 = vmatpush1.xpose.msra.mxu0 0.0
    %1724 = vmatprep.subr.mxu0 0.0
    %1725 = vmatpush1.xpose.msra.mxu0 0.0
    %1726 = vmatprep.subr.mxu0 0.0
    %1727 = vmatpush1.xpose.msra.mxu0 0.0
    %1728 = vmatprep.subr.mxu0 0.0
    %1729 = vmatpush1.xpose.msra.mxu0 0.0
    %1730 = vmatprep.subr.mxu0 0.0
    %1731 = vmatpush1.xpose.msra.mxu0 0.0
    %1732 = vmatprep.subr.mxu0 0.0
    %1733 = vmatpush1.xpose.msra.mxu0 0.0
    %1734 = vmatprep.subr.mxu0 0.0
    %1735 = vmatpush1.xpose.msra.mxu0 0.0
    %1736 = vmatprep.subr.mxu0 0.0
    %1737 = vmatpush1.xpose.msra.mxu0 0.0
    %1738 = vmatprep.subr.mxu0 0.0
    %1739 = vmatpush1.xpose.msra.mxu0 0.0
    %1740 = vmatprep.subr.mxu0 0.0
    %1741 = vmatpush1.xpose.msra.mxu0 0.0
    %1742 = vmatprep.subr.mxu0 0.0
    %1743 = vmatpush1.xpose.msra.mxu0 0.0
    %1744 = vmatprep.subr.mxu0 0.0
    %1745 = vmatpush1.xpose.msra.mxu0 0.0
    %1746 = vmatprep.subr.mxu0 0.0
    %1747 = vmatpush1.xpose.msra.mxu0 0.0
    %1748 = vmatprep.subr.mxu0 0.0
    %1749 = vmatpush1.xpose.msra.mxu0 0.0
    %1750 = vmatprep.subr.mxu0 0.0
    %1751 = vmatpush1.xpose.msra.mxu0 0.0
    %1752 = vmatprep.subr.mxu0 0.0
    %1753 = vmatpush1.xpose.msra.mxu0 0.0
    %1754 = vmatprep.subr.mxu0 0.0
    %1755 = vmatpush1.xpose.msra.mxu0 0.0
    %1756 = vmatprep.subr.mxu0 0.0
    %1757 = vmatpush1.xpose.msra.mxu0 0.0
    %1758 = vmatprep.mubr.f32.mxu0 0.0
    %1759 = vmatmul.mubr.f32.gmra.mrb[0].mxu0 %v1686
    %v1760 = vpop.f32.mrb[0].mxu0
    %v1761 = vadd.f32 %v159, %v1760
    %v1762 = vpop.f32.mrb[0].mxu0
    %1763 = vmatprep.mubr.f32.mxu0 0.0
    %1764 = vmatmul.mubr.f32.gmra.mrb[0].mxu0 %v1688
    %v1765 = vpop.f32.mrb[0].mxu0
    %v1766 = vadd.f32 %v160, %v1765
    %v1767 = vpop.f32.mrb[0].mxu0
    %1768 = vdwg.mxu0
    %1769 = vrot.lane.b32.xlu0 %v1505, 96
    %v1770 = vpop.permute.xlu0 %1769
    %1771 = vrot.lane.b32.xlu0 %v1507, 96
    %v1772 = vpop.permute.xlu0 %1771
    %v1773 = vsel %vm311, %v1505, 0
    %v1775 = vsel %vm311, %v1507, 0
    %v1777 = vsel %vm311, %v1770, 0
    %v1779 = vsel %vm311, %v1772, 0
    %1781 = vmatprep.subr.mxu0 0.0
    %1782 = vmatpush1.xpose.msra.mxu0 %v1777
    %1783 = vmatprep.subr.mxu0 0.0
    %1784 = vmatpush1.xpose.msra.mxu0 %v1779
    %1785 = vmatprep.subr.mxu0 0.0
    %1786 = vmatpush1.xpose.msra.mxu0 0.0
    %1787 = vmatprep.subr.mxu0 0.0
    %1788 = vmatpush1.xpose.msra.mxu0 0.0
    %1789 = vmatprep.subr.mxu0 0.0
    %1790 = vmatpush1.xpose.msra.mxu0 0.0
    %1791 = vmatprep.subr.mxu0 0.0
    %1792 = vmatpush1.xpose.msra.mxu0 0.0
    %1793 = vmatprep.subr.mxu0 0.0
    %1794 = vmatpush1.xpose.msra.mxu0 0.0
    %1795 = vmatprep.subr.mxu0 0.0
    %1796 = vmatpush1.xpose.msra.mxu0 0.0
    %1797 = vmatprep.subr.mxu0 0.0
    %1798 = vmatpush1.xpose.msra.mxu0 0.0
    %1799 = vmatprep.subr.mxu0 0.0
    %1800 = vmatpush1.xpose.msra.mxu0 0.0
    %1801 = vmatprep.subr.mxu0 0.0
    %1802 = vmatpush1.xpose.msra.mxu0 0.0
    %1803 = vmatprep.subr.mxu0 0.0
    %1804 = vmatpush1.xpose.msra.mxu0 0.0
    %1805 = vmatprep.subr.mxu0 0.0
    %1806 = vmatpush1.xpose.msra.mxu0 0.0
    %1807 = vmatprep.subr.mxu0 0.0
    %1808 = vmatpush1.xpose.msra.mxu0 0.0
    %1809 = vmatprep.subr.mxu0 0.0
    %1810 = vmatpush1.xpose.msra.mxu0 0.0
    %1811 = vmatprep.subr.mxu0 0.0
    %1812 = vmatpush1.xpose.msra.mxu0 0.0
    %1813 = vmatprep.subr.mxu0 0.0
    %1814 = vmatpush1.xpose.msra.mxu0 0.0
    %1815 = vmatprep.subr.mxu0 0.0
    %1816 = vmatpush1.xpose.msra.mxu0 0.0
    %1817 = vmatprep.subr.mxu0 0.0
    %1818 = vmatpush1.xpose.msra.mxu0 0.0
    %1819 = vmatprep.subr.mxu0 0.0
    %1820 = vmatpush1.xpose.msra.mxu0 0.0
    %1821 = vmatprep.subr.mxu0 0.0
    %1822 = vmatpush1.xpose.msra.mxu0 0.0
    %1823 = vmatprep.subr.mxu0 0.0
    %1824 = vmatpush1.xpose.msra.mxu0 0.0
    %1825 = vmatprep.subr.mxu0 0.0
    %1826 = vmatpush1.xpose.msra.mxu0 0.0
    %1827 = vmatprep.subr.mxu0 0.0
    %1828 = vmatpush1.xpose.msra.mxu0 0.0
    %1829 = vmatprep.subr.mxu0 0.0
    %1830 = vmatpush1.xpose.msra.mxu0 0.0
    %1831 = vmatprep.subr.mxu0 0.0
    %1832 = vmatpush1.xpose.msra.mxu0 0.0
    %1833 = vmatprep.subr.mxu0 0.0
    %1834 = vmatpush1.xpose.msra.mxu0 0.0
    %1835 = vmatprep.subr.mxu0 0.0
    %1836 = vmatpush1.xpose.msra.mxu0 0.0
    %1837 = vmatprep.subr.mxu0 0.0
    %1838 = vmatpush1.xpose.msra.mxu0 0.0
    %1839 = vmatprep.subr.mxu0 0.0
    %1840 = vmatpush1.xpose.msra.mxu0 0.0
    %1841 = vmatprep.subr.mxu0 0.0
    %1842 = vmatpush1.xpose.msra.mxu0 0.0
    %1843 = vmatprep.subr.mxu0 0.0
    %1844 = vmatpush1.xpose.msra.mxu0 0.0
    %1845 = vmatprep.mubr.f32.mxu0 0.0
    %1846 = vmatmul.mubr.f32.gmra.mrb[0].mxu0 %v1773
    %v1847 = vpop.f32.mrb[0].mxu0
    %v1848 = vadd.f32 %v159, %v1847
    %v1849 = vpop.f32.mrb[0].mxu0
    %1850 = vmatprep.mubr.f32.mxu0 0.0
    %1851 = vmatmul.mubr.f32.gmra.mrb[0].mxu0 %v1775
    %v1852 = vpop.f32.mrb[0].mxu0
    %v1853 = vadd.f32 %v160, %v1852
    %v1854 = vpop.f32.mrb[0].mxu0
    %1855 = vdwg.mxu0
    %v1856 = vsel %vm77, %v1587, -inf
    %1857 = vmax.xlane.f32.xlu0 %v1856
    %v1858 = vpop.xlane.xlu0 %1857
    %v1859 = vsel %vm77, %v1592, -inf
    %1860 = vmax.xlane.f32.xlu0 %v1859
    %v1861 = vpop.xlane.xlu0 %1860
    %v1862 = vsel %vm77, %v1674, -inf
    %1863 = vmax.xlane.f32.xlu0 %v1862
    %v1864 = vpop.xlane.xlu0 %1863
    %v1865 = vsel %vm77, %v1679, -inf
    %1866 = vmax.xlane.f32.xlu0 %v1865
    %v1867 = vpop.xlane.xlu0 %1866
    %v1868 = vsel %vm77, %v1761, -inf
    %1869 = vmax.xlane.f32.xlu0 %v1868
    %v1870 = vpop.xlane.xlu0 %1869
    %v1871 = vsel %vm77, %v1766, -inf
    %1872 = vmax.xlane.f32.xlu0 %v1871
    %v1873 = vpop.xlane.xlu0 %1872
    %v1874 = vsel %vm77, %v1848, -inf
    %1875 = vmax.xlane.f32.xlu0 %v1874
    %v1876 = vpop.xlane.xlu0 %1875
    %v1877 = vsel %vm77, %v1853, -inf
    %1878 = vmax.xlane.f32.xlu0 %v1877
    %v1879 = vpop.xlane.xlu0 %1878
    %v1880 = vsub.f32 %v1587, %v1858
    %v1881 = vsub.f32 %v1592, %v1861
    %v1882 = vsub.f32 %v1674, %v1864
    %v1883 = vsub.f32 %v1679, %v1867
    %v1884 = vsub.f32 %v1761, %v1870
    %v1885 = vsub.f32 %v1766, %v1873
    %v1886 = vsub.f32 %v1848, %v1876
    %v1887 = vsub.f32 %v1853, %v1879
    %v1888 = vmul.f32 %v1880, 1.442695
    %v1889 = vpow.pop %v1888
    %v1890 = vmul.f32 %v1881, 1.442695
    %v1891 = vpow.pop %v1890
    %v1892 = vmul.f32 %v1882, 1.442695
    %v1893 = vpow.pop %v1892
    %v1894 = vmul.f32 %v1883, 1.442695
    %v1895 = vpow.pop %v1894
    %v1896 = vmul.f32 %v1884, 1.442695
    %v1897 = vpow.pop %v1896
    %v1898 = vmul.f32 %v1885, 1.442695
    %v1899 = vpow.pop %v1898
    %v1900 = vmul.f32 %v1886, 1.442695
    %v1901 = vpow.pop %v1900
    %v1902 = vmul.f32 %v1887, 1.442695
    %v1903 = vpow.pop %v1902
    %v1904 = vsel %vm77, %v1889, 0.0
    %1905 = vadd.xlane.f32.xlu0 %v1904
    %v1906 = vpop.xlane.xlu0 %1905
    %v1907 = vsel %vm77, %v1891, 0.0
    %1908 = vadd.xlane.f32.xlu0 %v1907
    %v1909 = vpop.xlane.xlu0 %1908
    %v1910 = vsel %vm77, %v1893, 0.0
    %1911 = vadd.xlane.f32.xlu0 %v1910
    %v1912 = vpop.xlane.xlu0 %1911
    %v1913 = vsel %vm77, %v1895, 0.0
    %1914 = vadd.xlane.f32.xlu0 %v1913
    %v1915 = vpop.xlane.xlu0 %1914
    %v1916 = vsel %vm77, %v1897, 0.0
    %1917 = vadd.xlane.f32.xlu0 %v1916
    %v1918 = vpop.xlane.xlu0 %1917
    %v1919 = vsel %vm77, %v1899, 0.0
    %1920 = vadd.xlane.f32.xlu0 %v1919
    %v1921 = vpop.xlane.xlu0 %1920
    %v1922 = vsel %vm77, %v1901, 0.0
    %1923 = vadd.xlane.f32.xlu0 %v1922
    %v1924 = vpop.xlane.xlu0 %1923
    %v1925 = vsel %vm77, %v1903, 0.0
    %1926 = vadd.xlane.f32.xlu0 %v1925
    %v1927 = vpop.xlane.xlu0 %1926
    %v1928 = vrcp.pop %v1906
    %v1929 = vmul.f32 %v1889, %v1928
    %v1930 = vrcp.pop %v1909
    %v1931 = vmul.f32 %v1891, %v1930
    %v1932 = vrcp.pop %v1912
    %v1933 = vmul.f32 %v1893, %v1932
    %v1934 = vrcp.pop %v1915
    %v1935 = vmul.f32 %v1895, %v1934
    %v1936 = vrcp.pop %v1918
    %v1937 = vmul.f32 %v1897, %v1936
    %v1938 = vrcp.pop %v1921
    %v1939 = vmul.f32 %v1899, %v1938
    %v1940 = vrcp.pop %v1924
    %v1941 = vmul.f32 %v1901, %v1940
    %v1942 = vrcp.pop %v1927
    %v1943 = vmul.f32 %v1903, %v1942
    %1944 = vrot.lane.b32.xlu0 %v1486, 64
    %v1945 = vpop.permute.xlu0 %1944
    %1946 = vrot.lane.b32.xlu0 %v1491, 64
    %v1947 = vpop.permute.xlu0 %1946
    %v1951 = vsel %vm77, %v1929, 0
    %v1954 = vsel %vm77, %v1931, 0
    %1956 = vmatprep.subr.mxu0 0.0
    %1957 = vmatpush1.msra.mxu0 %v1945
    %1958 = vmatprep.subr.mxu0 0.0
    %1959 = vmatpush1.msra.mxu0 %v1947
    %1960 = vmatprep.subr.mxu0 0.0
    %1961 = vmatpush1.msra.mxu0 0.0
    %1962 = vmatprep.subr.mxu0 0.0
    %1963 = vmatpush1.msra.mxu0 0.0
    %1964 = vmatprep.subr.mxu0 0.0
    %1965 = vmatpush1.msra.mxu0 0.0
    %1966 = vmatprep.subr.mxu0 0.0
    %1967 = vmatpush1.msra.mxu0 0.0
    %1968 = vmatprep.subr.mxu0 0.0
    %1969 = vmatpush1.msra.mxu0 0.0
    %1970 = vmatprep.subr.mxu0 0.0
    %1971 = vmatpush1.msra.mxu0 0.0
    %1972 = vmatprep.subr.mxu0 0.0
    %1973 = vmatpush1.msra.mxu0 0.0
    %1974 = vmatprep.subr.mxu0 0.0
    %1975 = vmatpush1.msra.mxu0 0.0
    %1976 = vmatprep.subr.mxu0 0.0
    %1977 = vmatpush1.msra.mxu0 0.0
    %1978 = vmatprep.subr.mxu0 0.0
    %1979 = vmatpush1.msra.mxu0 0.0
    %1980 = vmatprep.subr.mxu0 0.0
    %1981 = vmatpush1.msra.mxu0 0.0
    %1982 = vmatprep.subr.mxu0 0.0
    %1983 = vmatpush1.msra.mxu0 0.0
    %1984 = vmatprep.subr.mxu0 0.0
    %1985 = vmatpush1.msra.mxu0 0.0
    %1986 = vmatprep.subr.mxu0 0.0
    %1987 = vmatpush1.msra.mxu0 0.0
    %1988 = vmatprep.subr.mxu0 0.0
    %1989 = vmatpush1.msra.mxu0 0.0
    %1990 = vmatprep.subr.mxu0 0.0
    %1991 = vmatpush1.msra.mxu0 0.0
    %1992 = vmatprep.subr.mxu0 0.0
    %1993 = vmatpush1.msra.mxu0 0.0
    %1994 = vmatprep.subr.mxu0 0.0
    %1995 = vmatpush1.msra.mxu0 0.0
    %1996 = vmatprep.subr.mxu0 0.0
    %1997 = vmatpush1.msra.mxu0 0.0
    %1998 = vmatprep.subr.mxu0 0.0
    %1999 = vmatpush1.msra.mxu0 0.0
    %2000 = vmatprep.subr.mxu0 0.0
    %2001 = vmatpush1.msra.mxu0 0.0
    %2002 = vmatprep.subr.mxu0 0.0
    %2003 = vmatpush1.msra.mxu0 0.0
    %2004 = vmatprep.subr.mxu0 0.0
    %2005 = vmatpush1.msra.mxu0 0.0
    %2006 = vmatprep.subr.mxu0 0.0
    %2007 = vmatpush1.msra.mxu0 0.0
    %2008 = vmatprep.subr.mxu0 0.0
    %2009 = vmatpush1.msra.mxu0 0.0
    %2010 = vmatprep.subr.mxu0 0.0
    %2011 = vmatpush1.msra.mxu0 0.0
    %2012 = vmatprep.subr.mxu0 0.0
    %2013 = vmatpush1.msra.mxu0 0.0
    %2014 = vmatprep.subr.mxu0 0.0
    %2015 = vmatpush1.msra.mxu0 0.0
    %2016 = vmatprep.subr.mxu0 0.0
    %2017 = vmatpush1.msra.mxu0 0.0
    %2018 = vmatprep.subr.mxu0 0.0
    %2019 = vmatpush1.msra.mxu0 0.0
    %2020 = vmatprep.mubr.f32.mxu0 0.0
    %2021 = vmatmul.mubr.f32.gmra.mrb[0].mxu0 %v1951
    %v2022 = vpop.f32.mrb[0].mxu0
    %v2023 = vadd.f32 0.0, %v2022
    %v2024 = vpop.f32.mrb[0].mxu0
    %2025 = vmatprep.mubr.f32.mxu0 0.0
    %2026 = vmatmul.mubr.f32.gmra.mrb[0].mxu0 %v1954
    %v2027 = vpop.f32.mrb[0].mxu0
    %v2028 = vadd.f32 0.0, %v2027
    %v2029 = vpop.f32.mrb[0].mxu0
    %2030 = vdwg.mxu0
    %2031 = vrot.lane.b32.xlu0 %v1497, 64
    %v2032 = vpop.permute.xlu0 %2031
    %2033 = vrot.lane.b32.xlu0 %v1499, 64
    %v2034 = vpop.permute.xlu0 %2033
    %v2038 = vsel %vm77, %v1933, 0
    %v2041 = vsel %vm77, %v1935, 0
    %2043 = vmatprep.subr.mxu0 0.0
    %2044 = vmatpush1.msra.mxu0 %v2032
    %2045 = vmatprep.subr.mxu0 0.0
    %2046 = vmatpush1.msra.mxu0 %v2034
    %2047 = vmatprep.subr.mxu0 0.0
    %2048 = vmatpush1.msra.mxu0 0.0
    %2049 = vmatprep.subr.mxu0 0.0
    %2050 = vmatpush1.msra.mxu0 0.0
    %2051 = vmatprep.subr.mxu0 0.0
    %2052 = vmatpush1.msra.mxu0 0.0
    %2053 = vmatprep.subr.mxu0 0.0
    %2054 = vmatpush1.msra.mxu0 0.0
    %2055 = vmatprep.subr.mxu0 0.0
    %2056 = vmatpush1.msra.mxu0 0.0
    %2057 = vmatprep.subr.mxu0 0.0
    %2058 = vmatpush1.msra.mxu0 0.0
    %2059 = vmatprep.subr.mxu0 0.0
    %2060 = vmatpush1.msra.mxu0 0.0
    %2061 = vmatprep.subr.mxu0 0.0
    %2062 = vmatpush1.msra.mxu0 0.0
    %2063 = vmatprep.subr.mxu0 0.0
    %2064 = vmatpush1.msra.mxu0 0.0
    %2065 = vmatprep.subr.mxu0 0.0
    %2066 = vmatpush1.msra.mxu0 0.0
    %2067 = vmatprep.subr.mxu0 0.0
    %2068 = vmatpush1.msra.mxu0 0.0
    %2069 = vmatprep.subr.mxu0 0.0
    %2070 = vmatpush1.msra.mxu0 0.0
    %2071 = vmatprep.subr.mxu0 0.0
    %2072 = vmatpush1.msra.mxu0 0.0
    %2073 = vmatprep.subr.mxu0 0.0
    %2074 = vmatpush1.msra.mxu0 0.0
    %2075 = vmatprep.subr.mxu0 0.0
    %2076 = vmatpush1.msra.mxu0 0.0
    %2077 = vmatprep.subr.mxu0 0.0
    %2078 = vmatpush1.msra.mxu0 0.0
    %2079 = vmatprep.subr.mxu0 0.0
    %2080 = vmatpush1.msra.mxu0 0.0
    %2081 = vmatprep.subr.mxu0 0.0
    %2082 = vmatpush1.msra.mxu0 0.0
    %2083 = vmatprep.subr.mxu0 0.0
    %2084 = vmatpush1.msra.mxu0 0.0
    %2085 = vmatprep.subr.mxu0 0.0
    %2086 = vmatpush1.msra.mxu0 0.0
    %2087 = vmatprep.subr.mxu0 0.0
    %2088 = vmatpush1.msra.mxu0 0.0
    %2089 = vmatprep.subr.mxu0 0.0
    %2090 = vmatpush1.msra.mxu0 0.0
    %2091 = vmatprep.subr.mxu0 0.0
    %2092 = vmatpush1.msra.mxu0 0.0
    %2093 = vmatprep.subr.mxu0 0.0
    %2094 = vmatpush1.msra.mxu0 0.0
    %2095 = vmatprep.subr.mxu0 0.0
    %2096 = vmatpush1.msra.mxu0 0.0
    %2097 = vmatprep.subr.mxu0 0.0
    %2098 = vmatpush1.msra.mxu0 0.0
    %2099 = vmatprep.subr.mxu0 0.0
    %2100 = vmatpush1.msra.mxu0 0.0
    %2101 = vmatprep.subr.mxu0 0.0
    %2102 = vmatpush1.msra.mxu0 0.0
    %2103 = vmatprep.subr.mxu0 0.0
    %2104 = vmatpush1.msra.mxu0 0.0
    %2105 = vmatprep.subr.mxu0 0.0
    %2106 = vmatpush1.msra.mxu0 0.0
    %2107 = vmatprep.mubr.f32.mxu0 0.0
    %2108 = vmatmul.mubr.f32.gmra.mrb[0].mxu0 %v2038
    %v2109 = vpop.f32.mrb[0].mxu0
    %v2110 = vadd.f32 0.0, %v2109
    %v2111 = vpop.f32.mrb[0].mxu0
    %2112 = vmatprep.mubr.f32.mxu0 0.0
    %2113 = vmatmul.mubr.f32.gmra.mrb[0].mxu0 %v2041
    %v2114 = vpop.f32.mrb[0].mxu0
    %v2115 = vadd.f32 0.0, %v2114
    %v2116 = vpop.f32.mrb[0].mxu0
    %2117 = vdwg.mxu0
    %2118 = vrot.lane.b32.xlu0 %v1501, 64
    %v2119 = vpop.permute.xlu0 %2118
    %2120 = vrot.lane.b32.xlu0 %v1503, 64
    %v2121 = vpop.permute.xlu0 %2120
    %v2125 = vsel %vm77, %v1937, 0
    %v2128 = vsel %vm77, %v1939, 0
    %2130 = vmatprep.subr.mxu0 0.0
    %2131 = vmatpush1.msra.mxu0 %v2119
    %2132 = vmatprep.subr.mxu0 0.0
    %2133 = vmatpush1.msra.mxu0 %v2121
    %2134 = vmatprep.subr.mxu0 0.0
    %2135 = vmatpush1.msra.mxu0 0.0
    %2136 = vmatprep.subr.mxu0 0.0
    %2137 = vmatpush1.msra.mxu0 0.0
    %2138 = vmatprep.subr.mxu0 0.0
    %2139 = vmatpush1.msra.mxu0 0.0
    %2140 = vmatprep.subr.mxu0 0.0
    %2141 = vmatpush1.msra.mxu0 0.0
    %2142 = vmatprep.subr.mxu0 0.0
    %2143 = vmatpush1.msra.mxu0 0.0
    %2144 = vmatprep.subr.mxu0 0.0
    %2145 = vmatpush1.msra.mxu0 0.0
    %2146 = vmatprep.subr.mxu0 0.0
    %2147 = vmatpush1.msra.mxu0 0.0
    %2148 = vmatprep.subr.mxu0 0.0
    %2149 = vmatpush1.msra.mxu0 0.0
    %2150 = vmatprep.subr.mxu0 0.0
    %2151 = vmatpush1.msra.mxu0 0.0
    %2152 = vmatprep.subr.mxu0 0.0
    %2153 = vmatpush1.msra.mxu0 0.0
    %2154 = vmatprep.subr.mxu0 0.0
    %2155 = vmatpush1.msra.mxu0 0.0
    %2156 = vmatprep.subr.mxu0 0.0
    %2157 = vmatpush1.msra.mxu0 0.0
    %2158 = vmatprep.subr.mxu0 0.0
    %2159 = vmatpush1.msra.mxu0 0.0
    %2160 = vmatprep.subr.mxu0 0.0
    %2161 = vmatpush1.msra.mxu0 0.0
    %2162 = vmatprep.subr.mxu0 0.0
    %2163 = vmatpush1.msra.mxu0 0.0
    %2164 = vmatprep.subr.mxu0 0.0
    %2165 = vmatpush1.msra.mxu0 0.0
    %2166 = vmatprep.subr.mxu0 0.0
    %2167 = vmatpush1.msra.mxu0 0.0
    %2168 = vmatprep.subr.mxu0 0.0
    %2169 = vmatpush1.msra.mxu0 0.0
    %2170 = vmatprep.subr.mxu0 0.0
    %2171 = vmatpush1.msra.mxu0 0.0
    %2172 = vmatprep.subr.mxu0 0.0
    %2173 = vmatpush1.msra.mxu0 0.0
    %2174 = vmatprep.subr.mxu0 0.0
    %2175 = vmatpush1.msra.mxu0 0.0
    %2176 = vmatprep.subr.mxu0 0.0
    %2177 = vmatpush1.msra.mxu0 0.0
    %2178 = vmatprep.subr.mxu0 0.0
    %2179 = vmatpush1.msra.mxu0 0.0
    %2180 = vmatprep.subr.mxu0 0.0
    %2181 = vmatpush1.msra.mxu0 0.0
    %2182 = vmatprep.subr.mxu0 0.0
    %2183 = vmatpush1.msra.mxu0 0.0
    %2184 = vmatprep.subr.mxu0 0.0
    %2185 = vmatpush1.msra.mxu0 0.0
    %2186 = vmatprep.subr.mxu0 0.0
    %2187 = vmatpush1.msra.mxu0 0.0
    %2188 = vmatprep.subr.mxu0 0.0
    %2189 = vmatpush1.msra.mxu0 0.0
    %2190 = vmatprep.subr.mxu0 0.0
    %2191 = vmatpush1.msra.mxu0 0.0
    %2192 = vmatprep.subr.mxu0 0.0
    %2193 = vmatpush1.msra.mxu0 0.0
    %2194 = vmatprep.mubr.f32.mxu0 0.0
    %2195 = vmatmul.mubr.f32.gmra.mrb[0].mxu0 %v2125
    %v2196 = vpop.f32.mrb[0].mxu0
    %v2197 = vadd.f32 0.0, %v2196
    %v2198 = vpop.f32.mrb[0].mxu0
    %2199 = vmatprep.mubr.f32.mxu0 0.0
    %2200 = vmatmul.mubr.f32.gmra.mrb[0].mxu0 %v2128
    %v2201 = vpop.f32.mrb[0].mxu0
    %v2202 = vadd.f32 0.0, %v2201
    %v2203 = vpop.f32.mrb[0].mxu0
    %2204 = vdwg.mxu0
    %2205 = vrot.lane.b32.xlu0 %v1505, 64
    %v2206 = vpop.permute.xlu0 %2205
    %2207 = vrot.lane.b32.xlu0 %v1507, 64
    %v2208 = vpop.permute.xlu0 %2207
    %v2212 = vsel %vm77, %v1941, 0
    %v2215 = vsel %vm77, %v1943, 0
    %2217 = vmatprep.subr.mxu0 0.0
    %2218 = vmatpush1.msra.mxu0 %v2206
    %2219 = vmatprep.subr.mxu0 0.0
    %2220 = vmatpush1.msra.mxu0 %v2208
    %2221 = vmatprep.subr.mxu0 0.0
    %2222 = vmatpush1.msra.mxu0 0.0
    %2223 = vmatprep.subr.mxu0 0.0
    %2224 = vmatpush1.msra.mxu0 0.0
    %2225 = vmatprep.subr.mxu0 0.0
    %2226 = vmatpush1.msra.mxu0 0.0
    %2227 = vmatprep.subr.mxu0 0.0
    %2228 = vmatpush1.msra.mxu0 0.0
    %2229 = vmatprep.subr.mxu0 0.0
    %2230 = vmatpush1.msra.mxu0 0.0
    %2231 = vmatprep.subr.mxu0 0.0
    %2232 = vmatpush1.msra.mxu0 0.0
    %2233 = vmatprep.subr.mxu0 0.0
    %2234 = vmatpush1.msra.mxu0 0.0
    %2235 = vmatprep.subr.mxu0 0.0
    %2236 = vmatpush1.msra.mxu0 0.0
    %2237 = vmatprep.subr.mxu0 0.0
    %2238 = vmatpush1.msra.mxu0 0.0
    %2239 = vmatprep.subr.mxu0 0.0
    %2240 = vmatpush1.msra.mxu0 0.0
    %2241 = vmatprep.subr.mxu0 0.0
    %2242 = vmatpush1.msra.mxu0 0.0
    %2243 = vmatprep.subr.mxu0 0.0
    %2244 = vmatpush1.msra.mxu0 0.0
    %2245 = vmatprep.subr.mxu0 0.0
    %2246 = vmatpush1.msra.mxu0 0.0
    %2247 = vmatprep.subr.mxu0 0.0
    %2248 = vmatpush1.msra.mxu0 0.0
    %2249 = vmatprep.subr.mxu0 0.0
    %2250 = vmatpush1.msra.mxu0 0.0
    %2251 = vmatprep.subr.mxu0 0.0
    %2252 = vmatpush1.msra.mxu0 0.0
    %2253 = vmatprep.subr.mxu0 0.0
    %2254 = vmatpush1.msra.mxu0 0.0
    %2255 = vmatprep.subr.mxu0 0.0
    %2256 = vmatpush1.msra.mxu0 0.0
    %2257 = vmatprep.subr.mxu0 0.0
    %2258 = vmatpush1.msra.mxu0 0.0
    %2259 = vmatprep.subr.mxu0 0.0
    %2260 = vmatpush1.msra.mxu0 0.0
    %2261 = vmatprep.subr.mxu0 0.0
    %2262 = vmatpush1.msra.mxu0 0.0
    %2263 = vmatprep.subr.mxu0 0.0
    %2264 = vmatpush1.msra.mxu0 0.0
    %2265 = vmatprep.subr.mxu0 0.0
    %2266 = vmatpush1.msra.mxu0 0.0
    %2267 = vmatprep.subr.mxu0 0.0
    %2268 = vmatpush1.msra.mxu0 0.0
    %2269 = vmatprep.subr.mxu0 0.0
    %2270 = vmatpush1.msra.mxu0 0.0
    %2271 = vmatprep.subr.mxu0 0.0
    %2272 = vmatpush1.msra.mxu0 0.0
    %2273 = vmatprep.subr.mxu0 0.0
    %2274 = vmatpush1.msra.mxu0 0.0
    %2275 = vmatprep.subr.mxu0 0.0
    %2276 = vmatpush1.msra.mxu0 0.0
    %2277 = vmatprep.subr.mxu0 0.0
    %2278 = vmatpush1.msra.mxu0 0.0
    %2279 = vmatprep.subr.mxu0 0.0
    %2280 = vmatpush1.msra.mxu0 0.0
    %2281 = vmatprep.mubr.f32.mxu0 0.0
    %2282 = vmatmul.mubr.f32.gmra.mrb[0].mxu0 %v2212
    %v2283 = vpop.f32.mrb[0].mxu0
    %v2284 = vadd.f32 0.0, %v2283
    %v2285 = vpop.f32.mrb[0].mxu0
    %2286 = vmatprep.mubr.f32.mxu0 0.0
    %2287 = vmatmul.mubr.f32.gmra.mrb[0].mxu0 %v2215
    %v2288 = vpop.f32.mrb[0].mxu0
    %v2289 = vadd.f32 0.0, %v2288
    %v2290 = vpop.f32.mrb[0].mxu0
    %2291 = vdwg.mxu0
    %2294 = vrot.lane.b32.xlu0 %v2110, 8
    %v2295 = vpop.permute.xlu0 %2294
    %2296 = vrot.lane.b32.xlu0 %v2115, 8
    %v2297 = vpop.permute.xlu0 %2296
    %2302 = vrot.lane.b32.xlu0 %v2197, 16
    %v2303 = vpop.permute.xlu0 %2302
    %2304 = vrot.lane.b32.xlu0 %v2202, 16
    %v2305 = vpop.permute.xlu0 %2304
    %2310 = vrot.lane.b32.xlu0 %v2284, 24
    %v2311 = vpop.permute.xlu0 %2310
    %2312 = vrot.lane.b32.xlu0 %v2289, 24
    %v2313 = vpop.permute.xlu0 %2312
    %v2316 = vsel %vm311, %v2023, %v2295
    %v2317 = vsel %vm311, %v2028, %v2297
    %v2318 = vsel %vm77, %v2316, %v2303
    %v2319 = vsel %vm77, %v2317, %v2305
    %v2320 = vsel %vm1120, %v2318, %v2311
    %v2321 = vsel %vm1120, %v2319, %v2313
    %v2322 = vadd.f32 %v1361, %v2320
    %v2323 = vadd.f32 %v1362, %v2321
    %v2324 = vld [vmem:[%s8 + $0x1] sm:$0x1]
    %v2325 = vld [vmem:[%s9 + $0x1] sm:$0x1]
    %v2326 = vsel %vm163, %v2322, 0.0
    %2327 = vadd.xlane.f32.xlu0 %v2326
    %v2328 = vpop.xlane.xlu0 %2327
    %v2329 = vsel %vm163, %v2323, 0.0
    %2330 = vadd.xlane.f32.xlu0 %v2329
    %v2331 = vpop.xlane.xlu0 %2330
    %v2332 = vmul.f32 %v2328, %v170
    %v2333 = vmul.f32 %v2331, %v170
    %v2334 = vsub.f32 %v2322, %v2332
    %v2335 = vsub.f32 %v2323, %v2333
    %v2336 = vmul.f32 %v2334, %v2334
    %v2337 = vmul.f32 %v2335, %v2335
    %v2338 = vsel %vm163, %v2336, 0.0
    %2339 = vadd.xlane.f32.xlu0 %v2338
    %v2340 = vpop.xlane.xlu0 %2339
    %v2341 = vsel %vm163, %v2337, 0.0
    %2342 = vadd.xlane.f32.xlu0 %v2341
    %v2343 = vpop.xlane.xlu0 %2342
    %v2344 = vmul.f32 %v2340, %v170
    %v2345 = vmul.f32 %v2343, %v170
    %v2346 = vadd.f32 %v2344, 1e-05
    %v2347 = vadd.f32 %v2345, 1e-05
    %v2348 = vrsqrt.pop %v2346
    %v2349 = vrsqrt.pop %v2347
    %v2350 = vmul.f32 %v2334, %v2348
    %v2351 = vmul.f32 %v2335, %v2349
    %v2352 = vlaneseq
    %v2353 = vshrl.u32 %v2352, 7
    %v2354 = vsub.s32 0, %v2353
    %v2355 = vrot.slane %v2324, %v2354
    %v2356 = vmul.f32 %v2350, %v2355
    %v2357 = vmul.f32 %v2351, %v2355
    %v2358 = vlaneseq
    %v2359 = vshrl.u32 %v2358, 7
    %v2360 = vsub.s32 0, %v2359
    %v2361 = vrot.slane %v2325, %v2360
    %v2362 = vadd.f32 %v2356, %v2361
    %v2363 = vadd.f32 %v2357, %v2361
    %s2364 = scalar_lea.vmem %s10, 32
    %v2365 = vld [vmem:[%s2364] sm:$0xff]
    %v2366 = vld [vmem:[%s2364 + $0x8] sm:$0xff]
    %v2367 = vld [vmem:[%s2364 + $0x10] sm:$0xff]
    %v2368 = vld [vmem:[%s2364 + $0x18] sm:$0xff]
    %v2369 = vld [vmem:[%s11 + $0x1] sm:$0x1]
    %v2370 = vlaneseq
    %v2371 = vshrl.u32 %v2370, 7
    %v2372 = vsub.s32 0, %v2371
    %v2373 = vrot.slane %v2369, %v2372
    %v2375 = vsel %vm163, %v2362, 0
    %v2378 = vsel %vm163, %v2363, 0
    %2380 = vmatprep.subr.mxu0 0.0
    %2381 = vmatpush1.msra.mxu0 %v2365
    %2382 = vmatprep.subr.mxu0 0.0
    %2383 = vmatpush1.msra.mxu0 %v2366
    %2384 = vmatprep.subr.mxu0 0.0
    %2385 = vmatpush1.msra.mxu0 %v2367
    %2386 = vmatprep.subr.mxu0 0.0
    %2387 = vmatpush1.msra.mxu0 %v2368
    %2388 = vmatprep.subr.mxu0 0.0
    %2389 = vmatpush1.msra.mxu0 0.0
    %2390 = vmatprep.subr.mxu0 0.0
    %2391 = vmatpush1.msra.mxu0 0.0
    %2392 = vmatprep.subr.mxu0 0.0
    %2393 = vmatpush1.msra.mxu0 0.0
    %2394 = vmatprep.subr.mxu0 0.0
    %2395 = vmatpush1.msra.mxu0 0.0
    %2396 = vmatprep.subr.mxu0 0.0
    %2397 = vmatpush1.msra.mxu0 0.0
    %2398 = vmatprep.subr.mxu0 0.0
    %2399 = vmatpush1.msra.mxu0 0.0
    %2400 = vmatprep.subr.mxu0 0.0
    %2401 = vmatpush1.msra.mxu0 0.0
    %2402 = vmatprep.subr.mxu0 0.0
    %2403 = vmatpush1.msra.mxu0 0.0
    %2404 = vmatprep.subr.mxu0 0.0
    %2405 = vmatpush1.msra.mxu0 0.0
    %2406 = vmatprep.subr.mxu0 0.0
    %2407 = vmatpush1.msra.mxu0 0.0
    %2408 = vmatprep.subr.mxu0 0.0
    %2409 = vmatpush1.msra.mxu0 0.0
    %2410 = vmatprep.subr.mxu0 0.0
    %2411 = vmatpush1.msra.mxu0 0.0
    %2412 = vmatprep.subr.mxu0 0.0
    %2413 = vmatpush1.msra.mxu0 0.0
    %2414 = vmatprep.subr.mxu0 0.0
    %2415 = vmatpush1.msra.mxu0 0.0
    %2416 = vmatprep.subr.mxu0 0.0
    %2417 = vmatpush1.msra.mxu0 0.0
    %2418 = vmatprep.subr.mxu0 0.0
    %2419 = vmatpush1.msra.mxu0 0.0
    %2420 = vmatprep.subr.mxu0 0.0
    %2421 = vmatpush1.msra.mxu0 0.0
    %2422 = vmatprep.subr.mxu0 0.0
    %2423 = vmatpush1.msra.mxu0 0.0
    %2424 = vmatprep.subr.mxu0 0.0
    %2425 = vmatpush1.msra.mxu0 0.0
    %2426 = vmatprep.subr.mxu0 0.0
    %2427 = vmatpush1.msra.mxu0 0.0
    %2428 = vmatprep.subr.mxu0 0.0
    %2429 = vmatpush1.msra.mxu0 0.0
    %2430 = vmatprep.subr.mxu0 0.0
    %2431 = vmatpush1.msra.mxu0 0.0
    %2432 = vmatprep.subr.mxu0 0.0
    %2433 = vmatpush1.msra.mxu0 0.0
    %2434 = vmatprep.subr.mxu0 0.0
    %2435 = vmatpush1.msra.mxu0 0.0
    %2436 = vmatprep.subr.mxu0 0.0
    %2437 = vmatpush1.msra.mxu0 0.0
    %2438 = vmatprep.subr.mxu0 0.0
    %2439 = vmatpush1.msra.mxu0 0.0
    %2440 = vmatprep.subr.mxu0 0.0
    %2441 = vmatpush1.msra.mxu0 0.0
    %2442 = vmatprep.subr.mxu0 0.0
    %2443 = vmatpush1.msra.mxu0 0.0
    %2444 = vmatprep.mubr.f32.mxu0 0.0
    %2445 = vmatmul.mubr.f32.gmra.mrb[0].mxu0 %v2375
    %v2446 = vpop.f32.mrb[0].mxu0
    %v2447 = vadd.f32 %v2373, %v2446
    %v2448 = vpop.f32.mrb[0].mxu0
    %2449 = vmatprep.mubr.f32.mxu0 0.0
    %2450 = vmatmul.mubr.f32.gmra.mrb[0].mxu0 %v2378
    %v2451 = vpop.f32.mrb[0].mxu0
    %v2452 = vadd.f32 %v2373, %v2451
    %v2453 = vpop.f32.mrb[0].mxu0
    %2454 = vdwg.mxu0
    %v2455 = vmul.f32 %v2447, 0.5
    %v2456 = vmul.f32 %v2452, 0.5
    %v2457 = vmul.f32 %v2447, 0.70710677
    %v2458 = vmul.f32 %v2452, 0.70710677
    %v2459 = verf.f32.pop %v2457
    %v2460 = verf.f32.pop %v2458
    %v2461 = vadd.f32 %v2459, 1.0
    %v2462 = vadd.f32 %v2460, 1.0
    %v2463 = vmul.f32 %v2455, %v2461
    %v2464 = vmul.f32 %v2456, %v2462
    %s2465 = scalar_lea.vmem %s12, 128
    %v2466 = vld [vmem:[%s2465] sm:$0xff]
    %v2467 = vld [vmem:[%s2465 + $0x8] sm:$0xff]
    %v2468 = vld [vmem:[%s2465 + $0x10] sm:$0xff]
    %v2469 = vld [vmem:[%s2465 + $0x18] sm:$0xff]
    %v2470 = vld [vmem:[%s2465 + $0x20] sm:$0xff]
    %v2471 = vld [vmem:[%s2465 + $0x28] sm:$0xff]
    %v2472 = vld [vmem:[%s2465 + $0x30] sm:$0xff]
    %v2473 = vld [vmem:[%s2465 + $0x38] sm:$0xff]
    %v2474 = vld [vmem:[%s2465 + $0x40] sm:$0xff]
    %v2475 = vld [vmem:[%s2465 + $0x48] sm:$0xff]
    %v2476 = vld [vmem:[%s2465 + $0x50] sm:$0xff]
    %v2477 = vld [vmem:[%s2465 + $0x58] sm:$0xff]
    %v2478 = vld [vmem:[%s2465 + $0x60] sm:$0xff]
    %v2479 = vld [vmem:[%s2465 + $0x68] sm:$0xff]
    %v2480 = vld [vmem:[%s2465 + $0x70] sm:$0xff]
    %v2481 = vld [vmem:[%s2465 + $0x78] sm:$0xff]
    %v2482 = vld [vmem:[%s13 + $0x1] sm:$0x1]
    %v2483 = vlaneseq
    %v2484 = vshrl.u32 %v2483, 7
    %v2485 = vsub.s32 0, %v2484
    %v2486 = vrot.slane %v2482, %v2485
    %2487 = vmatprep.subr.mxu0 0.0
    %2488 = vmatpush1.msra.mxu0 %v2466
    %2489 = vmatprep.subr.mxu0 0.0
    %2490 = vmatpush1.msra.mxu0 %v2467
    %2491 = vmatprep.subr.mxu0 0.0
    %2492 = vmatpush1.msra.mxu0 %v2468
    %2493 = vmatprep.subr.mxu0 0.0
    %2494 = vmatpush1.msra.mxu0 %v2469
    %2495 = vmatprep.subr.mxu0 0.0
    %2496 = vmatpush1.msra.mxu0 %v2470
    %2497 = vmatprep.subr.mxu0 0.0
    %2498 = vmatpush1.msra.mxu0 %v2471
    %2499 = vmatprep.subr.mxu0 0.0
    %2500 = vmatpush1.msra.mxu0 %v2472
    %2501 = vmatprep.subr.mxu0 0.0
    %2502 = vmatpush1.msra.mxu0 %v2473
    %2503 = vmatprep.subr.mxu0 0.0
    %2504 = vmatpush1.msra.mxu0 %v2474
    %2505 = vmatprep.subr.mxu0 0.0
    %2506 = vmatpush1.msra.mxu0 %v2475
    %2507 = vmatprep.subr.mxu0 0.0
    %2508 = vmatpush1.msra.mxu0 %v2476
    %2509 = vmatprep.subr.mxu0 0.0
    %2510 = vmatpush1.msra.mxu0 %v2477
    %2511 = vmatprep.subr.mxu0 0.0
    %2512 = vmatpush1.msra.mxu0 %v2478
    %2513 = vmatprep.subr.mxu0 0.0
    %2514 = vmatpush1.msra.mxu0 %v2479
    %2515 = vmatprep.subr.mxu0 0.0
    %2516 = vmatpush1.msra.mxu0 %v2480
    %2517 = vmatprep.subr.mxu0 0.0
    %2518 = vmatpush1.msra.mxu0 %v2481
    %2519 = vmatprep.subr.mxu0 0.0
    %2520 = vmatpush1.msra.mxu0 0.0
    %2521 = vmatprep.subr.mxu0 0.0
    %2522 = vmatpush1.msra.mxu0 0.0
    %2523 = vmatprep.subr.mxu0 0.0
    %2524 = vmatpush1.msra.mxu0 0.0
    %2525 = vmatprep.subr.mxu0 0.0
    %2526 = vmatpush1.msra.mxu0 0.0
    %2527 = vmatprep.subr.mxu0 0.0
    %2528 = vmatpush1.msra.mxu0 0.0
    %2529 = vmatprep.subr.mxu0 0.0
    %2530 = vmatpush1.msra.mxu0 0.0
    %2531 = vmatprep.subr.mxu0 0.0
    %2532 = vmatpush1.msra.mxu0 0.0
    %2533 = vmatprep.subr.mxu0 0.0
    %2534 = vmatpush1.msra.mxu0 0.0
    %2535 = vmatprep.subr.mxu0 0.0
    %2536 = vmatpush1.msra.mxu0 0.0
    %2537 = vmatprep.subr.mxu0 0.0
    %2538 = vmatpush1.msra.mxu0 0.0
    %2539 = vmatprep.subr.mxu0 0.0
    %2540 = vmatpush1.msra.mxu0 0.0
    %2541 = vmatprep.subr.mxu0 0.0
    %2542 = vmatpush1.msra.mxu0 0.0
    %2543 = vmatprep.subr.mxu0 0.0
    %2544 = vmatpush1.msra.mxu0 0.0
    %2545 = vmatprep.subr.mxu0 0.0
    %2546 = vmatpush1.msra.mxu0 0.0
    %2547 = vmatprep.subr.mxu0 0.0
    %2548 = vmatpush1.msra.mxu0 0.0
    %2549 = vmatprep.subr.mxu0 0.0
    %2550 = vmatpush1.msra.mxu0 0.0
    %2551 = vmatprep.mubr.f32.mxu0 0.0
    %2552 = vmatmul.mubr.f32.gmra.mrb[0].mxu0 %v2463
    %v2553 = vpop.f32.mrb[0].mxu0
    %v2554 = vadd.f32 %v2486, %v2553
    %v2555 = vpop.f32.mrb[0].mxu0
    %2556 = vmatprep.mubr.f32.mxu0 0.0
    %2557 = vmatmul.mubr.f32.gmra.mrb[0].mxu0 %v2464
    %v2558 = vpop.f32.mrb[0].mxu0
    %v2559 = vadd.f32 %v2486, %v2558
    %v2560 = vpop.f32.mrb[0].mxu0
    %2561 = vdwg.mxu0
    %v2562 = vadd.f32 %v2322, %v2554
    %v2563 = vadd.f32 %v2323, %v2559
    %v2564 = vld [vmem:[%s14] sm:$0x1]
    %v2565 = vld [vmem:[%s15] sm:$0x1]
    %v2566 = vsel %vm163, %v2562, 0.0
    %2567 = vadd.xlane.f32.xlu0 %v2566
    %v2568 = vpop.xlane.xlu0 %2567
    %v2569 = vsel %vm163, %v2563, 0.0
    %2570 = vadd.xlane.f32.xlu0 %v2569
    %v2571 = vpop.xlane.xlu0 %2570
    %v2572 = vmul.f32 %v2568, %v170
    %v2573 = vmul.f32 %v2571, %v170
    %v2574 = vsub.f32 %v2562, %v2572
    %v2575 = vsub.f32 %v2563, %v2573
    %v2576 = vmul.f32 %v2574, %v2574
    %v2577 = vmul.f32 %v2575, %v2575
    %v2578 = vsel %vm163, %v2576, 0.0
    %2579 = vadd.xlane.f32.xlu0 %v2578
    %v2580 = vpop.xlane.xlu0 %2579
    %v2581 = vsel %vm163, %v2577, 0.0
    %2582 = vadd.xlane.f32.xlu0 %v2581
    %v2583 = vpop.xlane.xlu0 %2582
    %v2584 = vmul.f32 %v2580, %v170
    %v2585 = vmul.f32 %v2583, %v170
    %v2586 = vadd.f32 %v2584, 1e-05
    %v2587 = vadd.f32 %v2585, 1e-05
    %v2588 = vrsqrt.pop %v2586
    %v2589 = vrsqrt.pop %v2587
    %v2590 = vmul.f32 %v2574, %v2588
    %v2591 = vmul.f32 %v2575, %v2589
    %v2593 = vlaneseq
    %v2594 = vshrl.u32 %v2593, 7
    %v2595 = vsub.s32 0, %v2594
    %v2596 = vrot.slane %v2564, %v2595
    %v2598 = vmul.f32 %v2590, %v2596
    %v2599 = vmul.f32 %v2591, %v2596
    %v2601 = vlaneseq
    %v2602 = vshrl.u32 %v2601, 7
    %v2603 = vsub.s32 0, %v2602
    %v2604 = vrot.slane %v2565, %v2603
    %v2606 = vadd.f32 %v2598, %v2604
    %v2607 = vadd.f32 %v2599, %v2604
    %v2608 = vld [vmem:[%s16] sm:$0xff]
    %v2609 = vld [vmem:[%s16 + $0x8] sm:$0xff]
    %v2610 = vld [vmem:[%s16 + $0x10] sm:$0xff]
    %v2611 = vld [vmem:[%s16 + $0x18] sm:$0xff]
    %v2613 = vsel %vm163, %v2606, 0
    %v2616 = vsel %vm163, %v2607, 0
    %2618 = vmatprep.subr.mxu0 0.0
    %2619 = vmatpush1.msra.mxu0 %v2608
    %2620 = vmatprep.subr.mxu0 0.0
    %2621 = vmatpush1.msra.mxu0 %v2609
    %2622 = vmatprep.subr.mxu0 0.0
    %2623 = vmatpush1.msra.mxu0 %v2610
    %2624 = vmatprep.subr.mxu0 0.0
    %2625 = vmatpush1.msra.mxu0 %v2611
    %2626 = vmatprep.subr.mxu0 0.0
    %2627 = vmatpush1.msra.mxu0 0.0
    %2628 = vmatprep.subr.mxu0 0.0
    %2629 = vmatpush1.msra.mxu0 0.0
    %2630 = vmatprep.subr.mxu0 0.0
    %2631 = vmatpush1.msra.mxu0 0.0
    %2632 = vmatprep.subr.mxu0 0.0
    %2633 = vmatpush1.msra.mxu0 0.0
    %2634 = vmatprep.subr.mxu0 0.0
    %2635 = vmatpush1.msra.mxu0 0.0
    %2636 = vmatprep.subr.mxu0 0.0
    %2637 = vmatpush1.msra.mxu0 0.0
    %2638 = vmatprep.subr.mxu0 0.0
    %2639 = vmatpush1.msra.mxu0 0.0
    %2640 = vmatprep.subr.mxu0 0.0
    %2641 = vmatpush1.msra.mxu0 0.0
    %2642 = vmatprep.subr.mxu0 0.0
    %2643 = vmatpush1.msra.mxu0 0.0
    %2644 = vmatprep.subr.mxu0 0.0
    %2645 = vmatpush1.msra.mxu0 0.0
    %2646 = vmatprep.subr.mxu0 0.0
    %2647 = vmatpush1.msra.mxu0 0.0
    %2648 = vmatprep.subr.mxu0 0.0
    %2649 = vmatpush1.msra.mxu0 0.0
    %2650 = vmatprep.subr.mxu0 0.0
    %2651 = vmatpush1.msra.mxu0 0.0
    %2652 = vmatprep.subr.mxu0 0.0
    %2653 = vmatpush1.msra.mxu0 0.0
    %2654 = vmatprep.subr.mxu0 0.0
    %2655 = vmatpush1.msra.mxu0 0.0
    %2656 = vmatprep.subr.mxu0 0.0
    %2657 = vmatpush1.msra.mxu0 0.0
    %2658 = vmatprep.subr.mxu0 0.0
    %2659 = vmatpush1.msra.mxu0 0.0
    %2660 = vmatprep.subr.mxu0 0.0
    %2661 = vmatpush1.msra.mxu0 0.0
    %2662 = vmatprep.subr.mxu0 0.0
    %2663 = vmatpush1.msra.mxu0 0.0
    %2664 = vmatprep.subr.mxu0 0.0
    %2665 = vmatpush1.msra.mxu0 0.0
    %2666 = vmatprep.subr.mxu0 0.0
    %2667 = vmatpush1.msra.mxu0 0.0
    %2668 = vmatprep.subr.mxu0 0.0
    %2669 = vmatpush1.msra.mxu0 0.0
    %2670 = vmatprep.subr.mxu0 0.0
    %2671 = vmatpush1.msra.mxu0 0.0
    %2672 = vmatprep.subr.mxu0 0.0
    %2673 = vmatpush1.msra.mxu0 0.0
    %2674 = vmatprep.subr.mxu0 0.0
    %2675 = vmatpush1.msra.mxu0 0.0
    %2676 = vmatprep.subr.mxu0 0.0
    %2677 = vmatpush1.msra.mxu0 0.0
    %2678 = vmatprep.subr.mxu0 0.0
    %2679 = vmatpush1.msra.mxu0 0.0
    %2680 = vmatprep.subr.mxu0 0.0
    %2681 = vmatpush1.msra.mxu0 0.0
    %2682 = vmatprep.mubr.f32.mxu0 0.0
    %2683 = vmatmul.mubr.f32.gmra.mrb[0].mxu0 %v2613
    %v2684 = vpop.f32.mrb[0].mxu0
    %v2685 = vadd.f32 0.0, %v2684
    %v2686 = vpop.f32.mrb[0].mxu0
    %2687 = vmatprep.mubr.f32.mxu0 0.0
    %2688 = vmatmul.mubr.f32.gmra.mrb[0].mxu0 %v2616
    %v2689 = vpop.f32.mrb[0].mxu0
    %v2690 = vadd.f32 0.0, %v2689
    %v2691 = vpop.f32.mrb[0].mxu0
    %2692 = vdwg.mxu0
    %2693 = vst.msk [vmem:[#allocation2] sm:$0xff] %vm77, %v2685
    %2694 = vst.msk [vmem:[#allocation2 + $0x8] sm:$0xff] %vm77, %v2690
    // Predicated region
    $region70: #{gpt_forward.1} parent=1 // pred_check
      _
    $region71: #{gpt_forward.1} parent=1 // pred_check_branch
      %2696 = sbr.rel (0) target = $region73
    $region72: #{gpt_forward.1} parent=1 // pred_region
      %s2698 = ssub.s32 256, 256
      %2699 = vsyncadd [#allocation3], %s2698
      %s2700 = sshll.u32 [#allocation2], 4
      %s2701 = int_to_ptr.vmem [resolvable:$true] %s2700
      %2706 = dma.vmem_to_hbm [thread:$0]  %s2701, 256, %s17, [#allocation3], 128, 128, 8
    $region73: #{gpt_forward.1} parent=1 // pred_fallthru
      _
    // Predicated region
    $region74: #{gpt_forward.1} parent=1 // pred_check
      _
    $region75: #{gpt_forward.1} parent=1 // pred_check_branch
      %2708 = sbr.rel (0) target = $region77
    $region76: #{gpt_forward.1} parent=1 // pred_region
      %2709 = dma.done [#allocation3], 256
    $region77: #{gpt_forward.1} parent=1 // pred_fallthru
      _
    %2710 = vsyncpa [#allocation3], 1

</llo_original>
